<compile_context>
chip_gen: v7x
topology: tpu7x:2x2x1
jax: 0.10.0
libtpu: 0.0.40
codegen_flags: <defaults>
</compile_context>

<pallas_src>
import functools
import jax
import jax.numpy as jnp
from jax.experimental import pallas as pl
from jax.experimental.pallas import tpu as pltpu

# ----------------------- tiny "bert-base" config -----------------------
VOCAB = 64
MAX_POS = 16
TYPE_VOCAB = 2
HIDDEN = 128
NUM_HEADS = 2
HEAD_DIM = HIDDEN // NUM_HEADS            # 64
DH_PAD = 128                              # lane-padded head dim
INTERMEDIATE = 256
NUM_LAYERS = 2
NUM_LABELS = 2
LN_EPS = 1e-12
LANE = 128                                # lane-dense classifier padding

# slab row layout (all 128-wide bias / LayerNorm vectors in one array)
ROWS_PER_LAYER = 12                       # bq(2) bk(2) bv(2) bo ln1_g ln1_b b2 ln2_g ln2_b
R_EMB_LN_G, R_EMB_LN_B = 0, 1
R_POOL_B = 2 + NUM_LAYERS * ROWS_PER_LAYER        # 26
R_CLS_B = R_POOL_B + 1                            # 27
SLAB_ROWS = R_CLS_B + 1                           # 28


# --------------------------- fused kernel -------------------------------
def _fused_bert_kernel(emb_ref, mask_ref, slab_ref,
                       wqkv_ref, wo_ref, w1_ref, b1_ref, w2_ref,
                       pool_w_ref, cls_w_ref,
                       logits_ref, *, batch, seq):
    def srow(r):                                       # (1, 128) static slab row
        return slab_ref[r:r + 1, :]

    def layer_norm(x, g, b):
        # one-pass statistics: var = E[x^2] - E[x]^2
        m = jnp.mean(x, axis=-1, keepdims=True)
        m2 = jnp.mean(x * x, axis=-1, keepdims=True)
        var = jnp.maximum(m2 - m * m, 0.0)
        return (x - m) * jax.lax.rsqrt(var + LN_EPS) * g + b

    def mm(x, w):                                      # f32 MXU matmul
        return jnp.dot(x, w, preferred_element_type=jnp.float32)

    mask = mask_ref[...]                               # (B*S, B*S) block-diag additive, hoisted

    # Embedding LayerNorm.
    x = layer_norm(emb_ref[...], srow(R_EMB_LN_G), srow(R_EMB_LN_B))   # (B*S, H)

    QO, KO, VO = 0, NUM_HEADS * DH_PAD, 2 * NUM_HEADS * DH_PAD
    for l in range(NUM_LAYERS):                        # statically unrolled
        base = 2 + l * ROWS_PER_LAYER

        # fused lane-padded Q|K|V projection: one (128 -> 768) matmul
        qkv = mm(x, wqkv_ref[l])                       # (B*S, 3*NH*DH_PAD)

        # attention: one block-masked softmax per head over all batches at once
        attn = srow(base + 6)                          # bo, broadcasts to (B*S, H)
        for h in range(NUM_HEADS):
            c = h * DH_PAD
            q = qkv[:, QO + c:QO + c + DH_PAD] + srow(base + 0 + h)   # scale folded in
            k = qkv[:, KO + c:KO + c + DH_PAD] + srow(base + 2 + h)
            v = qkv[:, VO + c:VO + c + DH_PAD] + srow(base + 4 + h)
            # q @ k^T without materializing the transpose
            s = jax.lax.dot_general(q, k, (((1,), (1,)), ((), ())),
                                    preferred_element_type=jnp.float32)   # (B*S, B*S)
            s = s + mask
            s = s - jnp.max(s, axis=-1, keepdims=True)
            p = jnp.exp(s)
            p = p / jnp.sum(p, axis=-1, keepdims=True)                    # exact softmax
            ctx = jnp.dot(p, v, preferred_element_type=jnp.float32)      # (B*S, DH_PAD)
            attn = attn + mm(ctx, wo_ref[l * NUM_HEADS + h])             # per-head wo, no concat

        # output projection residual + LayerNorm
        x = layer_norm(x + attn, srow(base + 7), srow(base + 8))

        # FFN + residual + LayerNorm
        h1 = mm(x, w1_ref[l]) + b1_ref[l]
        # TODO(synk): HF BERT uses exact erf-based GELU; tanh approximation used here.
        h1 = jax.nn.gelu(h1, approximate=True)
        ffn = mm(h1, w2_ref[l]) + srow(base + 9)
        x = layer_norm(x + ffn, srow(base + 10), srow(base + 11))

    # pooler (tanh on [CLS]) + lane-padded classifier head
    cls = jnp.concatenate([x[b * seq:b * seq + 1, :] for b in range(batch)], axis=0)
    pooled = jnp.tanh(mm(cls, pool_w_ref[...]) + srow(R_POOL_B))          # (B, H)
    logits_ref[...] = mm(pooled, cls_w_ref[...]) + srow(R_CLS_B)          # (B, 128)


# --------------------------- parameters ---------------------------------
def init_params(key):
    def norm(k, shape, scale=0.02):
        return scale * jax.random.normal(k, shape, dtype=jnp.float32)

    keys = iter(jax.random.split(key, 8 + NUM_LAYERS * 16))
    p = {
        "word_emb": norm(next(keys), (VOCAB, HIDDEN)),
        "pos_emb": norm(next(keys), (MAX_POS, HIDDEN)),
        "type_emb": norm(next(keys), (TYPE_VOCAB, HIDDEN)),
        "emb_ln_g": jnp.ones((HIDDEN,), jnp.float32),
        "emb_ln_b": jnp.zeros((HIDDEN,), jnp.float32),
        "pool_w": norm(next(keys), (HIDDEN, HIDDEN)),
        "pool_b": jnp.zeros((HIDDEN,), jnp.float32),
        "cls_w": norm(next(keys), (HIDDEN, NUM_LABELS)),
        "cls_b": jnp.zeros((NUM_LABELS,), jnp.float32),
    }
    layers = []
    for _ in range(NUM_LAYERS):
        layers.append({
            "wq": norm(next(keys), (HIDDEN, HIDDEN)), "bq": jnp.zeros((HIDDEN,), jnp.float32),
            "wk": norm(next(keys), (HIDDEN, HIDDEN)), "bk": jnp.zeros((HIDDEN,), jnp.float32),
            "wv": norm(next(keys), (HIDDEN, HIDDEN)), "bv": jnp.zeros((HIDDEN,), jnp.float32),
            "wo": norm(next(keys), (HIDDEN, HIDDEN)), "bo": jnp.zeros((HIDDEN,), jnp.float32),
            "ln1_g": jnp.ones((HIDDEN,), jnp.float32), "ln1_b": jnp.zeros((HIDDEN,), jnp.float32),
            "w1": norm(next(keys), (HIDDEN, INTERMEDIATE)), "b1": jnp.zeros((INTERMEDIATE,), jnp.float32),
            "w2": norm(next(keys), (INTERMEDIATE, HIDDEN)), "b2": jnp.zeros((HIDDEN,), jnp.float32),
            "ln2_g": jnp.ones((HIDDEN,), jnp.float32), "ln2_b": jnp.zeros((HIDDEN,), jnp.float32),
        })
    p["layers"] = layers
    return p


def pack_params(p):
    """Lane-pad heads, fold softmax scale into Q, pack biases into one slab."""
    scale = 1.0 / (HEAD_DIM ** 0.5)
    pad = DH_PAD - HEAD_DIM

    def pad_head_mat(w, h, s=1.0):                  # (H, HEAD_DIM) -> (H, DH_PAD)
        wh = w[:, h * HEAD_DIM:(h + 1) * HEAD_DIM] * s
        return jnp.pad(wh, ((0, 0), (0, pad)))

    def pad_head_vec(v, h, s=1.0):                  # (HEAD_DIM,) -> (DH_PAD,)
        vh = v[h * HEAD_DIM:(h + 1) * HEAD_DIM] * s
        return jnp.pad(vh, (0, pad))

    wqkv_list, wo_list, w1_list, b1_list, w2_list = [], [], [], [], []
    slab_rows = [p["emb_ln_g"], p["emb_ln_b"]]
    for lyr in p["layers"]:
        cols = ([pad_head_mat(lyr["wq"], h, scale) for h in range(NUM_HEADS)]
                + [pad_head_mat(lyr["wk"], h) for h in range(NUM_HEADS)]
                + [pad_head_mat(lyr["wv"], h) for h in range(NUM_HEADS)])
        wqkv_list.append(jnp.concatenate(cols, axis=1))              # (H, 3*NH*DH_PAD)
        for h in range(NUM_HEADS):                                   # wo split per head, rows padded
            woh = lyr["wo"][h * HEAD_DIM:(h + 1) * HEAD_DIM, :]
            wo_list.append(jnp.pad(woh, ((0, pad), (0, 0))))         # (DH_PAD, H)
        w1_list.append(lyr["w1"])
        b1_list.append(lyr["b1"].reshape(1, INTERMEDIATE))
        w2_list.append(lyr["w2"])
        slab_rows += ([pad_head_vec(lyr["bq"], h, scale) for h in range(NUM_HEADS)]
                      + [pad_head_vec(lyr["bk"], h) for h in range(NUM_HEADS)]
                      + [pad_head_vec(lyr["bv"], h) for h in range(NUM_HEADS)]
                      + [lyr["bo"], lyr["ln1_g"], lyr["ln1_b"],
                         lyr["b2"], lyr["ln2_g"], lyr["ln2_b"]])

    cls_w_pad = jnp.zeros((HIDDEN, LANE), jnp.float32).at[:, :NUM_LABELS].set(p["cls_w"])
    cls_b_pad = jnp.zeros((LANE,), jnp.float32).at[:NUM_LABELS].set(p["cls_b"])
    slab_rows += [p["pool_b"], cls_b_pad]
    slab = jnp.stack(slab_rows).astype(jnp.float32)
    assert slab.shape == (SLAB_ROWS, LANE)

    return {
        "word_emb": p["word_emb"], "pos_emb": p["pos_emb"], "type_emb": p["type_emb"],
        "slab": slab,                                     # (28, 128)
        "wqkv": jnp.stack(wqkv_list),                     # (L, 128, 768)
        "wo": jnp.stack(wo_list),                         # (L*NH, 128, 128)
        "w1": jnp.stack(w1_list),                         # (L, 128, 256)
        "b1": jnp.stack(b1_list),                         # (L, 1, 256)
        "w2": jnp.stack(w2_list),                         # (L, 256, 128)
        "pool_w": p["pool_w"],                            # (128, 128)
        "cls_w": cls_w_pad,                               # (128, 128)
    }


# ----------------------------- forward -----------------------------------
def bert_forward(packed, input_ids, attention_mask, token_type_ids):
    B, S = input_ids.shape
    pos_ids = jnp.arange(S, dtype=jnp.int32)

    # Embedding gathers stay in plain JAX (no clean Pallas equivalent at this size).
    emb = (jnp.take(packed["word_emb"], input_ids, axis=0)
           + jnp.take(packed["pos_emb"], pos_ids, axis=0)[None, :, :]
           + jnp.take(packed["type_emb"], token_type_ids, axis=0)).reshape(B * S, HIDDEN)

    # Block-diagonal additive attention mask (B*S, B*S): HF-style -10000 on
    # masked keys, and -10000 on all cross-batch entries.
    key_add = (1.0 - attention_mask.astype(jnp.float32).reshape(-1)) * -10000.0    # (B*S,)
    batch_ids = jnp.repeat(jnp.arange(B, dtype=jnp.int32), S)                       # (B*S,)
    same = batch_ids[:, None] == batch_ids[None, :]
    bd_mask = jnp.where(same, key_add[None, :], -10000.0)                           # (B*S, B*S)

    inputs = (emb, bd_mask, packed["slab"],
              packed["wqkv"], packed["wo"],
              packed["w1"], packed["b1"], packed["w2"],
              packed["pool_w"], packed["cls_w"])

    kernel = functools.partial(_fused_bert_kernel, batch=B, seq=S)
    vmem_spec = pl.BlockSpec(memory_space=pltpu.MemorySpace.VMEM)
    logits_pad = pl.pallas_call(
        kernel,
        out_shape=jax.ShapeDtypeStruct((B, LANE), jnp.float32),
        in_specs=[vmem_spec] * len(inputs),
        out_specs=vmem_spec,
    )(*inputs)

    return logits_pad[:, :NUM_LABELS]    # (B, NUM_LABELS)


# ------------------------------- main -------------------------------------
if __name__ == "__main__":
    B, S = 2, 8
    key = jax.random.PRNGKey(0)
    k_param, k_ids = jax.random.split(key)

    packed = pack_params(init_params(k_param))
    input_ids = jax.random.randint(k_ids, (B, S), 0, VOCAB, dtype=jnp.int32)
    attention_mask = jnp.ones((B, S), dtype=jnp.int32).at[1, 6:].set(0)
    token_type_ids = jnp.zeros((B, S), dtype=jnp.int32)

    fwd = jax.jit(functools.partial(bert_forward, packed))
    logits = fwd(input_ids, attention_mask, token_type_ids)
    jax.block_until_ready(logits)
    assert logits.shape == (B, NUM_LABELS) and logits.dtype == jnp.float32
    print("KERNEL_OK")
</pallas_src>

<mosaic_0001>
module attributes {stable_mosaic.version = 11 : i64} {
  func.func @_fused_bert_kernel(%arg0: memref<16x128xf32, #tpu.memory_space<vmem>>, %arg1: memref<16x16xf32, #tpu.memory_space<vmem>>, %arg2: memref<28x128xf32, #tpu.memory_space<vmem>>, %arg3: memref<2x128x768xf32, #tpu.memory_space<vmem>>, %arg4: memref<4x128x128xf32, #tpu.memory_space<vmem>>, %arg5: memref<2x128x256xf32, #tpu.memory_space<vmem>>, %arg6: memref<2x1x256xf32, #tpu.memory_space<vmem>>, %arg7: memref<2x256x128xf32, #tpu.memory_space<vmem>>, %arg8: memref<128x128xf32, #tpu.memory_space<vmem>>, %arg9: memref<128x128xf32, #tpu.memory_space<vmem>>, %arg10: memref<2x128xf32, #tpu.memory_space<vmem>>) attributes {dimension_semantics = [], scalar_prefetch = 0 : i64, scratch_operands = 0 : i64, tpu.core_type = #tpu.core_type<tc>} {
    %c0 = arith.constant 0 : index
    %c0_0 = arith.constant 0 : index
    %0 = vector.load %arg1[%c0, %c0_0] : memref<16x16xf32, #tpu.memory_space<vmem>>, vector<16x16xf32>
    %c0_1 = arith.constant 0 : index
    %c0_2 = arith.constant 0 : index
    %1 = vector.load %arg0[%c0_1, %c0_2] : memref<16x128xf32, #tpu.memory_space<vmem>>, vector<16x128xf32>
    %c0_3 = arith.constant 0 : index
    %c0_4 = arith.constant 0 : index
    %2 = vector.load %arg2[%c0_3, %c0_4] : memref<28x128xf32, #tpu.memory_space<vmem>>, vector<1x128xf32>
    %c1 = arith.constant 1 : index
    %c0_5 = arith.constant 0 : index
    %3 = vector.load %arg2[%c1, %c0_5] : memref<28x128xf32, #tpu.memory_space<vmem>>, vector<1x128xf32>
    %cst = arith.constant dense<0.000000e+00> : vector<16xf32>
    %4 = vector.multi_reduction <add>, %1, %cst [1] : vector<16x128xf32> to vector<16xf32>
    %5 = vector.shape_cast %4 : vector<16xf32> to vector<16x1xf32>
    %cst_6 = arith.constant 1.280000e+02 : f32
    %6 = vector.broadcast %cst_6 : f32 to vector<16x1xf32>
    %7 = arith.divf %5, %6 : vector<16x1xf32>
    %8 = arith.mulf %1, %1 : vector<16x128xf32>
    %cst_7 = arith.constant dense<0.000000e+00> : vector<16xf32>
    %9 = vector.multi_reduction <add>, %8, %cst_7 [1] : vector<16x128xf32> to vector<16xf32>
    %10 = vector.shape_cast %9 : vector<16xf32> to vector<16x1xf32>
    %cst_8 = arith.constant 1.280000e+02 : f32
    %11 = vector.broadcast %cst_8 : f32 to vector<16x1xf32>
    %12 = arith.divf %10, %11 : vector<16x1xf32>
    %13 = arith.mulf %7, %7 : vector<16x1xf32>
    %14 = arith.subf %12, %13 : vector<16x1xf32>
    %cst_9 = arith.constant 0.000000e+00 : f32
    %15 = vector.broadcast %cst_9 : f32 to vector<16x1xf32>
    %16 = arith.maximumf %14, %15 : vector<16x1xf32>
    %17 = vector.broadcast %7 : vector<16x1xf32> to vector<16x128xf32>
    %18 = arith.subf %1, %17 : vector<16x128xf32>
    %cst_10 = arith.constant 9.99999996E-13 : f32
    %19 = vector.broadcast %cst_10 : f32 to vector<16x1xf32>
    %20 = arith.addf %16, %19 : vector<16x1xf32>
    %21 = math.rsqrt %20 : vector<16x1xf32>
    %22 = vector.broadcast %21 : vector<16x1xf32> to vector<16x128xf32>
    %23 = arith.mulf %18, %22 : vector<16x128xf32>
    %24 = vector.broadcast %2 : vector<1x128xf32> to vector<16x128xf32>
    %25 = arith.mulf %23, %24 : vector<16x128xf32>
    %26 = vector.broadcast %3 : vector<1x128xf32> to vector<16x128xf32>
    %27 = arith.addf %25, %26 : vector<16x128xf32>
    %c0_11 = arith.constant 0 : index
    %c0_12 = arith.constant 0 : index
    %c0_13 = arith.constant 0 : index
    %28 = vector.load %arg3[%c0_11, %c0_12, %c0_13] : memref<2x128x768xf32, #tpu.memory_space<vmem>>, vector<1x128x768xf32>
    %29 = vector.shape_cast %28 : vector<1x128x768xf32> to vector<128x768xf32>
    %cst_14 = arith.constant dense<0.000000e+00> : vector<16x768xf32>
    %30 = tpu.matmul %27, %29, %cst_14 {dimension_numbers = #tpu.dot_dimension_numbers<[1], [0], [0], [1], [0, 0, 1, 1], [], []>} : vector<16x128xf32>, vector<128x768xf32>, vector<16x768xf32> -> vector<16x768xf32>
    %c8 = arith.constant 8 : index
    %c0_15 = arith.constant 0 : index
    %31 = vector.load %arg2[%c8, %c0_15] : memref<28x128xf32, #tpu.memory_space<vmem>>, vector<1x128xf32>
    %32 = vector.extract_strided_slice %30 {offsets = [0, 0], sizes = [16, 128], strides = [1, 1]} : vector<16x768xf32> to vector<16x128xf32>
    %c2 = arith.constant 2 : index
    %c0_16 = arith.constant 0 : index
    %33 = vector.load %arg2[%c2, %c0_16] : memref<28x128xf32, #tpu.memory_space<vmem>>, vector<1x128xf32>
    %34 = vector.broadcast %33 : vector<1x128xf32> to vector<16x128xf32>
    %35 = arith.addf %32, %34 : vector<16x128xf32>
    %36 = vector.extract_strided_slice %30 {offsets = [0, 256], sizes = [16, 128], strides = [1, 1]} : vector<16x768xf32> to vector<16x128xf32>
    %c4 = arith.constant 4 : index
    %c0_17 = arith.constant 0 : index
    %37 = vector.load %arg2[%c4, %c0_17] : memref<28x128xf32, #tpu.memory_space<vmem>>, vector<1x128xf32>
    %38 = vector.broadcast %37 : vector<1x128xf32> to vector<16x128xf32>
    %39 = arith.addf %36, %38 : vector<16x128xf32>
    %40 = vector.extract_strided_slice %30 {offsets = [0, 512], sizes = [16, 128], strides = [1, 1]} : vector<16x768xf32> to vector<16x128xf32>
    %c6 = arith.constant 6 : index
    %c0_18 = arith.constant 0 : index
    %41 = vector.load %arg2[%c6, %c0_18] : memref<28x128xf32, #tpu.memory_space<vmem>>, vector<1x128xf32>
    %42 = vector.broadcast %41 : vector<1x128xf32> to vector<16x128xf32>
    %43 = arith.addf %40, %42 : vector<16x128xf32>
    %cst_19 = arith.constant dense<0.000000e+00> : vector<16x16xf32>
    %44 = tpu.matmul %35, %39, %cst_19 {dimension_numbers = #tpu.dot_dimension_numbers<[1], [1], [0], [0], [0, 0, 1, 0], [], []>} : vector<16x128xf32>, vector<16x128xf32>, vector<16x16xf32> -> vector<16x16xf32>
    %45 = arith.addf %44, %0 : vector<16x16xf32>
    %cst_20 = arith.constant dense<0xFF800000> : vector<16xf32>
    %46 = vector.multi_reduction <maximumf>, %45, %cst_20 [1] : vector<16x16xf32> to vector<16xf32>
    %47 = vector.shape_cast %46 : vector<16xf32> to vector<16x1xf32>
    %48 = vector.broadcast %47 : vector<16x1xf32> to vector<16x16xf32>
    %49 = arith.subf %45, %48 : vector<16x16xf32>
    %50 = math.exp %49 : vector<16x16xf32>
    %cst_21 = arith.constant dense<0.000000e+00> : vector<16xf32>
    %51 = vector.multi_reduction <add>, %50, %cst_21 [1] : vector<16x16xf32> to vector<16xf32>
    %52 = vector.shape_cast %51 : vector<16xf32> to vector<16x1xf32>
    %53 = vector.broadcast %52 : vector<16x1xf32> to vector<16x16xf32>
    %54 = arith.divf %50, %53 : vector<16x16xf32>
    %cst_22 = arith.constant dense<0.000000e+00> : vector<16x128xf32>
    %55 = tpu.matmul %54, %43, %cst_22 {dimension_numbers = #tpu.dot_dimension_numbers<[1], [0], [0], [1], [0, 0, 1, 1], [], []>} : vector<16x16xf32>, vector<16x128xf32>, vector<16x128xf32> -> vector<16x128xf32>
    %c0_23 = arith.constant 0 : index
    %c0_24 = arith.constant 0 : index
    %c0_25 = arith.constant 0 : index
    %56 = vector.load %arg4[%c0_23, %c0_24, %c0_25] : memref<4x128x128xf32, #tpu.memory_space<vmem>>, vector<1x128x128xf32>
    %57 = vector.shape_cast %56 : vector<1x128x128xf32> to vector<128x128xf32>
    %cst_26 = arith.constant dense<0.000000e+00> : vector<16x128xf32>
    %58 = tpu.matmul %55, %57, %cst_26 {dimension_numbers = #tpu.dot_dimension_numbers<[1], [0], [0], [1], [0, 0, 1, 1], [], []>} : vector<16x128xf32>, vector<128x128xf32>, vector<16x128xf32> -> vector<16x128xf32>
    %59 = vector.broadcast %31 : vector<1x128xf32> to vector<16x128xf32>
    %60 = arith.addf %59, %58 : vector<16x128xf32>
    %61 = vector.extract_strided_slice %30 {offsets = [0, 128], sizes = [16, 128], strides = [1, 1]} : vector<16x768xf32> to vector<16x128xf32>
    %c3 = arith.constant 3 : index
    %c0_27 = arith.constant 0 : index
    %62 = vector.load %arg2[%c3, %c0_27] : memref<28x128xf32, #tpu.memory_space<vmem>>, vector<1x128xf32>
    %63 = vector.broadcast %62 : vector<1x128xf32> to vector<16x128xf32>
    %64 = arith.addf %61, %63 : vector<16x128xf32>
    %65 = vector.extract_strided_slice %30 {offsets = [0, 384], sizes = [16, 128], strides = [1, 1]} : vector<16x768xf32> to vector<16x128xf32>
    %c5 = arith.constant 5 : index
    %c0_28 = arith.constant 0 : index
    %66 = vector.load %arg2[%c5, %c0_28] : memref<28x128xf32, #tpu.memory_space<vmem>>, vector<1x128xf32>
    %67 = vector.broadcast %66 : vector<1x128xf32> to vector<16x128xf32>
    %68 = arith.addf %65, %67 : vector<16x128xf32>
    %69 = vector.extract_strided_slice %30 {offsets = [0, 640], sizes = [16, 128], strides = [1, 1]} : vector<16x768xf32> to vector<16x128xf32>
    %c7 = arith.constant 7 : index
    %c0_29 = arith.constant 0 : index
    %70 = vector.load %arg2[%c7, %c0_29] : memref<28x128xf32, #tpu.memory_space<vmem>>, vector<1x128xf32>
    %71 = vector.broadcast %70 : vector<1x128xf32> to vector<16x128xf32>
    %72 = arith.addf %69, %71 : vector<16x128xf32>
    %cst_30 = arith.constant dense<0.000000e+00> : vector<16x16xf32>
    %73 = tpu.matmul %64, %68, %cst_30 {dimension_numbers = #tpu.dot_dimension_numbers<[1], [1], [0], [0], [0, 0, 1, 0], [], []>} : vector<16x128xf32>, vector<16x128xf32>, vector<16x16xf32> -> vector<16x16xf32>
    %74 = arith.addf %73, %0 : vector<16x16xf32>
    %cst_31 = arith.constant dense<0xFF800000> : vector<16xf32>
    %75 = vector.multi_reduction <maximumf>, %74, %cst_31 [1] : vector<16x16xf32> to vector<16xf32>
    %76 = vector.shape_cast %75 : vector<16xf32> to vector<16x1xf32>
    %77 = vector.broadcast %76 : vector<16x1xf32> to vector<16x16xf32>
    %78 = arith.subf %74, %77 : vector<16x16xf32>
    %79 = math.exp %78 : vector<16x16xf32>
    %cst_32 = arith.constant dense<0.000000e+00> : vector<16xf32>
    %80 = vector.multi_reduction <add>, %79, %cst_32 [1] : vector<16x16xf32> to vector<16xf32>
    %81 = vector.shape_cast %80 : vector<16xf32> to vector<16x1xf32>
    %82 = vector.broadcast %81 : vector<16x1xf32> to vector<16x16xf32>
    %83 = arith.divf %79, %82 : vector<16x16xf32>
    %cst_33 = arith.constant dense<0.000000e+00> : vector<16x128xf32>
    %84 = tpu.matmul %83, %72, %cst_33 {dimension_numbers = #tpu.dot_dimension_numbers<[1], [0], [0], [1], [0, 0, 1, 1], [], []>} : vector<16x16xf32>, vector<16x128xf32>, vector<16x128xf32> -> vector<16x128xf32>
    %c1_34 = arith.constant 1 : index
    %c0_35 = arith.constant 0 : index
    %c0_36 = arith.constant 0 : index
    %85 = vector.load %arg4[%c1_34, %c0_35, %c0_36] : memref<4x128x128xf32, #tpu.memory_space<vmem>>, vector<1x128x128xf32>
    %86 = vector.shape_cast %85 : vector<1x128x128xf32> to vector<128x128xf32>
    %cst_37 = arith.constant dense<0.000000e+00> : vector<16x128xf32>
    %87 = tpu.matmul %84, %86, %cst_37 {dimension_numbers = #tpu.dot_dimension_numbers<[1], [0], [0], [1], [0, 0, 1, 1], [], []>} : vector<16x128xf32>, vector<128x128xf32>, vector<16x128xf32> -> vector<16x128xf32>
    %88 = arith.addf %60, %87 : vector<16x128xf32>
    %89 = arith.addf %27, %88 : vector<16x128xf32>
    %c9 = arith.constant 9 : index
    %c0_38 = arith.constant 0 : index
    %90 = vector.load %arg2[%c9, %c0_38] : memref<28x128xf32, #tpu.memory_space<vmem>>, vector<1x128xf32>
    %c10 = arith.constant 10 : index
    %c0_39 = arith.constant 0 : index
    %91 = vector.load %arg2[%c10, %c0_39] : memref<28x128xf32, #tpu.memory_space<vmem>>, vector<1x128xf32>
    %cst_40 = arith.constant dense<0.000000e+00> : vector<16xf32>
    %92 = vector.multi_reduction <add>, %89, %cst_40 [1] : vector<16x128xf32> to vector<16xf32>
    %93 = vector.shape_cast %92 : vector<16xf32> to vector<16x1xf32>
    %cst_41 = arith.constant 1.280000e+02 : f32
    %94 = vector.broadcast %cst_41 : f32 to vector<16x1xf32>
    %95 = arith.divf %93, %94 : vector<16x1xf32>
    %96 = arith.mulf %89, %89 : vector<16x128xf32>
    %cst_42 = arith.constant dense<0.000000e+00> : vector<16xf32>
    %97 = vector.multi_reduction <add>, %96, %cst_42 [1] : vector<16x128xf32> to vector<16xf32>
    %98 = vector.shape_cast %97 : vector<16xf32> to vector<16x1xf32>
    %cst_43 = arith.constant 1.280000e+02 : f32
    %99 = vector.broadcast %cst_43 : f32 to vector<16x1xf32>
    %100 = arith.divf %98, %99 : vector<16x1xf32>
    %101 = arith.mulf %95, %95 : vector<16x1xf32>
    %102 = arith.subf %100, %101 : vector<16x1xf32>
    %cst_44 = arith.constant 0.000000e+00 : f32
    %103 = vector.broadcast %cst_44 : f32 to vector<16x1xf32>
    %104 = arith.maximumf %102, %103 : vector<16x1xf32>
    %105 = vector.broadcast %95 : vector<16x1xf32> to vector<16x128xf32>
    %106 = arith.subf %89, %105 : vector<16x128xf32>
    %cst_45 = arith.constant 9.99999996E-13 : f32
    %107 = vector.broadcast %cst_45 : f32 to vector<16x1xf32>
    %108 = arith.addf %104, %107 : vector<16x1xf32>
    %109 = math.rsqrt %108 : vector<16x1xf32>
    %110 = vector.broadcast %109 : vector<16x1xf32> to vector<16x128xf32>
    %111 = arith.mulf %106, %110 : vector<16x128xf32>
    %112 = vector.broadcast %90 : vector<1x128xf32> to vector<16x128xf32>
    %113 = arith.mulf %111, %112 : vector<16x128xf32>
    %114 = vector.broadcast %91 : vector<1x128xf32> to vector<16x128xf32>
    %115 = arith.addf %113, %114 : vector<16x128xf32>
    %c0_46 = arith.constant 0 : index
    %c0_47 = arith.constant 0 : index
    %c0_48 = arith.constant 0 : index
    %116 = vector.load %arg5[%c0_46, %c0_47, %c0_48] : memref<2x128x256xf32, #tpu.memory_space<vmem>>, vector<1x128x256xf32>
    %117 = vector.shape_cast %116 : vector<1x128x256xf32> to vector<128x256xf32>
    %cst_49 = arith.constant dense<0.000000e+00> : vector<16x256xf32>
    %118 = tpu.matmul %115, %117, %cst_49 {dimension_numbers = #tpu.dot_dimension_numbers<[1], [0], [0], [1], [0, 0, 1, 1], [], []>} : vector<16x128xf32>, vector<128x256xf32>, vector<16x256xf32> -> vector<16x256xf32>
    %c0_50 = arith.constant 0 : index
    %c0_51 = arith.constant 0 : index
    %c0_52 = arith.constant 0 : index
    %119 = vector.load %arg6[%c0_50, %c0_51, %c0_52] : memref<2x1x256xf32, #tpu.memory_space<vmem>>, vector<1x1x256xf32>
    %120 = vector.shape_cast %119 : vector<1x1x256xf32> to vector<1x256xf32>
    %121 = vector.broadcast %120 : vector<1x256xf32> to vector<16x256xf32>
    %122 = arith.addf %118, %121 : vector<16x256xf32>
    %123 = arith.mulf %122, %122 : vector<16x256xf32>
    %124 = arith.mulf %122, %123 : vector<16x256xf32>
    %cst_53 = arith.constant 4.471500e-02 : f32
    %125 = vector.broadcast %cst_53 : f32 to vector<16x256xf32>
    %126 = arith.mulf %125, %124 : vector<16x256xf32>
    %127 = arith.addf %122, %126 : vector<16x256xf32>
    %cst_54 = arith.constant 0.797884583 : f32
    %128 = vector.broadcast %cst_54 : f32 to vector<16x256xf32>
    %129 = arith.mulf %128, %127 : vector<16x256xf32>
    %130 = math.tanh %129 : vector<16x256xf32>
    %cst_55 = arith.constant 1.000000e+00 : f32
    %131 = vector.broadcast %cst_55 : f32 to vector<16x256xf32>
    %132 = arith.addf %131, %130 : vector<16x256xf32>
    %cst_56 = arith.constant 5.000000e-01 : f32
    %133 = vector.broadcast %cst_56 : f32 to vector<16x256xf32>
    %134 = arith.mulf %133, %132 : vector<16x256xf32>
    %135 = arith.mulf %122, %134 : vector<16x256xf32>
    %c0_57 = arith.constant 0 : index
    %c0_58 = arith.constant 0 : index
    %c0_59 = arith.constant 0 : index
    %136 = vector.load %arg7[%c0_57, %c0_58, %c0_59] : memref<2x256x128xf32, #tpu.memory_space<vmem>>, vector<1x256x128xf32>
    %137 = vector.shape_cast %136 : vector<1x256x128xf32> to vector<256x128xf32>
    %cst_60 = arith.constant dense<0.000000e+00> : vector<16x128xf32>
    %138 = tpu.matmul %135, %137, %cst_60 {dimension_numbers = #tpu.dot_dimension_numbers<[1], [0], [0], [1], [0, 0, 1, 1], [], []>} : vector<16x256xf32>, vector<256x128xf32>, vector<16x128xf32> -> vector<16x128xf32>
    %c11 = arith.constant 11 : index
    %c0_61 = arith.constant 0 : index
    %139 = vector.load %arg2[%c11, %c0_61] : memref<28x128xf32, #tpu.memory_space<vmem>>, vector<1x128xf32>
    %140 = vector.broadcast %139 : vector<1x128xf32> to vector<16x128xf32>
    %141 = arith.addf %138, %140 : vector<16x128xf32>
    %142 = arith.addf %115, %141 : vector<16x128xf32>
    %c12 = arith.constant 12 : index
    %c0_62 = arith.constant 0 : index
    %143 = vector.load %arg2[%c12, %c0_62] : memref<28x128xf32, #tpu.memory_space<vmem>>, vector<1x128xf32>
    %c13 = arith.constant 13 : index
    %c0_63 = arith.constant 0 : index
    %144 = vector.load %arg2[%c13, %c0_63] : memref<28x128xf32, #tpu.memory_space<vmem>>, vector<1x128xf32>
    %cst_64 = arith.constant dense<0.000000e+00> : vector<16xf32>
    %145 = vector.multi_reduction <add>, %142, %cst_64 [1] : vector<16x128xf32> to vector<16xf32>
    %146 = vector.shape_cast %145 : vector<16xf32> to vector<16x1xf32>
    %cst_65 = arith.constant 1.280000e+02 : f32
    %147 = vector.broadcast %cst_65 : f32 to vector<16x1xf32>
    %148 = arith.divf %146, %147 : vector<16x1xf32>
    %149 = arith.mulf %142, %142 : vector<16x128xf32>
    %cst_66 = arith.constant dense<0.000000e+00> : vector<16xf32>
    %150 = vector.multi_reduction <add>, %149, %cst_66 [1] : vector<16x128xf32> to vector<16xf32>
    %151 = vector.shape_cast %150 : vector<16xf32> to vector<16x1xf32>
    %cst_67 = arith.constant 1.280000e+02 : f32
    %152 = vector.broadcast %cst_67 : f32 to vector<16x1xf32>
    %153 = arith.divf %151, %152 : vector<16x1xf32>
    %154 = arith.mulf %148, %148 : vector<16x1xf32>
    %155 = arith.subf %153, %154 : vector<16x1xf32>
    %cst_68 = arith.constant 0.000000e+00 : f32
    %156 = vector.broadcast %cst_68 : f32 to vector<16x1xf32>
    %157 = arith.maximumf %155, %156 : vector<16x1xf32>
    %158 = vector.broadcast %148 : vector<16x1xf32> to vector<16x128xf32>
    %159 = arith.subf %142, %158 : vector<16x128xf32>
    %cst_69 = arith.constant 9.99999996E-13 : f32
    %160 = vector.broadcast %cst_69 : f32 to vector<16x1xf32>
    %161 = arith.addf %157, %160 : vector<16x1xf32>
    %162 = math.rsqrt %161 : vector<16x1xf32>
    %163 = vector.broadcast %162 : vector<16x1xf32> to vector<16x128xf32>
    %164 = arith.mulf %159, %163 : vector<16x128xf32>
    %165 = vector.broadcast %143 : vector<1x128xf32> to vector<16x128xf32>
    %166 = arith.mulf %164, %165 : vector<16x128xf32>
    %167 = vector.broadcast %144 : vector<1x128xf32> to vector<16x128xf32>
    %168 = arith.addf %166, %167 : vector<16x128xf32>
    %c1_70 = arith.constant 1 : index
    %c0_71 = arith.constant 0 : index
    %c0_72 = arith.constant 0 : index
    %169 = vector.load %arg3[%c1_70, %c0_71, %c0_72] : memref<2x128x768xf32, #tpu.memory_space<vmem>>, vector<1x128x768xf32>
    %170 = vector.shape_cast %169 : vector<1x128x768xf32> to vector<128x768xf32>
    %cst_73 = arith.constant dense<0.000000e+00> : vector<16x768xf32>
    %171 = tpu.matmul %168, %170, %cst_73 {dimension_numbers = #tpu.dot_dimension_numbers<[1], [0], [0], [1], [0, 0, 1, 1], [], []>} : vector<16x128xf32>, vector<128x768xf32>, vector<16x768xf32> -> vector<16x768xf32>
    %c20 = arith.constant 20 : index
    %c0_74 = arith.constant 0 : index
    %172 = vector.load %arg2[%c20, %c0_74] : memref<28x128xf32, #tpu.memory_space<vmem>>, vector<1x128xf32>
    %173 = vector.extract_strided_slice %171 {offsets = [0, 0], sizes = [16, 128], strides = [1, 1]} : vector<16x768xf32> to vector<16x128xf32>
    %c14 = arith.constant 14 : index
    %c0_75 = arith.constant 0 : index
    %174 = vector.load %arg2[%c14, %c0_75] : memref<28x128xf32, #tpu.memory_space<vmem>>, vector<1x128xf32>
    %175 = vector.broadcast %174 : vector<1x128xf32> to vector<16x128xf32>
    %176 = arith.addf %173, %175 : vector<16x128xf32>
    %177 = vector.extract_strided_slice %171 {offsets = [0, 256], sizes = [16, 128], strides = [1, 1]} : vector<16x768xf32> to vector<16x128xf32>
    %c16 = arith.constant 16 : index
    %c0_76 = arith.constant 0 : index
    %178 = vector.load %arg2[%c16, %c0_76] : memref<28x128xf32, #tpu.memory_space<vmem>>, vector<1x128xf32>
    %179 = vector.broadcast %178 : vector<1x128xf32> to vector<16x128xf32>
    %180 = arith.addf %177, %179 : vector<16x128xf32>
    %181 = vector.extract_strided_slice %171 {offsets = [0, 512], sizes = [16, 128], strides = [1, 1]} : vector<16x768xf32> to vector<16x128xf32>
    %c18 = arith.constant 18 : index
    %c0_77 = arith.constant 0 : index
    %182 = vector.load %arg2[%c18, %c0_77] : memref<28x128xf32, #tpu.memory_space<vmem>>, vector<1x128xf32>
    %183 = vector.broadcast %182 : vector<1x128xf32> to vector<16x128xf32>
    %184 = arith.addf %181, %183 : vector<16x128xf32>
    %cst_78 = arith.constant dense<0.000000e+00> : vector<16x16xf32>
    %185 = tpu.matmul %176, %180, %cst_78 {dimension_numbers = #tpu.dot_dimension_numbers<[1], [1], [0], [0], [0, 0, 1, 0], [], []>} : vector<16x128xf32>, vector<16x128xf32>, vector<16x16xf32> -> vector<16x16xf32>
    %186 = arith.addf %185, %0 : vector<16x16xf32>
    %cst_79 = arith.constant dense<0xFF800000> : vector<16xf32>
    %187 = vector.multi_reduction <maximumf>, %186, %cst_79 [1] : vector<16x16xf32> to vector<16xf32>
    %188 = vector.shape_cast %187 : vector<16xf32> to vector<16x1xf32>
    %189 = vector.broadcast %188 : vector<16x1xf32> to vector<16x16xf32>
    %190 = arith.subf %186, %189 : vector<16x16xf32>
    %191 = math.exp %190 : vector<16x16xf32>
    %cst_80 = arith.constant dense<0.000000e+00> : vector<16xf32>
    %192 = vector.multi_reduction <add>, %191, %cst_80 [1] : vector<16x16xf32> to vector<16xf32>
    %193 = vector.shape_cast %192 : vector<16xf32> to vector<16x1xf32>
    %194 = vector.broadcast %193 : vector<16x1xf32> to vector<16x16xf32>
    %195 = arith.divf %191, %194 : vector<16x16xf32>
    %cst_81 = arith.constant dense<0.000000e+00> : vector<16x128xf32>
    %196 = tpu.matmul %195, %184, %cst_81 {dimension_numbers = #tpu.dot_dimension_numbers<[1], [0], [0], [1], [0, 0, 1, 1], [], []>} : vector<16x16xf32>, vector<16x128xf32>, vector<16x128xf32> -> vector<16x128xf32>
    %c2_82 = arith.constant 2 : index
    %c0_83 = arith.constant 0 : index
    %c0_84 = arith.constant 0 : index
    %197 = vector.load %arg4[%c2_82, %c0_83, %c0_84] : memref<4x128x128xf32, #tpu.memory_space<vmem>>, vector<1x128x128xf32>
    %198 = vector.shape_cast %197 : vector<1x128x128xf32> to vector<128x128xf32>
    %cst_85 = arith.constant dense<0.000000e+00> : vector<16x128xf32>
    %199 = tpu.matmul %196, %198, %cst_85 {dimension_numbers = #tpu.dot_dimension_numbers<[1], [0], [0], [1], [0, 0, 1, 1], [], []>} : vector<16x128xf32>, vector<128x128xf32>, vector<16x128xf32> -> vector<16x128xf32>
    %200 = vector.broadcast %172 : vector<1x128xf32> to vector<16x128xf32>
    %201 = arith.addf %200, %199 : vector<16x128xf32>
    %202 = vector.extract_strided_slice %171 {offsets = [0, 128], sizes = [16, 128], strides = [1, 1]} : vector<16x768xf32> to vector<16x128xf32>
    %c15 = arith.constant 15 : index
    %c0_86 = arith.constant 0 : index
    %203 = vector.load %arg2[%c15, %c0_86] : memref<28x128xf32, #tpu.memory_space<vmem>>, vector<1x128xf32>
    %204 = vector.broadcast %203 : vector<1x128xf32> to vector<16x128xf32>
    %205 = arith.addf %202, %204 : vector<16x128xf32>
    %206 = vector.extract_strided_slice %171 {offsets = [0, 384], sizes = [16, 128], strides = [1, 1]} : vector<16x768xf32> to vector<16x128xf32>
    %c17 = arith.constant 17 : index
    %c0_87 = arith.constant 0 : index
    %207 = vector.load %arg2[%c17, %c0_87] : memref<28x128xf32, #tpu.memory_space<vmem>>, vector<1x128xf32>
    %208 = vector.broadcast %207 : vector<1x128xf32> to vector<16x128xf32>
    %209 = arith.addf %206, %208 : vector<16x128xf32>
    %210 = vector.extract_strided_slice %171 {offsets = [0, 640], sizes = [16, 128], strides = [1, 1]} : vector<16x768xf32> to vector<16x128xf32>
    %c19 = arith.constant 19 : index
    %c0_88 = arith.constant 0 : index
    %211 = vector.load %arg2[%c19, %c0_88] : memref<28x128xf32, #tpu.memory_space<vmem>>, vector<1x128xf32>
    %212 = vector.broadcast %211 : vector<1x128xf32> to vector<16x128xf32>
    %213 = arith.addf %210, %212 : vector<16x128xf32>
    %cst_89 = arith.constant dense<0.000000e+00> : vector<16x16xf32>
    %214 = tpu.matmul %205, %209, %cst_89 {dimension_numbers = #tpu.dot_dimension_numbers<[1], [1], [0], [0], [0, 0, 1, 0], [], []>} : vector<16x128xf32>, vector<16x128xf32>, vector<16x16xf32> -> vector<16x16xf32>
    %215 = arith.addf %214, %0 : vector<16x16xf32>
    %cst_90 = arith.constant dense<0xFF800000> : vector<16xf32>
    %216 = vector.multi_reduction <maximumf>, %215, %cst_90 [1] : vector<16x16xf32> to vector<16xf32>
    %217 = vector.shape_cast %216 : vector<16xf32> to vector<16x1xf32>
    %218 = vector.broadcast %217 : vector<16x1xf32> to vector<16x16xf32>
    %219 = arith.subf %215, %218 : vector<16x16xf32>
    %220 = math.exp %219 : vector<16x16xf32>
    %cst_91 = arith.constant dense<0.000000e+00> : vector<16xf32>
    %221 = vector.multi_reduction <add>, %220, %cst_91 [1] : vector<16x16xf32> to vector<16xf32>
    %222 = vector.shape_cast %221 : vector<16xf32> to vector<16x1xf32>
    %223 = vector.broadcast %222 : vector<16x1xf32> to vector<16x16xf32>
    %224 = arith.divf %220, %223 : vector<16x16xf32>
    %cst_92 = arith.constant dense<0.000000e+00> : vector<16x128xf32>
    %225 = tpu.matmul %224, %213, %cst_92 {dimension_numbers = #tpu.dot_dimension_numbers<[1], [0], [0], [1], [0, 0, 1, 1], [], []>} : vector<16x16xf32>, vector<16x128xf32>, vector<16x128xf32> -> vector<16x128xf32>
    %c3_93 = arith.constant 3 : index
    %c0_94 = arith.constant 0 : index
    %c0_95 = arith.constant 0 : index
    %226 = vector.load %arg4[%c3_93, %c0_94, %c0_95] : memref<4x128x128xf32, #tpu.memory_space<vmem>>, vector<1x128x128xf32>
    %227 = vector.shape_cast %226 : vector<1x128x128xf32> to vector<128x128xf32>
    %cst_96 = arith.constant dense<0.000000e+00> : vector<16x128xf32>
    %228 = tpu.matmul %225, %227, %cst_96 {dimension_numbers = #tpu.dot_dimension_numbers<[1], [0], [0], [1], [0, 0, 1, 1], [], []>} : vector<16x128xf32>, vector<128x128xf32>, vector<16x128xf32> -> vector<16x128xf32>
    %229 = arith.addf %201, %228 : vector<16x128xf32>
    %230 = arith.addf %168, %229 : vector<16x128xf32>
    %c21 = arith.constant 21 : index
    %c0_97 = arith.constant 0 : index
    %231 = vector.load %arg2[%c21, %c0_97] : memref<28x128xf32, #tpu.memory_space<vmem>>, vector<1x128xf32>
    %c22 = arith.constant 22 : index
    %c0_98 = arith.constant 0 : index
    %232 = vector.load %arg2[%c22, %c0_98] : memref<28x128xf32, #tpu.memory_space<vmem>>, vector<1x128xf32>
    %cst_99 = arith.constant dense<0.000000e+00> : vector<16xf32>
    %233 = vector.multi_reduction <add>, %230, %cst_99 [1] : vector<16x128xf32> to vector<16xf32>
    %234 = vector.shape_cast %233 : vector<16xf32> to vector<16x1xf32>
    %cst_100 = arith.constant 1.280000e+02 : f32
    %235 = vector.broadcast %cst_100 : f32 to vector<16x1xf32>
    %236 = arith.divf %234, %235 : vector<16x1xf32>
    %237 = arith.mulf %230, %230 : vector<16x128xf32>
    %cst_101 = arith.constant dense<0.000000e+00> : vector<16xf32>
    %238 = vector.multi_reduction <add>, %237, %cst_101 [1] : vector<16x128xf32> to vector<16xf32>
    %239 = vector.shape_cast %238 : vector<16xf32> to vector<16x1xf32>
    %cst_102 = arith.constant 1.280000e+02 : f32
    %240 = vector.broadcast %cst_102 : f32 to vector<16x1xf32>
    %241 = arith.divf %239, %240 : vector<16x1xf32>
    %242 = arith.mulf %236, %236 : vector<16x1xf32>
    %243 = arith.subf %241, %242 : vector<16x1xf32>
    %cst_103 = arith.constant 0.000000e+00 : f32
    %244 = vector.broadcast %cst_103 : f32 to vector<16x1xf32>
    %245 = arith.maximumf %243, %244 : vector<16x1xf32>
    %246 = vector.broadcast %236 : vector<16x1xf32> to vector<16x128xf32>
    %247 = arith.subf %230, %246 : vector<16x128xf32>
    %cst_104 = arith.constant 9.99999996E-13 : f32
    %248 = vector.broadcast %cst_104 : f32 to vector<16x1xf32>
    %249 = arith.addf %245, %248 : vector<16x1xf32>
    %250 = math.rsqrt %249 : vector<16x1xf32>
    %251 = vector.broadcast %250 : vector<16x1xf32> to vector<16x128xf32>
    %252 = arith.mulf %247, %251 : vector<16x128xf32>
    %253 = vector.broadcast %231 : vector<1x128xf32> to vector<16x128xf32>
    %254 = arith.mulf %252, %253 : vector<16x128xf32>
    %255 = vector.broadcast %232 : vector<1x128xf32> to vector<16x128xf32>
    %256 = arith.addf %254, %255 : vector<16x128xf32>
    %c1_105 = arith.constant 1 : index
    %c0_106 = arith.constant 0 : index
    %c0_107 = arith.constant 0 : index
    %257 = vector.load %arg5[%c1_105, %c0_106, %c0_107] : memref<2x128x256xf32, #tpu.memory_space<vmem>>, vector<1x128x256xf32>
    %258 = vector.shape_cast %257 : vector<1x128x256xf32> to vector<128x256xf32>
    %cst_108 = arith.constant dense<0.000000e+00> : vector<16x256xf32>
    %259 = tpu.matmul %256, %258, %cst_108 {dimension_numbers = #tpu.dot_dimension_numbers<[1], [0], [0], [1], [0, 0, 1, 1], [], []>} : vector<16x128xf32>, vector<128x256xf32>, vector<16x256xf32> -> vector<16x256xf32>
    %c1_109 = arith.constant 1 : index
    %c0_110 = arith.constant 0 : index
    %c0_111 = arith.constant 0 : index
    %260 = vector.load %arg6[%c1_109, %c0_110, %c0_111] : memref<2x1x256xf32, #tpu.memory_space<vmem>>, vector<1x1x256xf32>
    %261 = vector.shape_cast %260 : vector<1x1x256xf32> to vector<1x256xf32>
    %262 = vector.broadcast %261 : vector<1x256xf32> to vector<16x256xf32>
    %263 = arith.addf %259, %262 : vector<16x256xf32>
    %264 = arith.mulf %263, %263 : vector<16x256xf32>
    %265 = arith.mulf %263, %264 : vector<16x256xf32>
    %cst_112 = arith.constant 4.471500e-02 : f32
    %266 = vector.broadcast %cst_112 : f32 to vector<16x256xf32>
    %267 = arith.mulf %266, %265 : vector<16x256xf32>
    %268 = arith.addf %263, %267 : vector<16x256xf32>
    %cst_113 = arith.constant 0.797884583 : f32
    %269 = vector.broadcast %cst_113 : f32 to vector<16x256xf32>
    %270 = arith.mulf %269, %268 : vector<16x256xf32>
    %271 = math.tanh %270 : vector<16x256xf32>
    %cst_114 = arith.constant 1.000000e+00 : f32
    %272 = vector.broadcast %cst_114 : f32 to vector<16x256xf32>
    %273 = arith.addf %272, %271 : vector<16x256xf32>
    %cst_115 = arith.constant 5.000000e-01 : f32
    %274 = vector.broadcast %cst_115 : f32 to vector<16x256xf32>
    %275 = arith.mulf %274, %273 : vector<16x256xf32>
    %276 = arith.mulf %263, %275 : vector<16x256xf32>
    %c1_116 = arith.constant 1 : index
    %c0_117 = arith.constant 0 : index
    %c0_118 = arith.constant 0 : index
    %277 = vector.load %arg7[%c1_116, %c0_117, %c0_118] : memref<2x256x128xf32, #tpu.memory_space<vmem>>, vector<1x256x128xf32>
    %278 = vector.shape_cast %277 : vector<1x256x128xf32> to vector<256x128xf32>
    %cst_119 = arith.constant dense<0.000000e+00> : vector<16x128xf32>
    %279 = tpu.matmul %276, %278, %cst_119 {dimension_numbers = #tpu.dot_dimension_numbers<[1], [0], [0], [1], [0, 0, 1, 1], [], []>} : vector<16x256xf32>, vector<256x128xf32>, vector<16x128xf32> -> vector<16x128xf32>
    %c23 = arith.constant 23 : index
    %c0_120 = arith.constant 0 : index
    %280 = vector.load %arg2[%c23, %c0_120] : memref<28x128xf32, #tpu.memory_space<vmem>>, vector<1x128xf32>
    %281 = vector.broadcast %280 : vector<1x128xf32> to vector<16x128xf32>
    %282 = arith.addf %279, %281 : vector<16x128xf32>
    %283 = arith.addf %256, %282 : vector<16x128xf32>
    %c24 = arith.constant 24 : index
    %c0_121 = arith.constant 0 : index
    %284 = vector.load %arg2[%c24, %c0_121] : memref<28x128xf32, #tpu.memory_space<vmem>>, vector<1x128xf32>
    %c25 = arith.constant 25 : index
    %c0_122 = arith.constant 0 : index
    %285 = vector.load %arg2[%c25, %c0_122] : memref<28x128xf32, #tpu.memory_space<vmem>>, vector<1x128xf32>
    %cst_123 = arith.constant dense<0.000000e+00> : vector<16xf32>
    %286 = vector.multi_reduction <add>, %283, %cst_123 [1] : vector<16x128xf32> to vector<16xf32>
    %287 = vector.shape_cast %286 : vector<16xf32> to vector<16x1xf32>
    %cst_124 = arith.constant 1.280000e+02 : f32
    %288 = vector.broadcast %cst_124 : f32 to vector<16x1xf32>
    %289 = arith.divf %287, %288 : vector<16x1xf32>
    %290 = arith.mulf %283, %283 : vector<16x128xf32>
    %cst_125 = arith.constant dense<0.000000e+00> : vector<16xf32>
    %291 = vector.multi_reduction <add>, %290, %cst_125 [1] : vector<16x128xf32> to vector<16xf32>
    %292 = vector.shape_cast %291 : vector<16xf32> to vector<16x1xf32>
    %cst_126 = arith.constant 1.280000e+02 : f32
    %293 = vector.broadcast %cst_126 : f32 to vector<16x1xf32>
    %294 = arith.divf %292, %293 : vector<16x1xf32>
    %295 = arith.mulf %289, %289 : vector<16x1xf32>
    %296 = arith.subf %294, %295 : vector<16x1xf32>
    %cst_127 = arith.constant 0.000000e+00 : f32
    %297 = vector.broadcast %cst_127 : f32 to vector<16x1xf32>
    %298 = arith.maximumf %296, %297 : vector<16x1xf32>
    %299 = vector.broadcast %289 : vector<16x1xf32> to vector<16x128xf32>
    %300 = arith.subf %283, %299 : vector<16x128xf32>
    %cst_128 = arith.constant 9.99999996E-13 : f32
    %301 = vector.broadcast %cst_128 : f32 to vector<16x1xf32>
    %302 = arith.addf %298, %301 : vector<16x1xf32>
    %303 = math.rsqrt %302 : vector<16x1xf32>
    %304 = vector.broadcast %303 : vector<16x1xf32> to vector<16x128xf32>
    %305 = arith.mulf %300, %304 : vector<16x128xf32>
    %306 = vector.broadcast %284 : vector<1x128xf32> to vector<16x128xf32>
    %307 = arith.mulf %305, %306 : vector<16x128xf32>
    %308 = vector.broadcast %285 : vector<1x128xf32> to vector<16x128xf32>
    %309 = arith.addf %307, %308 : vector<16x128xf32>
    %310 = vector.extract_strided_slice %309 {offsets = [0, 0], sizes = [1, 128], strides = [1, 1]} : vector<16x128xf32> to vector<1x128xf32>
    %311 = vector.extract_strided_slice %309 {offsets = [8, 0], sizes = [1, 128], strides = [1, 1]} : vector<16x128xf32> to vector<1x128xf32>
    %312 = tpu.concatenate %310, %311 in 0 : vector<1x128xf32>, vector<1x128xf32> -> vector<2x128xf32>
    %c0_129 = arith.constant 0 : index
    %c0_130 = arith.constant 0 : index
    %313 = vector.load %arg8[%c0_129, %c0_130] : memref<128x128xf32, #tpu.memory_space<vmem>>, vector<128x128xf32>
    %cst_131 = arith.constant dense<0.000000e+00> : vector<2x128xf32>
    %314 = tpu.matmul %312, %313, %cst_131 {dimension_numbers = #tpu.dot_dimension_numbers<[1], [0], [0], [1], [0, 0, 1, 1], [], []>} : vector<2x128xf32>, vector<128x128xf32>, vector<2x128xf32> -> vector<2x128xf32>
    %c26 = arith.constant 26 : index
    %c0_132 = arith.constant 0 : index
    %315 = vector.load %arg2[%c26, %c0_132] : memref<28x128xf32, #tpu.memory_space<vmem>>, vector<1x128xf32>
    %316 = vector.broadcast %315 : vector<1x128xf32> to vector<2x128xf32>
    %317 = arith.addf %314, %316 : vector<2x128xf32>
    %318 = math.tanh %317 : vector<2x128xf32>
    %c0_133 = arith.constant 0 : index
    %c0_134 = arith.constant 0 : index
    %319 = vector.load %arg9[%c0_133, %c0_134] : memref<128x128xf32, #tpu.memory_space<vmem>>, vector<128x128xf32>
    %cst_135 = arith.constant dense<0.000000e+00> : vector<2x128xf32>
    %320 = tpu.matmul %318, %319, %cst_135 {dimension_numbers = #tpu.dot_dimension_numbers<[1], [0], [0], [1], [0, 0, 1, 1], [], []>} : vector<2x128xf32>, vector<128x128xf32>, vector<2x128xf32> -> vector<2x128xf32>
    %c27 = arith.constant 27 : index
    %c0_136 = arith.constant 0 : index
    %321 = vector.load %arg2[%c27, %c0_136] : memref<28x128xf32, #tpu.memory_space<vmem>>, vector<1x128xf32>
    %322 = vector.broadcast %321 : vector<1x128xf32> to vector<2x128xf32>
    %323 = arith.addf %320, %322 : vector<2x128xf32>
    %c0_137 = arith.constant 0 : index
    %c0_138 = arith.constant 0 : index
    %324 = vector.load %arg10[%c0_137, %c0_138] : memref<2x128xf32, #tpu.memory_space<vmem>>, vector<2x128xf32>
    tpu.vector_store %arg10[%c0_137, %c0_138], %323 {strides = array<i32>} : memref<2x128xf32, #tpu.memory_space<vmem>>, vector<2x128xf32>,
    return
  }
}

</mosaic_0001>

<llo_original>
// kernel: bert_forward.1
$region0: #{bert_forward.1}
  #allocation0 [shape = 'u32[]', space=smem, size = 0x4, offset = 0x4, fixed_abs, tag = 'smem constant byte address 0x4 - core index']
  #allocation1 [shape = 'u32[144,128]{1,0:T(1,128)}', space=vmem, size = 0x12000, scoped, tag = 'internal scratch']
  %s0 = inlined_call_operand.vmem [shape: f32[16,128], index: 0, kind: input, shape index: {}]
  %s1 = inlined_call_operand.vmem [shape: f32[16,16], index: 1, kind: input, shape index: {}]
  %s2 = inlined_call_operand.vmem [shape: f32[28,128], index: 2, kind: input, shape index: {}]
  %s3 = inlined_call_operand.hbm [shape: f32[2,128,768], index: 3, kind: input, shape index: {}]
  %s4 = inlined_call_operand.hbm [shape: f32[4,128,128], index: 4, kind: input, shape index: {}]
  %s5 = inlined_call_operand.hbm [shape: f32[2,128,256], index: 5, kind: input, shape index: {}]
  %s6 = inlined_call_operand.vmem [shape: f32[2,1,256], index: 6, kind: input, shape index: {}]
  %s7 = inlined_call_operand.hbm [shape: f32[2,256,128], index: 7, kind: input, shape index: {}]
  %s8 = inlined_call_operand.vmem [shape: f32[128,128], index: 8, kind: input, shape index: {}]
  %s9 = inlined_call_operand.vmem [shape: f32[128,128], index: 9, kind: input, shape index: {}]
  %s10 = inlined_call_operand.hbm [shape: f32[2,128], index: 10, kind: output, shape index: {}]
  %s11 = sld [smem:[#allocation0]]
  $region66: #{bert_forward.1} parent=0
    _
  %s13 = ssub.s32 1, %s11
  %s14 = scalar_select 0, %s13, %s11
  $region1: #{bert_forward.1} parent=0
    #allocation2 [shape = 'u8[786432]{0}', space=vmem, size = 0xc0000, scoped, tag = 'input window, operand 3, single buffered']
    #allocation3 [shape = 's32[1]{0}', space=sflag, size = 0x4, scoped, tag = 'scoped memory for bert_forward.1']
    #allocation4 [shape = 's32[1]{0}', space=sflag, size = 0x4, scoped, tag = 'scoped memory for bert_forward.1']
    #allocation5 [shape = 'u8[262144]{0}', space=vmem, size = 0x40000, scoped, tag = 'input window, operand 4, single buffered']
    #allocation6 [shape = 's32[1]{0}', space=sflag, size = 0x4, scoped, tag = 'scoped memory for bert_forward.1']
    #allocation7 [shape = 'u8[262144]{0}', space=vmem, size = 0x40000, scoped, tag = 'input window, operand 5, single buffered']
    #allocation8 [shape = 'u8[262144]{0}', space=vmem, size = 0x40000, scoped, tag = 'input window, operand 7, single buffered']
    #allocation9 [shape = 's32[1]{0}', space=sflag, size = 0x4, scoped, tag = 'scoped memory for bert_forward.1']
    #allocation10 [shape = 'u8[1024]{0}', space=vmem, size = 0x400, scoped, tag = 'output window, operand 0, single buffered']
    %15 = vsyncpa [#allocation3], 0
    %16 = vsyncpa [#allocation6], 0
    %17 = vsyncpa [#allocation9], 0
    %18 = vsyncpa [#allocation4], 0
    // Predicated region
    $region2: #{bert_forward.1} parent=1 // pred_check
      _
    $region3: #{bert_forward.1} parent=1 // pred_check_branch
      %20 = sbr.rel (0) target = $region5
    $region4: #{bert_forward.1} parent=1 // pred_region
      _
    $region5: #{bert_forward.1} parent=1 // pred_fallthru
      _
    // Predicated region
    $region6: #{bert_forward.1} parent=1 // pred_check
      _
    $region7: #{bert_forward.1} parent=1 // pred_check_branch
      %22 = sbr.rel (0) target = $region9
    $region8: #{bert_forward.1} parent=1 // pred_region
      _
    $region9: #{bert_forward.1} parent=1 // pred_fallthru
      _
    // Predicated region
    $region10: #{bert_forward.1} parent=1 // pred_check
      _
    $region11: #{bert_forward.1} parent=1 // pred_check_branch
      %24 = sbr.rel (0) target = $region13
    $region12: #{bert_forward.1} parent=1 // pred_region
      _
    $region13: #{bert_forward.1} parent=1 // pred_fallthru
      _
    // Predicated region
    $region14: #{bert_forward.1} parent=1 // pred_check
      _
    $region15: #{bert_forward.1} parent=1 // pred_check_branch
      %26 = sbr.rel (0) target = $region17
    $region16: #{bert_forward.1} parent=1 // pred_region
      %s28 = ssub.s32 24576, 24576
      %29 = vsyncadd [#allocation3], %s28
      %s30 = sshll.u32 [#allocation2], 4
      %s31 = int_to_ptr.vmem [resolvable:$true] %s30
      %36 = dma.hbm_to_vmem [thread:$0]  %s3, 24576, %s31, [#allocation3], 768, 768, 48
    $region17: #{bert_forward.1} parent=1 // pred_fallthru
      _
    // Predicated region
    $region18: #{bert_forward.1} parent=1 // pred_check
      _
    $region19: #{bert_forward.1} parent=1 // pred_check_branch
      %38 = sbr.rel (0) target = $region21
    $region20: #{bert_forward.1} parent=1 // pred_region
      %s40 = ssub.s32 8192, 8192
      %41 = vsyncadd [#allocation6], %s40
      %s42 = sshll.u32 [#allocation5], 4
      %s43 = int_to_ptr.vmem [resolvable:$true] %s42
      %48 = dma.hbm_to_vmem [thread:$0]  %s4, 8192, %s43, [#allocation6], 128, 128, 8
    $region21: #{bert_forward.1} parent=1 // pred_fallthru
      _
    // Predicated region
    $region22: #{bert_forward.1} parent=1 // pred_check
      _
    $region23: #{bert_forward.1} parent=1 // pred_check_branch
      %50 = sbr.rel (0) target = $region25
    $region24: #{bert_forward.1} parent=1 // pred_region
      %s52 = ssub.s32 8192, 8192
      %53 = vsyncadd [#allocation6], %s52
      %s54 = sshll.u32 [#allocation7], 4
      %s55 = int_to_ptr.vmem [resolvable:$true] %s54
      %60 = dma.hbm_to_vmem [thread:$0]  %s5, 8192, %s55, [#allocation6], 256, 256, 16
    $region25: #{bert_forward.1} parent=1 // pred_fallthru
      _
    // Predicated region
    $region26: #{bert_forward.1} parent=1 // pred_check
      _
    $region27: #{bert_forward.1} parent=1 // pred_check_branch
      %62 = sbr.rel (0) target = $region29
    $region28: #{bert_forward.1} parent=1 // pred_region
      _
    $region29: #{bert_forward.1} parent=1 // pred_fallthru
      _
    // Predicated region
    $region30: #{bert_forward.1} parent=1 // pred_check
      _
    $region31: #{bert_forward.1} parent=1 // pred_check_branch
      %64 = sbr.rel (0) target = $region33
    $region32: #{bert_forward.1} parent=1 // pred_region
      %s66 = ssub.s32 8192, 8192
      %67 = vsyncadd [#allocation9], %s66
      %s68 = sshll.u32 [#allocation8], 4
      %s69 = int_to_ptr.vmem [resolvable:$true] %s68
      %74 = dma.hbm_to_vmem [thread:$0]  %s7, 8192, %s69, [#allocation9], 128, 128, 8
    $region33: #{bert_forward.1} parent=1 // pred_fallthru
      _
    // Predicated region
    $region34: #{bert_forward.1} parent=1 // pred_check
      _
    $region35: #{bert_forward.1} parent=1 // pred_check_branch
      %76 = sbr.rel (0) target = $region37
    $region36: #{bert_forward.1} parent=1 // pred_region
      _
    $region37: #{bert_forward.1} parent=1 // pred_fallthru
      _
    // Predicated region
    $region38: #{bert_forward.1} parent=1 // pred_check
      _
    $region39: #{bert_forward.1} parent=1 // pred_check_branch
      %78 = sbr.rel (0) target = $region41
    $region40: #{bert_forward.1} parent=1 // pred_region
      _
    $region41: #{bert_forward.1} parent=1 // pred_fallthru
      _
    // Predicated region
    $region42: #{bert_forward.1} parent=1 // pred_check
      _
    $region43: #{bert_forward.1} parent=1 // pred_check_branch
      %80 = sbr.rel (0) target = $region45
    $region44: #{bert_forward.1} parent=1 // pred_region
      %81 = dma.done [#allocation3], 24576
    $region45: #{bert_forward.1} parent=1 // pred_fallthru
      _
    // Predicated region
    $region46: #{bert_forward.1} parent=1 // pred_check
      _
    $region47: #{bert_forward.1} parent=1 // pred_check_branch
      %83 = sbr.rel (0) target = $region49
    $region48: #{bert_forward.1} parent=1 // pred_region
      %84 = dma.done [#allocation6], 8192
    $region49: #{bert_forward.1} parent=1 // pred_fallthru
      _
    // Predicated region
    $region50: #{bert_forward.1} parent=1 // pred_check
      _
    $region51: #{bert_forward.1} parent=1 // pred_check_branch
      %86 = sbr.rel (0) target = $region53
    $region52: #{bert_forward.1} parent=1 // pred_region
      %87 = dma.done [#allocation6], 8192
    $region53: #{bert_forward.1} parent=1 // pred_fallthru
      _
    // Predicated region
    $region54: #{bert_forward.1} parent=1 // pred_check
      _
    $region55: #{bert_forward.1} parent=1 // pred_check_branch
      %89 = sbr.rel (0) target = $region57
    $region56: #{bert_forward.1} parent=1 // pred_region
      %90 = dma.done [#allocation9], 8192
    $region57: #{bert_forward.1} parent=1 // pred_fallthru
      _
    %v91 = vld [vmem:[%s1] sm:$0xff]
    %v92 = vld [vmem:[%s1 + $0x8] sm:$0xff]
    %v93 = vld [vmem:[%s0] sm:$0xff]
    %v94 = vld [vmem:[%s0 + $0x8] sm:$0xff]
    %v95 = vld [vmem:[%s2] sm:$0x1]
    %v96 = vld [vmem:[%s2 + $0x1] sm:$0x1]
    %97 = vadd.xlane.f32.xlu0 %v93
    %v98 = vpop.xlane.xlu0 %97
    %99 = vadd.xlane.f32.xlu0 %v94
    %v100 = vpop.xlane.xlu0 %99
    %v101 = vrcp.pop 128.0
    %v102 = vmul.f32 %v98, %v101
    %v103 = vmul.f32 %v100, %v101
    %v104 = vmul.f32 %v93, %v93
    %v105 = vmul.f32 %v94, %v94
    %106 = vadd.xlane.f32.xlu0 %v104
    %v107 = vpop.xlane.xlu0 %106
    %108 = vadd.xlane.f32.xlu0 %v105
    %v109 = vpop.xlane.xlu0 %108
    %v110 = vmul.f32 %v107, %v101
    %v111 = vmul.f32 %v109, %v101
    %v112 = vmul.f32 %v102, %v102
    %v113 = vmul.f32 %v103, %v103
    %v114 = vsub.f32 %v110, %v112
    %v115 = vsub.f32 %v111, %v113
    %v116 = vmax.f32 %v114, 0.0
    %v117 = vmax.f32 %v115, 0.0
    %v118 = vsub.f32 %v93, %v102
    %v119 = vsub.f32 %v94, %v103
    %v120 = vadd.f32 %v116, 1e-12
    %v121 = vadd.f32 %v117, 1e-12
    %v122 = vrsqrt.pop %v120
    %v123 = vrsqrt.pop %v121
    %v124 = vmul.f32 %v118, %v122
    %v125 = vmul.f32 %v119, %v123
    %v126 = vlaneseq
    %v127 = vshrl.u32 %v126, 7
    %v128 = vsub.s32 0, %v127
    %v129 = vrot.slane %v95, %v128
    %v130 = vmul.f32 %v124, %v129
    %v131 = vmul.f32 %v125, %v129
    %v132 = vlaneseq
    %v133 = vshrl.u32 %v132, 7
    %v134 = vsub.s32 0, %v133
    %v135 = vrot.slane %v96, %v134
    %v136 = vadd.f32 %v130, %v135
    %v137 = vadd.f32 %v131, %v135
    %v138 = vld [vmem:[#allocation2] sm:$0xff]
    %v139 = vld [vmem:[#allocation2 + $0x8] sm:$0xff]
    %v140 = vld [vmem:[#allocation2 + $0x10] sm:$0xff]
    %v141 = vld [vmem:[#allocation2 + $0x18] sm:$0xff]
    %v142 = vld [vmem:[#allocation2 + $0x20] sm:$0xff]
    %v143 = vld [vmem:[#allocation2 + $0x28] sm:$0xff]
    %v144 = vld [vmem:[#allocation2 + $0x30] sm:$0xff]
    %v145 = vld [vmem:[#allocation2 + $0x38] sm:$0xff]
    %v146 = vld [vmem:[#allocation2 + $0x40] sm:$0xff]
    %v147 = vld [vmem:[#allocation2 + $0x48] sm:$0xff]
    %v148 = vld [vmem:[#allocation2 + $0x50] sm:$0xff]
    %v149 = vld [vmem:[#allocation2 + $0x58] sm:$0xff]
    %v150 = vld [vmem:[#allocation2 + $0x60] sm:$0xff]
    %v151 = vld [vmem:[#allocation2 + $0x68] sm:$0xff]
    %v152 = vld [vmem:[#allocation2 + $0x70] sm:$0xff]
    %v153 = vld [vmem:[#allocation2 + $0x78] sm:$0xff]
    %v154 = vld [vmem:[#allocation2 + $0x80] sm:$0xff]
    %v155 = vld [vmem:[#allocation2 + $0x88] sm:$0xff]
    %v156 = vld [vmem:[#allocation2 + $0x90] sm:$0xff]
    %v157 = vld [vmem:[#allocation2 + $0x98] sm:$0xff]
    %v158 = vld [vmem:[#allocation2 + $0xa0] sm:$0xff]
    %v159 = vld [vmem:[#allocation2 + $0xa8] sm:$0xff]
    %v160 = vld [vmem:[#allocation2 + $0xb0] sm:$0xff]
    %v161 = vld [vmem:[#allocation2 + $0xb8] sm:$0xff]
    %v162 = vld [vmem:[#allocation2 + $0xc0] sm:$0xff]
    %v163 = vld [vmem:[#allocation2 + $0xc8] sm:$0xff]
    %v164 = vld [vmem:[#allocation2 + $0xd0] sm:$0xff]
    %v165 = vld [vmem:[#allocation2 + $0xd8] sm:$0xff]
    %v166 = vld [vmem:[#allocation2 + $0xe0] sm:$0xff]
    %v167 = vld [vmem:[#allocation2 + $0xe8] sm:$0xff]
    %v168 = vld [vmem:[#allocation2 + $0xf0] sm:$0xff]
    %v169 = vld [vmem:[#allocation2 + $0xf8] sm:$0xff]
    %v170 = vld [vmem:[#allocation2 + $0x100] sm:$0xff]
    %v171 = vld [vmem:[#allocation2 + $0x108] sm:$0xff]
    %v172 = vld [vmem:[#allocation2 + $0x110] sm:$0xff]
    %v173 = vld [vmem:[#allocation2 + $0x118] sm:$0xff]
    %v174 = vld [vmem:[#allocation2 + $0x120] sm:$0xff]
    %v175 = vld [vmem:[#allocation2 + $0x128] sm:$0xff]
    %v176 = vld [vmem:[#allocation2 + $0x130] sm:$0xff]
    %v177 = vld [vmem:[#allocation2 + $0x138] sm:$0xff]
    %v178 = vld [vmem:[#allocation2 + $0x140] sm:$0xff]
    %v179 = vld [vmem:[#allocation2 + $0x148] sm:$0xff]
    %v180 = vld [vmem:[#allocation2 + $0x150] sm:$0xff]
    %v181 = vld [vmem:[#allocation2 + $0x158] sm:$0xff]
    %v182 = vld [vmem:[#allocation2 + $0x160] sm:$0xff]
    %v183 = vld [vmem:[#allocation2 + $0x168] sm:$0xff]
    %v184 = vld [vmem:[#allocation2 + $0x170] sm:$0xff]
    %v185 = vld [vmem:[#allocation2 + $0x178] sm:$0xff]
    %v186 = vld [vmem:[#allocation2 + $0x180] sm:$0xff]
    %v187 = vld [vmem:[#allocation2 + $0x188] sm:$0xff]
    %v188 = vld [vmem:[#allocation2 + $0x190] sm:$0xff]
    %v189 = vld [vmem:[#allocation2 + $0x198] sm:$0xff]
    %v190 = vld [vmem:[#allocation2 + $0x1a0] sm:$0xff]
    %v191 = vld [vmem:[#allocation2 + $0x1a8] sm:$0xff]
    %v192 = vld [vmem:[#allocation2 + $0x1b0] sm:$0xff]
    %v193 = vld [vmem:[#allocation2 + $0x1b8] sm:$0xff]
    %v194 = vld [vmem:[#allocation2 + $0x1c0] sm:$0xff]
    %v195 = vld [vmem:[#allocation2 + $0x1c8] sm:$0xff]
    %v196 = vld [vmem:[#allocation2 + $0x1d0] sm:$0xff]
    %v197 = vld [vmem:[#allocation2 + $0x1d8] sm:$0xff]
    %v198 = vld [vmem:[#allocation2 + $0x1e0] sm:$0xff]
    %v199 = vld [vmem:[#allocation2 + $0x1e8] sm:$0xff]
    %v200 = vld [vmem:[#allocation2 + $0x1f0] sm:$0xff]
    %v201 = vld [vmem:[#allocation2 + $0x1f8] sm:$0xff]
    %v202 = vld [vmem:[#allocation2 + $0x200] sm:$0xff]
    %v203 = vld [vmem:[#allocation2 + $0x208] sm:$0xff]
    %v204 = vld [vmem:[#allocation2 + $0x210] sm:$0xff]
    %v205 = vld [vmem:[#allocation2 + $0x218] sm:$0xff]
    %v206 = vld [vmem:[#allocation2 + $0x220] sm:$0xff]
    %v207 = vld [vmem:[#allocation2 + $0x228] sm:$0xff]
    %v208 = vld [vmem:[#allocation2 + $0x230] sm:$0xff]
    %v209 = vld [vmem:[#allocation2 + $0x238] sm:$0xff]
    %v210 = vld [vmem:[#allocation2 + $0x240] sm:$0xff]
    %v211 = vld [vmem:[#allocation2 + $0x248] sm:$0xff]
    %v212 = vld [vmem:[#allocation2 + $0x250] sm:$0xff]
    %v213 = vld [vmem:[#allocation2 + $0x258] sm:$0xff]
    %v214 = vld [vmem:[#allocation2 + $0x260] sm:$0xff]
    %v215 = vld [vmem:[#allocation2 + $0x268] sm:$0xff]
    %v216 = vld [vmem:[#allocation2 + $0x270] sm:$0xff]
    %v217 = vld [vmem:[#allocation2 + $0x278] sm:$0xff]
    %v218 = vld [vmem:[#allocation2 + $0x280] sm:$0xff]
    %v219 = vld [vmem:[#allocation2 + $0x288] sm:$0xff]
    %v220 = vld [vmem:[#allocation2 + $0x290] sm:$0xff]
    %v221 = vld [vmem:[#allocation2 + $0x298] sm:$0xff]
    %v222 = vld [vmem:[#allocation2 + $0x2a0] sm:$0xff]
    %v223 = vld [vmem:[#allocation2 + $0x2a8] sm:$0xff]
    %v224 = vld [vmem:[#allocation2 + $0x2b0] sm:$0xff]
    %v225 = vld [vmem:[#allocation2 + $0x2b8] sm:$0xff]
    %v226 = vld [vmem:[#allocation2 + $0x2c0] sm:$0xff]
    %v227 = vld [vmem:[#allocation2 + $0x2c8] sm:$0xff]
    %v228 = vld [vmem:[#allocation2 + $0x2d0] sm:$0xff]
    %v229 = vld [vmem:[#allocation2 + $0x2d8] sm:$0xff]
    %v230 = vld [vmem:[#allocation2 + $0x2e0] sm:$0xff]
    %v231 = vld [vmem:[#allocation2 + $0x2e8] sm:$0xff]
    %v232 = vld [vmem:[#allocation2 + $0x2f0] sm:$0xff]
    %v233 = vld [vmem:[#allocation2 + $0x2f8] sm:$0xff]
    %234 = vmatprep.subr.mxu0 %v139
    %235 = vmatpush1.msra.mxu0 %v138
    %236 = vmatprep.subr.mxu0 %v145
    %237 = vmatpush1.msra.mxu0 %v144
    %238 = vmatprep.subr.mxu0 %v151
    %239 = vmatpush1.msra.mxu0 %v150
    %240 = vmatprep.subr.mxu0 %v157
    %241 = vmatpush1.msra.mxu0 %v156
    %242 = vmatprep.subr.mxu0 %v163
    %243 = vmatpush1.msra.mxu0 %v162
    %244 = vmatprep.subr.mxu0 %v169
    %245 = vmatpush1.msra.mxu0 %v168
    %246 = vmatprep.subr.mxu0 %v175
    %247 = vmatpush1.msra.mxu0 %v174
    %248 = vmatprep.subr.mxu0 %v181
    %249 = vmatpush1.msra.mxu0 %v180
    %250 = vmatprep.subr.mxu0 %v187
    %251 = vmatpush1.msra.mxu0 %v186
    %252 = vmatprep.subr.mxu0 %v193
    %253 = vmatpush1.msra.mxu0 %v192
    %254 = vmatprep.subr.mxu0 %v199
    %255 = vmatpush1.msra.mxu0 %v198
    %256 = vmatprep.subr.mxu0 %v205
    %257 = vmatpush1.msra.mxu0 %v204
    %258 = vmatprep.subr.mxu0 %v211
    %259 = vmatpush1.msra.mxu0 %v210
    %260 = vmatprep.subr.mxu0 %v217
    %261 = vmatpush1.msra.mxu0 %v216
    %262 = vmatprep.subr.mxu0 %v223
    %263 = vmatpush1.msra.mxu0 %v222
    %264 = vmatprep.subr.mxu0 %v229
    %265 = vmatpush1.msra.mxu0 %v228
    %266 = vmatprep.subr.mxu0 0.0
    %267 = vmatpush1.msra.mxu0 0.0
    %268 = vmatprep.subr.mxu0 0.0
    %269 = vmatpush1.msra.mxu0 0.0
    %270 = vmatprep.subr.mxu0 0.0
    %271 = vmatpush1.msra.mxu0 0.0
    %272 = vmatprep.subr.mxu0 0.0
    %273 = vmatpush1.msra.mxu0 0.0
    %274 = vmatprep.subr.mxu0 0.0
    %275 = vmatpush1.msra.mxu0 0.0
    %276 = vmatprep.subr.mxu0 0.0
    %277 = vmatpush1.msra.mxu0 0.0
    %278 = vmatprep.subr.mxu0 0.0
    %279 = vmatpush1.msra.mxu0 0.0
    %280 = vmatprep.subr.mxu0 0.0
    %281 = vmatpush1.msra.mxu0 0.0
    %282 = vmatprep.subr.mxu0 0.0
    %283 = vmatpush1.msra.mxu0 0.0
    %284 = vmatprep.subr.mxu0 0.0
    %285 = vmatpush1.msra.mxu0 0.0
    %286 = vmatprep.subr.mxu0 0.0
    %287 = vmatpush1.msra.mxu0 0.0
    %288 = vmatprep.subr.mxu0 0.0
    %289 = vmatpush1.msra.mxu0 0.0
    %290 = vmatprep.subr.mxu0 0.0
    %291 = vmatpush1.msra.mxu0 0.0
    %292 = vmatprep.subr.mxu0 0.0
    %293 = vmatpush1.msra.mxu0 0.0
    %294 = vmatprep.subr.mxu0 0.0
    %295 = vmatpush1.msra.mxu0 0.0
    %296 = vmatprep.subr.mxu0 0.0
    %297 = vmatpush1.msra.mxu0 0.0
    %298 = vmatprep.mubr.f32.mxu0 0.0
    %299 = vmatmul.mubr.f32.gmra.mrb[0].mxu0 %v136
    %v300 = vpop.f32.mrb[0].mxu0
    %v301 = vadd.f32 0.0, %v300
    %v302 = vpop.f32.mrb[0].mxu0
    %v303 = vadd.f32 0.0, %v302
    %304 = vmatprep.mubr.f32.mxu0 0.0
    %305 = vmatmul.mubr.f32.gmra.mrb[0].mxu0 %v137
    %v306 = vpop.f32.mrb[0].mxu0
    %v307 = vadd.f32 0.0, %v306
    %v308 = vpop.f32.mrb[0].mxu0
    %v309 = vadd.f32 0.0, %v308
    %310 = vdwg.mxu0
    %311 = vmatprep.subr.mxu0 %v141
    %312 = vmatpush1.msra.mxu0 %v140
    %313 = vmatprep.subr.mxu0 %v147
    %314 = vmatpush1.msra.mxu0 %v146
    %315 = vmatprep.subr.mxu0 %v153
    %316 = vmatpush1.msra.mxu0 %v152
    %317 = vmatprep.subr.mxu0 %v159
    %318 = vmatpush1.msra.mxu0 %v158
    %319 = vmatprep.subr.mxu0 %v165
    %320 = vmatpush1.msra.mxu0 %v164
    %321 = vmatprep.subr.mxu0 %v171
    %322 = vmatpush1.msra.mxu0 %v170
    %323 = vmatprep.subr.mxu0 %v177
    %324 = vmatpush1.msra.mxu0 %v176
    %325 = vmatprep.subr.mxu0 %v183
    %326 = vmatpush1.msra.mxu0 %v182
    %327 = vmatprep.subr.mxu0 %v189
    %328 = vmatpush1.msra.mxu0 %v188
    %329 = vmatprep.subr.mxu0 %v195
    %330 = vmatpush1.msra.mxu0 %v194
    %331 = vmatprep.subr.mxu0 %v201
    %332 = vmatpush1.msra.mxu0 %v200
    %333 = vmatprep.subr.mxu0 %v207
    %334 = vmatpush1.msra.mxu0 %v206
    %335 = vmatprep.subr.mxu0 %v213
    %336 = vmatpush1.msra.mxu0 %v212
    %337 = vmatprep.subr.mxu0 %v219
    %338 = vmatpush1.msra.mxu0 %v218
    %339 = vmatprep.subr.mxu0 %v225
    %340 = vmatpush1.msra.mxu0 %v224
    %341 = vmatprep.subr.mxu0 %v231
    %342 = vmatpush1.msra.mxu0 %v230
    %343 = vmatprep.subr.mxu0 0.0
    %344 = vmatpush1.msra.mxu0 0.0
    %345 = vmatprep.subr.mxu0 0.0
    %346 = vmatpush1.msra.mxu0 0.0
    %347 = vmatprep.subr.mxu0 0.0
    %348 = vmatpush1.msra.mxu0 0.0
    %349 = vmatprep.subr.mxu0 0.0
    %350 = vmatpush1.msra.mxu0 0.0
    %351 = vmatprep.subr.mxu0 0.0
    %352 = vmatpush1.msra.mxu0 0.0
    %353 = vmatprep.subr.mxu0 0.0
    %354 = vmatpush1.msra.mxu0 0.0
    %355 = vmatprep.subr.mxu0 0.0
    %356 = vmatpush1.msra.mxu0 0.0
    %357 = vmatprep.subr.mxu0 0.0
    %358 = vmatpush1.msra.mxu0 0.0
    %359 = vmatprep.subr.mxu0 0.0
    %360 = vmatpush1.msra.mxu0 0.0
    %361 = vmatprep.subr.mxu0 0.0
    %362 = vmatpush1.msra.mxu0 0.0
    %363 = vmatprep.subr.mxu0 0.0
    %364 = vmatpush1.msra.mxu0 0.0
    %365 = vmatprep.subr.mxu0 0.0
    %366 = vmatpush1.msra.mxu0 0.0
    %367 = vmatprep.subr.mxu0 0.0
    %368 = vmatpush1.msra.mxu0 0.0
    %369 = vmatprep.subr.mxu0 0.0
    %370 = vmatpush1.msra.mxu0 0.0
    %371 = vmatprep.subr.mxu0 0.0
    %372 = vmatpush1.msra.mxu0 0.0
    %373 = vmatprep.subr.mxu0 0.0
    %374 = vmatpush1.msra.mxu0 0.0
    %375 = vmatprep.mubr.f32.mxu0 0.0
    %376 = vmatmul.mubr.f32.gmra.mrb[0].mxu0 %v136
    %v377 = vpop.f32.mrb[0].mxu0
    %v378 = vadd.f32 0.0, %v377
    %v379 = vpop.f32.mrb[0].mxu0
    %v380 = vadd.f32 0.0, %v379
    %381 = vmatprep.mubr.f32.mxu0 0.0
    %382 = vmatmul.mubr.f32.gmra.mrb[0].mxu0 %v137
    %v383 = vpop.f32.mrb[0].mxu0
    %v384 = vadd.f32 0.0, %v383
    %v385 = vpop.f32.mrb[0].mxu0
    %v386 = vadd.f32 0.0, %v385
    %387 = vdwg.mxu0
    %388 = vmatprep.subr.mxu0 %v143
    %389 = vmatpush1.msra.mxu0 %v142
    %390 = vmatprep.subr.mxu0 %v149
    %391 = vmatpush1.msra.mxu0 %v148
    %392 = vmatprep.subr.mxu0 %v155
    %393 = vmatpush1.msra.mxu0 %v154
    %394 = vmatprep.subr.mxu0 %v161
    %395 = vmatpush1.msra.mxu0 %v160
    %396 = vmatprep.subr.mxu0 %v167
    %397 = vmatpush1.msra.mxu0 %v166
    %398 = vmatprep.subr.mxu0 %v173
    %399 = vmatpush1.msra.mxu0 %v172
    %400 = vmatprep.subr.mxu0 %v179
    %401 = vmatpush1.msra.mxu0 %v178
    %402 = vmatprep.subr.mxu0 %v185
    %403 = vmatpush1.msra.mxu0 %v184
    %404 = vmatprep.subr.mxu0 %v191
    %405 = vmatpush1.msra.mxu0 %v190
    %406 = vmatprep.subr.mxu0 %v197
    %407 = vmatpush1.msra.mxu0 %v196
    %408 = vmatprep.subr.mxu0 %v203
    %409 = vmatpush1.msra.mxu0 %v202
    %410 = vmatprep.subr.mxu0 %v209
    %411 = vmatpush1.msra.mxu0 %v208
    %412 = vmatprep.subr.mxu0 %v215
    %413 = vmatpush1.msra.mxu0 %v214
    %414 = vmatprep.subr.mxu0 %v221
    %415 = vmatpush1.msra.mxu0 %v220
    %416 = vmatprep.subr.mxu0 %v227
    %417 = vmatpush1.msra.mxu0 %v226
    %418 = vmatprep.subr.mxu0 %v233
    %419 = vmatpush1.msra.mxu0 %v232
    %420 = vmatprep.subr.mxu0 0.0
    %421 = vmatpush1.msra.mxu0 0.0
    %422 = vmatprep.subr.mxu0 0.0
    %423 = vmatpush1.msra.mxu0 0.0
    %424 = vmatprep.subr.mxu0 0.0
    %425 = vmatpush1.msra.mxu0 0.0
    %426 = vmatprep.subr.mxu0 0.0
    %427 = vmatpush1.msra.mxu0 0.0
    %428 = vmatprep.subr.mxu0 0.0
    %429 = vmatpush1.msra.mxu0 0.0
    %430 = vmatprep.subr.mxu0 0.0
    %431 = vmatpush1.msra.mxu0 0.0
    %432 = vmatprep.subr.mxu0 0.0
    %433 = vmatpush1.msra.mxu0 0.0
    %434 = vmatprep.subr.mxu0 0.0
    %435 = vmatpush1.msra.mxu0 0.0
    %436 = vmatprep.subr.mxu0 0.0
    %437 = vmatpush1.msra.mxu0 0.0
    %438 = vmatprep.subr.mxu0 0.0
    %439 = vmatpush1.msra.mxu0 0.0
    %440 = vmatprep.subr.mxu0 0.0
    %441 = vmatpush1.msra.mxu0 0.0
    %442 = vmatprep.subr.mxu0 0.0
    %443 = vmatpush1.msra.mxu0 0.0
    %444 = vmatprep.subr.mxu0 0.0
    %445 = vmatpush1.msra.mxu0 0.0
    %446 = vmatprep.subr.mxu0 0.0
    %447 = vmatpush1.msra.mxu0 0.0
    %448 = vmatprep.subr.mxu0 0.0
    %449 = vmatpush1.msra.mxu0 0.0
    %450 = vmatprep.subr.mxu0 0.0
    %451 = vmatpush1.msra.mxu0 0.0
    %452 = vmatprep.mubr.f32.mxu0 0.0
    %453 = vmatmul.mubr.f32.gmra.mrb[0].mxu0 %v136
    %v454 = vpop.f32.mrb[0].mxu0
    %v455 = vadd.f32 0.0, %v454
    %v456 = vpop.f32.mrb[0].mxu0
    %v457 = vadd.f32 0.0, %v456
    %458 = vmatprep.mubr.f32.mxu0 0.0
    %459 = vmatmul.mubr.f32.gmra.mrb[0].mxu0 %v137
    %v460 = vpop.f32.mrb[0].mxu0
    %v461 = vadd.f32 0.0, %v460
    %v462 = vpop.f32.mrb[0].mxu0
    %v463 = vadd.f32 0.0, %v462
    %464 = vdwg.mxu0
    %v465 = vld [vmem:[%s2 + $0x8] sm:$0x1]
    %v466 = vld [vmem:[%s2 + $0x2] sm:$0x1]
    %v467 = vlaneseq
    %v468 = vshrl.u32 %v467, 7
    %v469 = vsub.s32 0, %v468
    %v470 = vrot.slane %v466, %v469
    %v471 = vadd.f32 %v301, %v470
    %v472 = vadd.f32 %v307, %v470
    %v473 = vld [vmem:[%s2 + $0x4] sm:$0x1]
    %v474 = vlaneseq
    %v475 = vshrl.u32 %v474, 7
    %v476 = vsub.s32 0, %v475
    %v477 = vrot.slane %v473, %v476
    %v478 = vadd.f32 %v378, %v477
    %v479 = vadd.f32 %v384, %v477
    %v480 = vld [vmem:[%s2 + $0x6] sm:$0x1]
    %v481 = vlaneseq
    %v482 = vshrl.u32 %v481, 7
    %v483 = vsub.s32 0, %v482
    %v484 = vrot.slane %v480, %v483
    %v485 = vadd.f32 %v455, %v484
    %v486 = vadd.f32 %v461, %v484
    %487 = vmatprep.subr.mxu0 0.0
    %488 = vmatpush1.xpose.msra.mxu0 %v478
    %489 = vmatprep.subr.mxu0 0.0
    %490 = vmatpush1.xpose.msra.mxu0 %v479
    %491 = vmatprep.subr.mxu0 0.0
    %492 = vmatpush1.xpose.msra.mxu0 0.0
    %493 = vmatprep.subr.mxu0 0.0
    %494 = vmatpush1.xpose.msra.mxu0 0.0
    %495 = vmatprep.subr.mxu0 0.0
    %496 = vmatpush1.xpose.msra.mxu0 0.0
    %497 = vmatprep.subr.mxu0 0.0
    %498 = vmatpush1.xpose.msra.mxu0 0.0
    %499 = vmatprep.subr.mxu0 0.0
    %500 = vmatpush1.xpose.msra.mxu0 0.0
    %501 = vmatprep.subr.mxu0 0.0
    %502 = vmatpush1.xpose.msra.mxu0 0.0
    %503 = vmatprep.subr.mxu0 0.0
    %504 = vmatpush1.xpose.msra.mxu0 0.0
    %505 = vmatprep.subr.mxu0 0.0
    %506 = vmatpush1.xpose.msra.mxu0 0.0
    %507 = vmatprep.subr.mxu0 0.0
    %508 = vmatpush1.xpose.msra.mxu0 0.0
    %509 = vmatprep.subr.mxu0 0.0
    %510 = vmatpush1.xpose.msra.mxu0 0.0
    %511 = vmatprep.subr.mxu0 0.0
    %512 = vmatpush1.xpose.msra.mxu0 0.0
    %513 = vmatprep.subr.mxu0 0.0
    %514 = vmatpush1.xpose.msra.mxu0 0.0
    %515 = vmatprep.subr.mxu0 0.0
    %516 = vmatpush1.xpose.msra.mxu0 0.0
    %517 = vmatprep.subr.mxu0 0.0
    %518 = vmatpush1.xpose.msra.mxu0 0.0
    %519 = vmatprep.subr.mxu0 0.0
    %520 = vmatpush1.xpose.msra.mxu0 0.0
    %521 = vmatprep.subr.mxu0 0.0
    %522 = vmatpush1.xpose.msra.mxu0 0.0
    %523 = vmatprep.subr.mxu0 0.0
    %524 = vmatpush1.xpose.msra.mxu0 0.0
    %525 = vmatprep.subr.mxu0 0.0
    %526 = vmatpush1.xpose.msra.mxu0 0.0
    %527 = vmatprep.subr.mxu0 0.0
    %528 = vmatpush1.xpose.msra.mxu0 0.0
    %529 = vmatprep.subr.mxu0 0.0
    %530 = vmatpush1.xpose.msra.mxu0 0.0
    %531 = vmatprep.subr.mxu0 0.0
    %532 = vmatpush1.xpose.msra.mxu0 0.0
    %533 = vmatprep.subr.mxu0 0.0
    %534 = vmatpush1.xpose.msra.mxu0 0.0
    %535 = vmatprep.subr.mxu0 0.0
    %536 = vmatpush1.xpose.msra.mxu0 0.0
    %537 = vmatprep.subr.mxu0 0.0
    %538 = vmatpush1.xpose.msra.mxu0 0.0
    %539 = vmatprep.subr.mxu0 0.0
    %540 = vmatpush1.xpose.msra.mxu0 0.0
    %541 = vmatprep.subr.mxu0 0.0
    %542 = vmatpush1.xpose.msra.mxu0 0.0
    %543 = vmatprep.subr.mxu0 0.0
    %544 = vmatpush1.xpose.msra.mxu0 0.0
    %545 = vmatprep.subr.mxu0 0.0
    %546 = vmatpush1.xpose.msra.mxu0 0.0
    %547 = vmatprep.subr.mxu0 0.0
    %548 = vmatpush1.xpose.msra.mxu0 0.0
    %549 = vmatprep.subr.mxu0 0.0
    %550 = vmatpush1.xpose.msra.mxu0 0.0
    %551 = vmatprep.mubr.f32.mxu0 0.0
    %552 = vmatmul.mubr.f32.gmra.mrb[0].mxu0 %v471
    %v553 = vpop.f32.mrb[0].mxu0
    %v554 = vadd.f32 %v91, %v553
    %v555 = vpop.f32.mrb[0].mxu0
    %556 = vmatprep.mubr.f32.mxu0 0.0
    %557 = vmatmul.mubr.f32.gmra.mrb[0].mxu0 %v472
    %v558 = vpop.f32.mrb[0].mxu0
    %v559 = vadd.f32 %v92, %v558
    %v560 = vpop.f32.mrb[0].mxu0
    %561 = vdwg.mxu0
    %vm562 = vcmask 130048
    %v563 = vsel %vm562, %v554, -inf
    %564 = vmax.xlane.f32.xlu0 %v563
    %v565 = vpop.xlane.xlu0 %564
    %v566 = vsel %vm562, %v559, -inf
    %567 = vmax.xlane.f32.xlu0 %v566
    %v568 = vpop.xlane.xlu0 %567
    %v569 = vsub.f32 %v554, %v565
    %v570 = vsub.f32 %v559, %v568
    %v571 = vmul.f32 %v569, 1.442695
    %v572 = vpow.pop %v571
    %v573 = vmul.f32 %v570, 1.442695
    %v574 = vpow.pop %v573
    %v575 = vsel %vm562, %v572, 0.0
    %576 = vadd.xlane.f32.xlu0 %v575
    %v577 = vpop.xlane.xlu0 %576
    %v578 = vsel %vm562, %v574, 0.0
    %579 = vadd.xlane.f32.xlu0 %v578
    %v580 = vpop.xlane.xlu0 %579
    %v581 = vrcp.pop %v577
    %v582 = vmul.f32 %v572, %v581
    %v583 = vrcp.pop %v580
    %v584 = vmul.f32 %v574, %v583
    %v586 = vsel %vm562, %v582, 0
    %v589 = vsel %vm562, %v584, 0
    %591 = vmatprep.subr.mxu0 0.0
    %592 = vmatpush1.msra.mxu0 %v485
    %593 = vmatprep.subr.mxu0 0.0
    %594 = vmatpush1.msra.mxu0 %v486
    %595 = vmatprep.subr.mxu0 0.0
    %596 = vmatpush1.msra.mxu0 0.0
    %597 = vmatprep.subr.mxu0 0.0
    %598 = vmatpush1.msra.mxu0 0.0
    %599 = vmatprep.subr.mxu0 0.0
    %600 = vmatpush1.msra.mxu0 0.0
    %601 = vmatprep.subr.mxu0 0.0
    %602 = vmatpush1.msra.mxu0 0.0
    %603 = vmatprep.subr.mxu0 0.0
    %604 = vmatpush1.msra.mxu0 0.0
    %605 = vmatprep.subr.mxu0 0.0
    %606 = vmatpush1.msra.mxu0 0.0
    %607 = vmatprep.subr.mxu0 0.0
    %608 = vmatpush1.msra.mxu0 0.0
    %609 = vmatprep.subr.mxu0 0.0
    %610 = vmatpush1.msra.mxu0 0.0
    %611 = vmatprep.subr.mxu0 0.0
    %612 = vmatpush1.msra.mxu0 0.0
    %613 = vmatprep.subr.mxu0 0.0
    %614 = vmatpush1.msra.mxu0 0.0
    %615 = vmatprep.subr.mxu0 0.0
    %616 = vmatpush1.msra.mxu0 0.0
    %617 = vmatprep.subr.mxu0 0.0
    %618 = vmatpush1.msra.mxu0 0.0
    %619 = vmatprep.subr.mxu0 0.0
    %620 = vmatpush1.msra.mxu0 0.0
    %621 = vmatprep.subr.mxu0 0.0
    %622 = vmatpush1.msra.mxu0 0.0
    %623 = vmatprep.subr.mxu0 0.0
    %624 = vmatpush1.msra.mxu0 0.0
    %625 = vmatprep.subr.mxu0 0.0
    %626 = vmatpush1.msra.mxu0 0.0
    %627 = vmatprep.subr.mxu0 0.0
    %628 = vmatpush1.msra.mxu0 0.0
    %629 = vmatprep.subr.mxu0 0.0
    %630 = vmatpush1.msra.mxu0 0.0
    %631 = vmatprep.subr.mxu0 0.0
    %632 = vmatpush1.msra.mxu0 0.0
    %633 = vmatprep.subr.mxu0 0.0
    %634 = vmatpush1.msra.mxu0 0.0
    %635 = vmatprep.subr.mxu0 0.0
    %636 = vmatpush1.msra.mxu0 0.0
    %637 = vmatprep.subr.mxu0 0.0
    %638 = vmatpush1.msra.mxu0 0.0
    %639 = vmatprep.subr.mxu0 0.0
    %640 = vmatpush1.msra.mxu0 0.0
    %641 = vmatprep.subr.mxu0 0.0
    %642 = vmatpush1.msra.mxu0 0.0
    %643 = vmatprep.subr.mxu0 0.0
    %644 = vmatpush1.msra.mxu0 0.0
    %645 = vmatprep.subr.mxu0 0.0
    %646 = vmatpush1.msra.mxu0 0.0
    %647 = vmatprep.subr.mxu0 0.0
    %648 = vmatpush1.msra.mxu0 0.0
    %649 = vmatprep.subr.mxu0 0.0
    %650 = vmatpush1.msra.mxu0 0.0
    %651 = vmatprep.subr.mxu0 0.0
    %652 = vmatpush1.msra.mxu0 0.0
    %653 = vmatprep.subr.mxu0 0.0
    %654 = vmatpush1.msra.mxu0 0.0
    %655 = vmatprep.mubr.f32.mxu0 0.0
    %656 = vmatmul.mubr.f32.gmra.mrb[0].mxu0 %v586
    %v657 = vpop.f32.mrb[0].mxu0
    %v658 = vadd.f32 0.0, %v657
    %v659 = vpop.f32.mrb[0].mxu0
    %660 = vmatprep.mubr.f32.mxu0 0.0
    %661 = vmatmul.mubr.f32.gmra.mrb[0].mxu0 %v589
    %v662 = vpop.f32.mrb[0].mxu0
    %v663 = vadd.f32 0.0, %v662
    %v664 = vpop.f32.mrb[0].mxu0
    %665 = vdwg.mxu0
    %v666 = vld [vmem:[#allocation5] sm:$0xff]
    %v667 = vld [vmem:[#allocation5 + $0x8] sm:$0xff]
    %v668 = vld [vmem:[#allocation5 + $0x10] sm:$0xff]
    %v669 = vld [vmem:[#allocation5 + $0x18] sm:$0xff]
    %v670 = vld [vmem:[#allocation5 + $0x20] sm:$0xff]
    %v671 = vld [vmem:[#allocation5 + $0x28] sm:$0xff]
    %v672 = vld [vmem:[#allocation5 + $0x30] sm:$0xff]
    %v673 = vld [vmem:[#allocation5 + $0x38] sm:$0xff]
    %v674 = vld [vmem:[#allocation5 + $0x40] sm:$0xff]
    %v675 = vld [vmem:[#allocation5 + $0x48] sm:$0xff]
    %v676 = vld [vmem:[#allocation5 + $0x50] sm:$0xff]
    %v677 = vld [vmem:[#allocation5 + $0x58] sm:$0xff]
    %v678 = vld [vmem:[#allocation5 + $0x60] sm:$0xff]
    %v679 = vld [vmem:[#allocation5 + $0x68] sm:$0xff]
    %v680 = vld [vmem:[#allocation5 + $0x70] sm:$0xff]
    %v681 = vld [vmem:[#allocation5 + $0x78] sm:$0xff]
    %682 = vmatprep.subr.mxu0 0.0
    %683 = vmatpush1.msra.mxu0 %v666
    %684 = vmatprep.subr.mxu0 0.0
    %685 = vmatpush1.msra.mxu0 %v667
    %686 = vmatprep.subr.mxu0 0.0
    %687 = vmatpush1.msra.mxu0 %v668
    %688 = vmatprep.subr.mxu0 0.0
    %689 = vmatpush1.msra.mxu0 %v669
    %690 = vmatprep.subr.mxu0 0.0
    %691 = vmatpush1.msra.mxu0 %v670
    %692 = vmatprep.subr.mxu0 0.0
    %693 = vmatpush1.msra.mxu0 %v671
    %694 = vmatprep.subr.mxu0 0.0
    %695 = vmatpush1.msra.mxu0 %v672
    %696 = vmatprep.subr.mxu0 0.0
    %697 = vmatpush1.msra.mxu0 %v673
    %698 = vmatprep.subr.mxu0 0.0
    %699 = vmatpush1.msra.mxu0 %v674
    %700 = vmatprep.subr.mxu0 0.0
    %701 = vmatpush1.msra.mxu0 %v675
    %702 = vmatprep.subr.mxu0 0.0
    %703 = vmatpush1.msra.mxu0 %v676
    %704 = vmatprep.subr.mxu0 0.0
    %705 = vmatpush1.msra.mxu0 %v677
    %706 = vmatprep.subr.mxu0 0.0
    %707 = vmatpush1.msra.mxu0 %v678
    %708 = vmatprep.subr.mxu0 0.0
    %709 = vmatpush1.msra.mxu0 %v679
    %710 = vmatprep.subr.mxu0 0.0
    %711 = vmatpush1.msra.mxu0 %v680
    %712 = vmatprep.subr.mxu0 0.0
    %713 = vmatpush1.msra.mxu0 %v681
    %714 = vmatprep.subr.mxu0 0.0
    %715 = vmatpush1.msra.mxu0 0.0
    %716 = vmatprep.subr.mxu0 0.0
    %717 = vmatpush1.msra.mxu0 0.0
    %718 = vmatprep.subr.mxu0 0.0
    %719 = vmatpush1.msra.mxu0 0.0
    %720 = vmatprep.subr.mxu0 0.0
    %721 = vmatpush1.msra.mxu0 0.0
    %722 = vmatprep.subr.mxu0 0.0
    %723 = vmatpush1.msra.mxu0 0.0
    %724 = vmatprep.subr.mxu0 0.0
    %725 = vmatpush1.msra.mxu0 0.0
    %726 = vmatprep.subr.mxu0 0.0
    %727 = vmatpush1.msra.mxu0 0.0
    %728 = vmatprep.subr.mxu0 0.0
    %729 = vmatpush1.msra.mxu0 0.0
    %730 = vmatprep.subr.mxu0 0.0
    %731 = vmatpush1.msra.mxu0 0.0
    %732 = vmatprep.subr.mxu0 0.0
    %733 = vmatpush1.msra.mxu0 0.0
    %734 = vmatprep.subr.mxu0 0.0
    %735 = vmatpush1.msra.mxu0 0.0
    %736 = vmatprep.subr.mxu0 0.0
    %737 = vmatpush1.msra.mxu0 0.0
    %738 = vmatprep.subr.mxu0 0.0
    %739 = vmatpush1.msra.mxu0 0.0
    %740 = vmatprep.subr.mxu0 0.0
    %741 = vmatpush1.msra.mxu0 0.0
    %742 = vmatprep.subr.mxu0 0.0
    %743 = vmatpush1.msra.mxu0 0.0
    %744 = vmatprep.subr.mxu0 0.0
    %745 = vmatpush1.msra.mxu0 0.0
    %746 = vmatprep.mubr.f32.mxu0 0.0
    %747 = vmatmul.mubr.f32.gmra.mrb[0].mxu0 %v658
    %v748 = vpop.f32.mrb[0].mxu0
    %v749 = vadd.f32 0.0, %v748
    %v750 = vpop.f32.mrb[0].mxu0
    %751 = vmatprep.mubr.f32.mxu0 0.0
    %752 = vmatmul.mubr.f32.gmra.mrb[0].mxu0 %v663
    %v753 = vpop.f32.mrb[0].mxu0
    %v754 = vadd.f32 0.0, %v753
    %v755 = vpop.f32.mrb[0].mxu0
    %756 = vdwg.mxu0
    %v757 = vlaneseq
    %v758 = vshrl.u32 %v757, 7
    %v759 = vsub.s32 0, %v758
    %v760 = vrot.slane %v465, %v759
    %v761 = vadd.f32 %v760, %v749
    %v762 = vadd.f32 %v760, %v754
    %v763 = vld [vmem:[%s2 + $0x3] sm:$0x1]
    %v764 = vlaneseq
    %v765 = vshrl.u32 %v764, 7
    %v766 = vsub.s32 0, %v765
    %v767 = vrot.slane %v763, %v766
    %v768 = vadd.f32 %v303, %v767
    %v769 = vadd.f32 %v309, %v767
    %v770 = vld [vmem:[%s2 + $0x5] sm:$0x1]
    %v771 = vlaneseq
    %v772 = vshrl.u32 %v771, 7
    %v773 = vsub.s32 0, %v772
    %v774 = vrot.slane %v770, %v773
    %v775 = vadd.f32 %v380, %v774
    %v776 = vadd.f32 %v386, %v774
    %v777 = vld [vmem:[%s2 + $0x7] sm:$0x1]
    %v778 = vlaneseq
    %v779 = vshrl.u32 %v778, 7
    %v780 = vsub.s32 0, %v779
    %v781 = vrot.slane %v777, %v780
    %v782 = vadd.f32 %v457, %v781
    %v783 = vadd.f32 %v463, %v781
    %784 = vmatprep.subr.mxu0 0.0
    %785 = vmatpush1.xpose.msra.mxu0 %v775
    %786 = vmatprep.subr.mxu0 0.0
    %787 = vmatpush1.xpose.msra.mxu0 %v776
    %788 = vmatprep.subr.mxu0 0.0
    %789 = vmatpush1.xpose.msra.mxu0 0.0
    %790 = vmatprep.subr.mxu0 0.0
    %791 = vmatpush1.xpose.msra.mxu0 0.0
    %792 = vmatprep.subr.mxu0 0.0
    %793 = vmatpush1.xpose.msra.mxu0 0.0
    %794 = vmatprep.subr.mxu0 0.0
    %795 = vmatpush1.xpose.msra.mxu0 0.0
    %796 = vmatprep.subr.mxu0 0.0
    %797 = vmatpush1.xpose.msra.mxu0 0.0
    %798 = vmatprep.subr.mxu0 0.0
    %799 = vmatpush1.xpose.msra.mxu0 0.0
    %800 = vmatprep.subr.mxu0 0.0
    %801 = vmatpush1.xpose.msra.mxu0 0.0
    %802 = vmatprep.subr.mxu0 0.0
    %803 = vmatpush1.xpose.msra.mxu0 0.0
    %804 = vmatprep.subr.mxu0 0.0
    %805 = vmatpush1.xpose.msra.mxu0 0.0
    %806 = vmatprep.subr.mxu0 0.0
    %807 = vmatpush1.xpose.msra.mxu0 0.0
    %808 = vmatprep.subr.mxu0 0.0
    %809 = vmatpush1.xpose.msra.mxu0 0.0
    %810 = vmatprep.subr.mxu0 0.0
    %811 = vmatpush1.xpose.msra.mxu0 0.0
    %812 = vmatprep.subr.mxu0 0.0
    %813 = vmatpush1.xpose.msra.mxu0 0.0
    %814 = vmatprep.subr.mxu0 0.0
    %815 = vmatpush1.xpose.msra.mxu0 0.0
    %816 = vmatprep.subr.mxu0 0.0
    %817 = vmatpush1.xpose.msra.mxu0 0.0
    %818 = vmatprep.subr.mxu0 0.0
    %819 = vmatpush1.xpose.msra.mxu0 0.0
    %820 = vmatprep.subr.mxu0 0.0
    %821 = vmatpush1.xpose.msra.mxu0 0.0
    %822 = vmatprep.subr.mxu0 0.0
    %823 = vmatpush1.xpose.msra.mxu0 0.0
    %824 = vmatprep.subr.mxu0 0.0
    %825 = vmatpush1.xpose.msra.mxu0 0.0
    %826 = vmatprep.subr.mxu0 0.0
    %827 = vmatpush1.xpose.msra.mxu0 0.0
    %828 = vmatprep.subr.mxu0 0.0
    %829 = vmatpush1.xpose.msra.mxu0 0.0
    %830 = vmatprep.subr.mxu0 0.0
    %831 = vmatpush1.xpose.msra.mxu0 0.0
    %832 = vmatprep.subr.mxu0 0.0
    %833 = vmatpush1.xpose.msra.mxu0 0.0
    %834 = vmatprep.subr.mxu0 0.0
    %835 = vmatpush1.xpose.msra.mxu0 0.0
    %836 = vmatprep.subr.mxu0 0.0
    %837 = vmatpush1.xpose.msra.mxu0 0.0
    %838 = vmatprep.subr.mxu0 0.0
    %839 = vmatpush1.xpose.msra.mxu0 0.0
    %840 = vmatprep.subr.mxu0 0.0
    %841 = vmatpush1.xpose.msra.mxu0 0.0
    %842 = vmatprep.subr.mxu0 0.0
    %843 = vmatpush1.xpose.msra.mxu0 0.0
    %844 = vmatprep.subr.mxu0 0.0
    %845 = vmatpush1.xpose.msra.mxu0 0.0
    %846 = vmatprep.subr.mxu0 0.0
    %847 = vmatpush1.xpose.msra.mxu0 0.0
    %848 = vmatprep.mubr.f32.mxu0 0.0
    %849 = vmatmul.mubr.f32.gmra.mrb[0].mxu0 %v768
    %v850 = vpop.f32.mrb[0].mxu0
    %v851 = vadd.f32 %v91, %v850
    %v852 = vpop.f32.mrb[0].mxu0
    %853 = vmatprep.mubr.f32.mxu0 0.0
    %854 = vmatmul.mubr.f32.gmra.mrb[0].mxu0 %v769
    %v855 = vpop.f32.mrb[0].mxu0
    %v856 = vadd.f32 %v92, %v855
    %v857 = vpop.f32.mrb[0].mxu0
    %858 = vdwg.mxu0
    %v859 = vsel %vm562, %v851, -inf
    %860 = vmax.xlane.f32.xlu0 %v859
    %v861 = vpop.xlane.xlu0 %860
    %v862 = vsel %vm562, %v856, -inf
    %863 = vmax.xlane.f32.xlu0 %v862
    %v864 = vpop.xlane.xlu0 %863
    %v865 = vsub.f32 %v851, %v861
    %v866 = vsub.f32 %v856, %v864
    %v867 = vmul.f32 %v865, 1.442695
    %v868 = vpow.pop %v867
    %v869 = vmul.f32 %v866, 1.442695
    %v870 = vpow.pop %v869
    %v871 = vsel %vm562, %v868, 0.0
    %872 = vadd.xlane.f32.xlu0 %v871
    %v873 = vpop.xlane.xlu0 %872
    %v874 = vsel %vm562, %v870, 0.0
    %875 = vadd.xlane.f32.xlu0 %v874
    %v876 = vpop.xlane.xlu0 %875
    %v877 = vrcp.pop %v873
    %v878 = vmul.f32 %v868, %v877
    %v879 = vrcp.pop %v876
    %v880 = vmul.f32 %v870, %v879
    %v882 = vsel %vm562, %v878, 0
    %v885 = vsel %vm562, %v880, 0
    %887 = vmatprep.subr.mxu0 0.0
    %888 = vmatpush1.msra.mxu0 %v782
    %889 = vmatprep.subr.mxu0 0.0
    %890 = vmatpush1.msra.mxu0 %v783
    %891 = vmatprep.subr.mxu0 0.0
    %892 = vmatpush1.msra.mxu0 0.0
    %893 = vmatprep.subr.mxu0 0.0
    %894 = vmatpush1.msra.mxu0 0.0
    %895 = vmatprep.subr.mxu0 0.0
    %896 = vmatpush1.msra.mxu0 0.0
    %897 = vmatprep.subr.mxu0 0.0
    %898 = vmatpush1.msra.mxu0 0.0
    %899 = vmatprep.subr.mxu0 0.0
    %900 = vmatpush1.msra.mxu0 0.0
    %901 = vmatprep.subr.mxu0 0.0
    %902 = vmatpush1.msra.mxu0 0.0
    %903 = vmatprep.subr.mxu0 0.0
    %904 = vmatpush1.msra.mxu0 0.0
    %905 = vmatprep.subr.mxu0 0.0
    %906 = vmatpush1.msra.mxu0 0.0
    %907 = vmatprep.subr.mxu0 0.0
    %908 = vmatpush1.msra.mxu0 0.0
    %909 = vmatprep.subr.mxu0 0.0
    %910 = vmatpush1.msra.mxu0 0.0
    %911 = vmatprep.subr.mxu0 0.0
    %912 = vmatpush1.msra.mxu0 0.0
    %913 = vmatprep.subr.mxu0 0.0
    %914 = vmatpush1.msra.mxu0 0.0
    %915 = vmatprep.subr.mxu0 0.0
    %916 = vmatpush1.msra.mxu0 0.0
    %917 = vmatprep.subr.mxu0 0.0
    %918 = vmatpush1.msra.mxu0 0.0
    %919 = vmatprep.subr.mxu0 0.0
    %920 = vmatpush1.msra.mxu0 0.0
    %921 = vmatprep.subr.mxu0 0.0
    %922 = vmatpush1.msra.mxu0 0.0
    %923 = vmatprep.subr.mxu0 0.0
    %924 = vmatpush1.msra.mxu0 0.0
    %925 = vmatprep.subr.mxu0 0.0
    %926 = vmatpush1.msra.mxu0 0.0
    %927 = vmatprep.subr.mxu0 0.0
    %928 = vmatpush1.msra.mxu0 0.0
    %929 = vmatprep.subr.mxu0 0.0
    %930 = vmatpush1.msra.mxu0 0.0
    %931 = vmatprep.subr.mxu0 0.0
    %932 = vmatpush1.msra.mxu0 0.0
    %933 = vmatprep.subr.mxu0 0.0
    %934 = vmatpush1.msra.mxu0 0.0
    %935 = vmatprep.subr.mxu0 0.0
    %936 = vmatpush1.msra.mxu0 0.0
    %937 = vmatprep.subr.mxu0 0.0
    %938 = vmatpush1.msra.mxu0 0.0
    %939 = vmatprep.subr.mxu0 0.0
    %940 = vmatpush1.msra.mxu0 0.0
    %941 = vmatprep.subr.mxu0 0.0
    %942 = vmatpush1.msra.mxu0 0.0
    %943 = vmatprep.subr.mxu0 0.0
    %944 = vmatpush1.msra.mxu0 0.0
    %945 = vmatprep.subr.mxu0 0.0
    %946 = vmatpush1.msra.mxu0 0.0
    %947 = vmatprep.subr.mxu0 0.0
    %948 = vmatpush1.msra.mxu0 0.0
    %949 = vmatprep.subr.mxu0 0.0
    %950 = vmatpush1.msra.mxu0 0.0
    %951 = vmatprep.mubr.f32.mxu0 0.0
    %952 = vmatmul.mubr.f32.gmra.mrb[0].mxu0 %v882
    %v953 = vpop.f32.mrb[0].mxu0
    %v954 = vadd.f32 0.0, %v953
    %v955 = vpop.f32.mrb[0].mxu0
    %956 = vmatprep.mubr.f32.mxu0 0.0
    %957 = vmatmul.mubr.f32.gmra.mrb[0].mxu0 %v885
    %v958 = vpop.f32.mrb[0].mxu0
    %v959 = vadd.f32 0.0, %v958
    %v960 = vpop.f32.mrb[0].mxu0
    %961 = vdwg.mxu0
    %s962 = scalar_lea.vmem [#allocation5], 128
    %v963 = vld [vmem:[%s962] sm:$0xff]
    %v964 = vld [vmem:[%s962 + $0x8] sm:$0xff]
    %v965 = vld [vmem:[%s962 + $0x10] sm:$0xff]
    %v966 = vld [vmem:[%s962 + $0x18] sm:$0xff]
    %v967 = vld [vmem:[%s962 + $0x20] sm:$0xff]
    %v968 = vld [vmem:[%s962 + $0x28] sm:$0xff]
    %v969 = vld [vmem:[%s962 + $0x30] sm:$0xff]
    %v970 = vld [vmem:[%s962 + $0x38] sm:$0xff]
    %v971 = vld [vmem:[%s962 + $0x40] sm:$0xff]
    %v972 = vld [vmem:[%s962 + $0x48] sm:$0xff]
    %v973 = vld [vmem:[%s962 + $0x50] sm:$0xff]
    %v974 = vld [vmem:[%s962 + $0x58] sm:$0xff]
    %v975 = vld [vmem:[%s962 + $0x60] sm:$0xff]
    %v976 = vld [vmem:[%s962 + $0x68] sm:$0xff]
    %v977 = vld [vmem:[%s962 + $0x70] sm:$0xff]
    %v978 = vld [vmem:[%s962 + $0x78] sm:$0xff]
    %979 = vmatprep.subr.mxu0 0.0
    %980 = vmatpush1.msra.mxu0 %v963
    %981 = vmatprep.subr.mxu0 0.0
    %982 = vmatpush1.msra.mxu0 %v964
    %983 = vmatprep.subr.mxu0 0.0
    %984 = vmatpush1.msra.mxu0 %v965
    %985 = vmatprep.subr.mxu0 0.0
    %986 = vmatpush1.msra.mxu0 %v966
    %987 = vmatprep.subr.mxu0 0.0
    %988 = vmatpush1.msra.mxu0 %v967
    %989 = vmatprep.subr.mxu0 0.0
    %990 = vmatpush1.msra.mxu0 %v968
    %991 = vmatprep.subr.mxu0 0.0
    %992 = vmatpush1.msra.mxu0 %v969
    %993 = vmatprep.subr.mxu0 0.0
    %994 = vmatpush1.msra.mxu0 %v970
    %995 = vmatprep.subr.mxu0 0.0
    %996 = vmatpush1.msra.mxu0 %v971
    %997 = vmatprep.subr.mxu0 0.0
    %998 = vmatpush1.msra.mxu0 %v972
    %999 = vmatprep.subr.mxu0 0.0
    %1000 = vmatpush1.msra.mxu0 %v973
    %1001 = vmatprep.subr.mxu0 0.0
    %1002 = vmatpush1.msra.mxu0 %v974
    %1003 = vmatprep.subr.mxu0 0.0
    %1004 = vmatpush1.msra.mxu0 %v975
    %1005 = vmatprep.subr.mxu0 0.0
    %1006 = vmatpush1.msra.mxu0 %v976
    %1007 = vmatprep.subr.mxu0 0.0
    %1008 = vmatpush1.msra.mxu0 %v977
    %1009 = vmatprep.subr.mxu0 0.0
    %1010 = vmatpush1.msra.mxu0 %v978
    %1011 = vmatprep.subr.mxu0 0.0
    %1012 = vmatpush1.msra.mxu0 0.0
    %1013 = vmatprep.subr.mxu0 0.0
    %1014 = vmatpush1.msra.mxu0 0.0
    %1015 = vmatprep.subr.mxu0 0.0
    %1016 = vmatpush1.msra.mxu0 0.0
    %1017 = vmatprep.subr.mxu0 0.0
    %1018 = vmatpush1.msra.mxu0 0.0
    %1019 = vmatprep.subr.mxu0 0.0
    %1020 = vmatpush1.msra.mxu0 0.0
    %1021 = vmatprep.subr.mxu0 0.0
    %1022 = vmatpush1.msra.mxu0 0.0
    %1023 = vmatprep.subr.mxu0 0.0
    %1024 = vmatpush1.msra.mxu0 0.0
    %1025 = vmatprep.subr.mxu0 0.0
    %1026 = vmatpush1.msra.mxu0 0.0
    %1027 = vmatprep.subr.mxu0 0.0
    %1028 = vmatpush1.msra.mxu0 0.0
    %1029 = vmatprep.subr.mxu0 0.0
    %1030 = vmatpush1.msra.mxu0 0.0
    %1031 = vmatprep.subr.mxu0 0.0
    %1032 = vmatpush1.msra.mxu0 0.0
    %1033 = vmatprep.subr.mxu0 0.0
    %1034 = vmatpush1.msra.mxu0 0.0
    %1035 = vmatprep.subr.mxu0 0.0
    %1036 = vmatpush1.msra.mxu0 0.0
    %1037 = vmatprep.subr.mxu0 0.0
    %1038 = vmatpush1.msra.mxu0 0.0
    %1039 = vmatprep.subr.mxu0 0.0
    %1040 = vmatpush1.msra.mxu0 0.0
    %1041 = vmatprep.subr.mxu0 0.0
    %1042 = vmatpush1.msra.mxu0 0.0
    %1043 = vmatprep.mubr.f32.mxu0 0.0
    %1044 = vmatmul.mubr.f32.gmra.mrb[0].mxu0 %v954
    %v1045 = vpop.f32.mrb[0].mxu0
    %v1046 = vadd.f32 0.0, %v1045
    %v1047 = vpop.f32.mrb[0].mxu0
    %1048 = vmatprep.mubr.f32.mxu0 0.0
    %1049 = vmatmul.mubr.f32.gmra.mrb[0].mxu0 %v959
    %v1050 = vpop.f32.mrb[0].mxu0
    %v1051 = vadd.f32 0.0, %v1050
    %v1052 = vpop.f32.mrb[0].mxu0
    %1053 = vdwg.mxu0
    %v1054 = vadd.f32 %v761, %v1046
    %v1055 = vadd.f32 %v762, %v1051
    %v1056 = vadd.f32 %v136, %v1054
    %v1057 = vadd.f32 %v137, %v1055
    %v1058 = vld [vmem:[%s2 + $0x9] sm:$0x1]
    %v1059 = vld [vmem:[%s2 + $0xa] sm:$0x1]
    %1060 = vadd.xlane.f32.xlu0 %v1056
    %v1061 = vpop.xlane.xlu0 %1060
    %1062 = vadd.xlane.f32.xlu0 %v1057
    %v1063 = vpop.xlane.xlu0 %1062
    %v1064 = vmul.f32 %v1061, %v101
    %v1065 = vmul.f32 %v1063, %v101
    %v1066 = vmul.f32 %v1056, %v1056
    %v1067 = vmul.f32 %v1057, %v1057
    %1068 = vadd.xlane.f32.xlu0 %v1066
    %v1069 = vpop.xlane.xlu0 %1068
    %1070 = vadd.xlane.f32.xlu0 %v1067
    %v1071 = vpop.xlane.xlu0 %1070
    %v1072 = vmul.f32 %v1069, %v101
    %v1073 = vmul.f32 %v1071, %v101
    %v1074 = vmul.f32 %v1064, %v1064
    %v1075 = vmul.f32 %v1065, %v1065
    %v1076 = vsub.f32 %v1072, %v1074
    %v1077 = vsub.f32 %v1073, %v1075
    %v1078 = vmax.f32 %v1076, 0.0
    %v1079 = vmax.f32 %v1077, 0.0
    %v1080 = vsub.f32 %v1056, %v1064
    %v1081 = vsub.f32 %v1057, %v1065
    %v1082 = vadd.f32 %v1078, 1e-12
    %v1083 = vadd.f32 %v1079, 1e-12
    %v1084 = vrsqrt.pop %v1082
    %v1085 = vrsqrt.pop %v1083
    %v1086 = vmul.f32 %v1080, %v1084
    %v1087 = vmul.f32 %v1081, %v1085
    %v1088 = vlaneseq
    %v1089 = vshrl.u32 %v1088, 7
    %v1090 = vsub.s32 0, %v1089
    %v1091 = vrot.slane %v1058, %v1090
    %v1092 = vmul.f32 %v1086, %v1091
    %v1093 = vmul.f32 %v1087, %v1091
    %v1094 = vlaneseq
    %v1095 = vshrl.u32 %v1094, 7
    %v1096 = vsub.s32 0, %v1095
    %v1097 = vrot.slane %v1059, %v1096
    %v1098 = vadd.f32 %v1092, %v1097
    %v1099 = vadd.f32 %v1093, %v1097
    %v1100 = vld [vmem:[#allocation7] sm:$0xff]
    %v1101 = vld [vmem:[#allocation7 + $0x8] sm:$0xff]
    %v1102 = vld [vmem:[#allocation7 + $0x10] sm:$0xff]
    %v1103 = vld [vmem:[#allocation7 + $0x18] sm:$0xff]
    %v1104 = vld [vmem:[#allocation7 + $0x20] sm:$0xff]
    %v1105 = vld [vmem:[#allocation7 + $0x28] sm:$0xff]
    %v1106 = vld [vmem:[#allocation7 + $0x30] sm:$0xff]
    %v1107 = vld [vmem:[#allocation7 + $0x38] sm:$0xff]
    %v1108 = vld [vmem:[#allocation7 + $0x40] sm:$0xff]
    %v1109 = vld [vmem:[#allocation7 + $0x48] sm:$0xff]
    %v1110 = vld [vmem:[#allocation7 + $0x50] sm:$0xff]
    %v1111 = vld [vmem:[#allocation7 + $0x58] sm:$0xff]
    %v1112 = vld [vmem:[#allocation7 + $0x60] sm:$0xff]
    %v1113 = vld [vmem:[#allocation7 + $0x68] sm:$0xff]
    %v1114 = vld [vmem:[#allocation7 + $0x70] sm:$0xff]
    %v1115 = vld [vmem:[#allocation7 + $0x78] sm:$0xff]
    %v1116 = vld [vmem:[#allocation7 + $0x80] sm:$0xff]
    %v1117 = vld [vmem:[#allocation7 + $0x88] sm:$0xff]
    %v1118 = vld [vmem:[#allocation7 + $0x90] sm:$0xff]
    %v1119 = vld [vmem:[#allocation7 + $0x98] sm:$0xff]
    %v1120 = vld [vmem:[#allocation7 + $0xa0] sm:$0xff]
    %v1121 = vld [vmem:[#allocation7 + $0xa8] sm:$0xff]
    %v1122 = vld [vmem:[#allocation7 + $0xb0] sm:$0xff]
    %v1123 = vld [vmem:[#allocation7 + $0xb8] sm:$0xff]
    %v1124 = vld [vmem:[#allocation7 + $0xc0] sm:$0xff]
    %v1125 = vld [vmem:[#allocation7 + $0xc8] sm:$0xff]
    %v1126 = vld [vmem:[#allocation7 + $0xd0] sm:$0xff]
    %v1127 = vld [vmem:[#allocation7 + $0xd8] sm:$0xff]
    %v1128 = vld [vmem:[#allocation7 + $0xe0] sm:$0xff]
    %v1129 = vld [vmem:[#allocation7 + $0xe8] sm:$0xff]
    %v1130 = vld [vmem:[#allocation7 + $0xf0] sm:$0xff]
    %v1131 = vld [vmem:[#allocation7 + $0xf8] sm:$0xff]
    %v1132 = vld [vmem:[%s6] sm:$0x3]
    %v1134 = vlaneseq
    %v1135 = vshrl.u32 %v1134, 7
    %v1136 = vsub.s32 0, %v1135
    %v1137 = vrot.slane %v1132, %v1136
    %v1138 = vlaneseq
    %v1139 = vshrl.u32 %v1138, 7
    %v1140 = vsub.s32 1, %v1139
    %v1141 = vrot.slane %v1132, %v1140
    %1144 = vmatprep.subr.mxu0 %v1101
    %1145 = vmatpush1.msra.mxu0 %v1100
    %1146 = vmatprep.subr.mxu0 %v1103
    %1147 = vmatpush1.msra.mxu0 %v1102
    %1148 = vmatprep.subr.mxu0 %v1105
    %1149 = vmatpush1.msra.mxu0 %v1104
    %1150 = vmatprep.subr.mxu0 %v1107
    %1151 = vmatpush1.msra.mxu0 %v1106
    %1152 = vmatprep.subr.mxu0 %v1109
    %1153 = vmatpush1.msra.mxu0 %v1108
    %1154 = vmatprep.subr.mxu0 %v1111
    %1155 = vmatpush1.msra.mxu0 %v1110
    %1156 = vmatprep.subr.mxu0 %v1113
    %1157 = vmatpush1.msra.mxu0 %v1112
    %1158 = vmatprep.subr.mxu0 %v1115
    %1159 = vmatpush1.msra.mxu0 %v1114
    %1160 = vmatprep.subr.mxu0 %v1117
    %1161 = vmatpush1.msra.mxu0 %v1116
    %1162 = vmatprep.subr.mxu0 %v1119
    %1163 = vmatpush1.msra.mxu0 %v1118
    %1164 = vmatprep.subr.mxu0 %v1121
    %1165 = vmatpush1.msra.mxu0 %v1120
    %1166 = vmatprep.subr.mxu0 %v1123
    %1167 = vmatpush1.msra.mxu0 %v1122
    %1168 = vmatprep.subr.mxu0 %v1125
    %1169 = vmatpush1.msra.mxu0 %v1124
    %1170 = vmatprep.subr.mxu0 %v1127
    %1171 = vmatpush1.msra.mxu0 %v1126
    %1172 = vmatprep.subr.mxu0 %v1129
    %1173 = vmatpush1.msra.mxu0 %v1128
    %1174 = vmatprep.subr.mxu0 %v1131
    %1175 = vmatpush1.msra.mxu0 %v1130
    %1176 = vmatprep.subr.mxu0 0.0
    %1177 = vmatpush1.msra.mxu0 0.0
    %1178 = vmatprep.subr.mxu0 0.0
    %1179 = vmatpush1.msra.mxu0 0.0
    %1180 = vmatprep.subr.mxu0 0.0
    %1181 = vmatpush1.msra.mxu0 0.0
    %1182 = vmatprep.subr.mxu0 0.0
    %1183 = vmatpush1.msra.mxu0 0.0
    %1184 = vmatprep.subr.mxu0 0.0
    %1185 = vmatpush1.msra.mxu0 0.0
    %1186 = vmatprep.subr.mxu0 0.0
    %1187 = vmatpush1.msra.mxu0 0.0
    %1188 = vmatprep.subr.mxu0 0.0
    %1189 = vmatpush1.msra.mxu0 0.0
    %1190 = vmatprep.subr.mxu0 0.0
    %1191 = vmatpush1.msra.mxu0 0.0
    %1192 = vmatprep.subr.mxu0 0.0
    %1193 = vmatpush1.msra.mxu0 0.0
    %1194 = vmatprep.subr.mxu0 0.0
    %1195 = vmatpush1.msra.mxu0 0.0
    %1196 = vmatprep.subr.mxu0 0.0
    %1197 = vmatpush1.msra.mxu0 0.0
    %1198 = vmatprep.subr.mxu0 0.0
    %1199 = vmatpush1.msra.mxu0 0.0
    %1200 = vmatprep.subr.mxu0 0.0
    %1201 = vmatpush1.msra.mxu0 0.0
    %1202 = vmatprep.subr.mxu0 0.0
    %1203 = vmatpush1.msra.mxu0 0.0
    %1204 = vmatprep.subr.mxu0 0.0
    %1205 = vmatpush1.msra.mxu0 0.0
    %1206 = vmatprep.subr.mxu0 0.0
    %1207 = vmatpush1.msra.mxu0 0.0
    %1208 = vmatprep.mubr.f32.mxu0 0.0
    %1209 = vmatmul.mubr.f32.gmra.mrb[0].mxu0 %v1098
    %v1210 = vpop.f32.mrb[0].mxu0
    %v1211 = vadd.f32 %v1137, %v1210
    %v1212 = vpop.f32.mrb[0].mxu0
    %v1213 = vadd.f32 %v1141, %v1212
    %1214 = vmatprep.mubr.f32.mxu0 0.0
    %1215 = vmatmul.mubr.f32.gmra.mrb[0].mxu0 %v1099
    %v1216 = vpop.f32.mrb[0].mxu0
    %v1217 = vadd.f32 %v1137, %v1216
    %v1218 = vpop.f32.mrb[0].mxu0
    %v1219 = vadd.f32 %v1141, %v1218
    %1220 = vdwg.mxu0
    %v1221 = vmul.f32 %v1211, %v1211
    %v1222 = vmul.f32 %v1213, %v1213
    %v1223 = vmul.f32 %v1217, %v1217
    %v1224 = vmul.f32 %v1219, %v1219
    %v1225 = vmul.f32 %v1211, %v1221
    %v1226 = vmul.f32 %v1213, %v1222
    %v1227 = vmul.f32 %v1217, %v1223
    %v1228 = vmul.f32 %v1219, %v1224
    %v1229 = vmul.f32 %v1225, 0.044715
    %v1230 = vmul.f32 %v1226, 0.044715
    %v1231 = vmul.f32 %v1227, 0.044715
    %v1232 = vmul.f32 %v1228, 0.044715
    %v1233 = vadd.f32 %v1211, %v1229
    %v1234 = vadd.f32 %v1213, %v1230
    %v1235 = vadd.f32 %v1217, %v1231
    %v1236 = vadd.f32 %v1219, %v1232
    %v1237 = vmul.f32 %v1233, 0.7978846
    %v1238 = vmul.f32 %v1234, 0.7978846
    %v1239 = vmul.f32 %v1235, 0.7978846
    %v1240 = vmul.f32 %v1236, 0.7978846
    %v1241 = vtanh.pop %v1237
    %v1242 = vtanh.pop %v1238
    %v1243 = vtanh.pop %v1239
    %v1244 = vtanh.pop %v1240
    %v1245 = vadd.f32 %v1241, 1.0
    %v1246 = vadd.f32 %v1242, 1.0
    %v1247 = vadd.f32 %v1243, 1.0
    %v1248 = vadd.f32 %v1244, 1.0
    %v1249 = vmul.f32 %v1245, 0.5
    %v1250 = vmul.f32 %v1246, 0.5
    %v1251 = vmul.f32 %v1247, 0.5
    %v1252 = vmul.f32 %v1248, 0.5
    %v1253 = vmul.f32 %v1211, %v1249
    %v1254 = vmul.f32 %v1213, %v1250
    %v1255 = vmul.f32 %v1217, %v1251
    %v1256 = vmul.f32 %v1219, %v1252
    %v1257 = vld [vmem:[#allocation8] sm:$0xff]
    %v1258 = vld [vmem:[#allocation8 + $0x8] sm:$0xff]
    %v1259 = vld [vmem:[#allocation8 + $0x10] sm:$0xff]
    %v1260 = vld [vmem:[#allocation8 + $0x18] sm:$0xff]
    %v1261 = vld [vmem:[#allocation8 + $0x20] sm:$0xff]
    %v1262 = vld [vmem:[#allocation8 + $0x28] sm:$0xff]
    %v1263 = vld [vmem:[#allocation8 + $0x30] sm:$0xff]
    %v1264 = vld [vmem:[#allocation8 + $0x38] sm:$0xff]
    %v1265 = vld [vmem:[#allocation8 + $0x40] sm:$0xff]
    %v1266 = vld [vmem:[#allocation8 + $0x48] sm:$0xff]
    %v1267 = vld [vmem:[#allocation8 + $0x50] sm:$0xff]
    %v1268 = vld [vmem:[#allocation8 + $0x58] sm:$0xff]
    %v1269 = vld [vmem:[#allocation8 + $0x60] sm:$0xff]
    %v1270 = vld [vmem:[#allocation8 + $0x68] sm:$0xff]
    %v1271 = vld [vmem:[#allocation8 + $0x70] sm:$0xff]
    %v1272 = vld [vmem:[#allocation8 + $0x78] sm:$0xff]
    %v1273 = vld [vmem:[#allocation8 + $0x80] sm:$0xff]
    %v1274 = vld [vmem:[#allocation8 + $0x88] sm:$0xff]
    %v1275 = vld [vmem:[#allocation8 + $0x90] sm:$0xff]
    %v1276 = vld [vmem:[#allocation8 + $0x98] sm:$0xff]
    %v1277 = vld [vmem:[#allocation8 + $0xa0] sm:$0xff]
    %v1278 = vld [vmem:[#allocation8 + $0xa8] sm:$0xff]
    %v1279 = vld [vmem:[#allocation8 + $0xb0] sm:$0xff]
    %v1280 = vld [vmem:[#allocation8 + $0xb8] sm:$0xff]
    %v1281 = vld [vmem:[#allocation8 + $0xc0] sm:$0xff]
    %v1282 = vld [vmem:[#allocation8 + $0xc8] sm:$0xff]
    %v1283 = vld [vmem:[#allocation8 + $0xd0] sm:$0xff]
    %v1284 = vld [vmem:[#allocation8 + $0xd8] sm:$0xff]
    %v1285 = vld [vmem:[#allocation8 + $0xe0] sm:$0xff]
    %v1286 = vld [vmem:[#allocation8 + $0xe8] sm:$0xff]
    %v1287 = vld [vmem:[#allocation8 + $0xf0] sm:$0xff]
    %v1288 = vld [vmem:[#allocation8 + $0xf8] sm:$0xff]
    %v1289 = vld [vmem:[%s2 + $0xb] sm:$0x1]
    %v1290 = vlaneseq
    %v1291 = vshrl.u32 %v1290, 7
    %v1292 = vsub.s32 0, %v1291
    %v1293 = vrot.slane %v1289, %v1292
    %1294 = vmatprep.subr.mxu0 0.0
    %1295 = vmatpush1.msra.mxu0 %v1257
    %1296 = vmatprep.subr.mxu0 0.0
    %1297 = vmatpush1.msra.mxu0 %v1258
    %1298 = vmatprep.subr.mxu0 0.0
    %1299 = vmatpush1.msra.mxu0 %v1259
    %1300 = vmatprep.subr.mxu0 0.0
    %1301 = vmatpush1.msra.mxu0 %v1260
    %1302 = vmatprep.subr.mxu0 0.0
    %1303 = vmatpush1.msra.mxu0 %v1261
    %1304 = vmatprep.subr.mxu0 0.0
    %1305 = vmatpush1.msra.mxu0 %v1262
    %1306 = vmatprep.subr.mxu0 0.0
    %1307 = vmatpush1.msra.mxu0 %v1263
    %1308 = vmatprep.subr.mxu0 0.0
    %1309 = vmatpush1.msra.mxu0 %v1264
    %1310 = vmatprep.subr.mxu0 0.0
    %1311 = vmatpush1.msra.mxu0 %v1265
    %1312 = vmatprep.subr.mxu0 0.0
    %1313 = vmatpush1.msra.mxu0 %v1266
    %1314 = vmatprep.subr.mxu0 0.0
    %1315 = vmatpush1.msra.mxu0 %v1267
    %1316 = vmatprep.subr.mxu0 0.0
    %1317 = vmatpush1.msra.mxu0 %v1268
    %1318 = vmatprep.subr.mxu0 0.0
    %1319 = vmatpush1.msra.mxu0 %v1269
    %1320 = vmatprep.subr.mxu0 0.0
    %1321 = vmatpush1.msra.mxu0 %v1270
    %1322 = vmatprep.subr.mxu0 0.0
    %1323 = vmatpush1.msra.mxu0 %v1271
    %1324 = vmatprep.subr.mxu0 0.0
    %1325 = vmatpush1.msra.mxu0 %v1272
    %1326 = vmatprep.subr.mxu0 0.0
    %1327 = vmatpush1.msra.mxu0 %v1273
    %1328 = vmatprep.subr.mxu0 0.0
    %1329 = vmatpush1.msra.mxu0 %v1274
    %1330 = vmatprep.subr.mxu0 0.0
    %1331 = vmatpush1.msra.mxu0 %v1275
    %1332 = vmatprep.subr.mxu0 0.0
    %1333 = vmatpush1.msra.mxu0 %v1276
    %1334 = vmatprep.subr.mxu0 0.0
    %1335 = vmatpush1.msra.mxu0 %v1277
    %1336 = vmatprep.subr.mxu0 0.0
    %1337 = vmatpush1.msra.mxu0 %v1278
    %1338 = vmatprep.subr.mxu0 0.0
    %1339 = vmatpush1.msra.mxu0 %v1279
    %1340 = vmatprep.subr.mxu0 0.0
    %1341 = vmatpush1.msra.mxu0 %v1280
    %1342 = vmatprep.subr.mxu0 0.0
    %1343 = vmatpush1.msra.mxu0 %v1281
    %1344 = vmatprep.subr.mxu0 0.0
    %1345 = vmatpush1.msra.mxu0 %v1282
    %1346 = vmatprep.subr.mxu0 0.0
    %1347 = vmatpush1.msra.mxu0 %v1283
    %1348 = vmatprep.subr.mxu0 0.0
    %1349 = vmatpush1.msra.mxu0 %v1284
    %1350 = vmatprep.subr.mxu0 0.0
    %1351 = vmatpush1.msra.mxu0 %v1285
    %1352 = vmatprep.subr.mxu0 0.0
    %1353 = vmatpush1.msra.mxu0 %v1286
    %1354 = vmatprep.subr.mxu0 0.0
    %1355 = vmatpush1.msra.mxu0 %v1287
    %1356 = vmatprep.subr.mxu0 0.0
    %1357 = vmatpush1.msra.mxu0 %v1288
    %1358 = vmatprep.mubr.f32.mxu0 %v1254
    %1359 = vmatmul.mubr.f32.gmra.mrb[0].mxu0 %v1253
    %v1360 = vpop.f32.mrb[0].mxu0
    %v1361 = vadd.f32 %v1293, %v1360
    %v1362 = vpop.f32.mrb[0].mxu0
    %1363 = vmatprep.mubr.f32.mxu0 %v1256
    %1364 = vmatmul.mubr.f32.gmra.mrb[0].mxu0 %v1255
    %v1365 = vpop.f32.mrb[0].mxu0
    %v1366 = vadd.f32 %v1293, %v1365
    %v1367 = vpop.f32.mrb[0].mxu0
    %1368 = vdwg.mxu0
    %v1369 = vadd.f32 %v1098, %v1361
    %v1370 = vadd.f32 %v1099, %v1366
    %v1371 = vld [vmem:[%s2 + $0xc] sm:$0x1]
    %v1372 = vld [vmem:[%s2 + $0xd] sm:$0x1]
    %1373 = vadd.xlane.f32.xlu0 %v1369
    %v1374 = vpop.xlane.xlu0 %1373
    %1375 = vadd.xlane.f32.xlu0 %v1370
    %v1376 = vpop.xlane.xlu0 %1375
    %v1377 = vmul.f32 %v1374, %v101
    %v1378 = vmul.f32 %v1376, %v101
    %v1379 = vmul.f32 %v1369, %v1369
    %v1380 = vmul.f32 %v1370, %v1370
    %1381 = vadd.xlane.f32.xlu0 %v1379
    %v1382 = vpop.xlane.xlu0 %1381
    %1383 = vadd.xlane.f32.xlu0 %v1380
    %v1384 = vpop.xlane.xlu0 %1383
    %v1385 = vmul.f32 %v1382, %v101
    %v1386 = vmul.f32 %v1384, %v101
    %v1387 = vmul.f32 %v1377, %v1377
    %v1388 = vmul.f32 %v1378, %v1378
    %v1389 = vsub.f32 %v1385, %v1387
    %v1390 = vsub.f32 %v1386, %v1388
    %v1391 = vmax.f32 %v1389, 0.0
    %v1392 = vmax.f32 %v1390, 0.0
    %v1393 = vsub.f32 %v1369, %v1377
    %v1394 = vsub.f32 %v1370, %v1378
    %v1395 = vadd.f32 %v1391, 1e-12
    %v1396 = vadd.f32 %v1392, 1e-12
    %v1397 = vrsqrt.pop %v1395
    %v1398 = vrsqrt.pop %v1396
    %v1399 = vmul.f32 %v1393, %v1397
    %v1400 = vmul.f32 %v1394, %v1398
    %v1401 = vlaneseq
    %v1402 = vshrl.u32 %v1401, 7
    %v1403 = vsub.s32 0, %v1402
    %v1404 = vrot.slane %v1371, %v1403
    %v1405 = vmul.f32 %v1399, %v1404
    %v1406 = vmul.f32 %v1400, %v1404
    %v1407 = vlaneseq
    %v1408 = vshrl.u32 %v1407, 7
    %v1409 = vsub.s32 0, %v1408
    %v1410 = vrot.slane %v1372, %v1409
    %v1411 = vadd.f32 %v1405, %v1410
    %v1412 = vadd.f32 %v1406, %v1410
    %s1413 = scalar_lea.vmem [#allocation2], 768
    %v1414 = vld [vmem:[%s1413] sm:$0xff]
    %v1415 = vld [vmem:[%s1413 + $0x8] sm:$0xff]
    %v1416 = vld [vmem:[%s1413 + $0x10] sm:$0xff]
    %v1417 = vld [vmem:[%s1413 + $0x18] sm:$0xff]
    %v1418 = vld [vmem:[%s1413 + $0x20] sm:$0xff]
    %v1419 = vld [vmem:[%s1413 + $0x28] sm:$0xff]
    %v1420 = vld [vmem:[%s1413 + $0x30] sm:$0xff]
    %v1421 = vld [vmem:[%s1413 + $0x38] sm:$0xff]
    %v1422 = vld [vmem:[%s1413 + $0x40] sm:$0xff]
    %v1423 = vld [vmem:[%s1413 + $0x48] sm:$0xff]
    %v1424 = vld [vmem:[%s1413 + $0x50] sm:$0xff]
    %v1425 = vld [vmem:[%s1413 + $0x58] sm:$0xff]
    %v1426 = vld [vmem:[%s1413 + $0x60] sm:$0xff]
    %v1427 = vld [vmem:[%s1413 + $0x68] sm:$0xff]
    %v1428 = vld [vmem:[%s1413 + $0x70] sm:$0xff]
    %v1429 = vld [vmem:[%s1413 + $0x78] sm:$0xff]
    %v1430 = vld [vmem:[%s1413 + $0x80] sm:$0xff]
    %v1431 = vld [vmem:[%s1413 + $0x88] sm:$0xff]
    %v1432 = vld [vmem:[%s1413 + $0x90] sm:$0xff]
    %v1433 = vld [vmem:[%s1413 + $0x98] sm:$0xff]
    %v1434 = vld [vmem:[%s1413 + $0xa0] sm:$0xff]
    %v1435 = vld [vmem:[%s1413 + $0xa8] sm:$0xff]
    %v1436 = vld [vmem:[%s1413 + $0xb0] sm:$0xff]
    %v1437 = vld [vmem:[%s1413 + $0xb8] sm:$0xff]
    %v1438 = vld [vmem:[%s1413 + $0xc0] sm:$0xff]
    %v1439 = vld [vmem:[%s1413 + $0xc8] sm:$0xff]
    %v1440 = vld [vmem:[%s1413 + $0xd0] sm:$0xff]
    %v1441 = vld [vmem:[%s1413 + $0xd8] sm:$0xff]
    %v1442 = vld [vmem:[%s1413 + $0xe0] sm:$0xff]
    %v1443 = vld [vmem:[%s1413 + $0xe8] sm:$0xff]
    %v1444 = vld [vmem:[%s1413 + $0xf0] sm:$0xff]
    %v1445 = vld [vmem:[%s1413 + $0xf8] sm:$0xff]
    %v1446 = vld [vmem:[%s1413 + $0x100] sm:$0xff]
    %v1447 = vld [vmem:[%s1413 + $0x108] sm:$0xff]
    %v1448 = vld [vmem:[%s1413 + $0x110] sm:$0xff]
    %v1449 = vld [vmem:[%s1413 + $0x118] sm:$0xff]
    %v1450 = vld [vmem:[%s1413 + $0x120] sm:$0xff]
    %v1451 = vld [vmem:[%s1413 + $0x128] sm:$0xff]
    %v1452 = vld [vmem:[%s1413 + $0x130] sm:$0xff]
    %v1453 = vld [vmem:[%s1413 + $0x138] sm:$0xff]
    %v1454 = vld [vmem:[%s1413 + $0x140] sm:$0xff]
    %v1455 = vld [vmem:[%s1413 + $0x148] sm:$0xff]
    %v1456 = vld [vmem:[%s1413 + $0x150] sm:$0xff]
    %v1457 = vld [vmem:[%s1413 + $0x158] sm:$0xff]
    %v1458 = vld [vmem:[%s1413 + $0x160] sm:$0xff]
    %v1459 = vld [vmem:[%s1413 + $0x168] sm:$0xff]
    %v1460 = vld [vmem:[%s1413 + $0x170] sm:$0xff]
    %v1461 = vld [vmem:[%s1413 + $0x178] sm:$0xff]
    %v1462 = vld [vmem:[%s1413 + $0x180] sm:$0xff]
    %v1463 = vld [vmem:[%s1413 + $0x188] sm:$0xff]
    %v1464 = vld [vmem:[%s1413 + $0x190] sm:$0xff]
    %v1465 = vld [vmem:[%s1413 + $0x198] sm:$0xff]
    %v1466 = vld [vmem:[%s1413 + $0x1a0] sm:$0xff]
    %v1467 = vld [vmem:[%s1413 + $0x1a8] sm:$0xff]
    %v1468 = vld [vmem:[%s1413 + $0x1b0] sm:$0xff]
    %v1469 = vld [vmem:[%s1413 + $0x1b8] sm:$0xff]
    %v1470 = vld [vmem:[%s1413 + $0x1c0] sm:$0xff]
    %v1471 = vld [vmem:[%s1413 + $0x1c8] sm:$0xff]
    %v1472 = vld [vmem:[%s1413 + $0x1d0] sm:$0xff]
    %v1473 = vld [vmem:[%s1413 + $0x1d8] sm:$0xff]
    %v1474 = vld [vmem:[%s1413 + $0x1e0] sm:$0xff]
    %v1475 = vld [vmem:[%s1413 + $0x1e8] sm:$0xff]
    %v1476 = vld [vmem:[%s1413 + $0x1f0] sm:$0xff]
    %v1477 = vld [vmem:[%s1413 + $0x1f8] sm:$0xff]
    %v1478 = vld [vmem:[%s1413 + $0x200] sm:$0xff]
    %v1479 = vld [vmem:[%s1413 + $0x208] sm:$0xff]
    %v1480 = vld [vmem:[%s1413 + $0x210] sm:$0xff]
    %v1481 = vld [vmem:[%s1413 + $0x218] sm:$0xff]
    %v1482 = vld [vmem:[%s1413 + $0x220] sm:$0xff]
    %v1483 = vld [vmem:[%s1413 + $0x228] sm:$0xff]
    %v1484 = vld [vmem:[%s1413 + $0x230] sm:$0xff]
    %v1485 = vld [vmem:[%s1413 + $0x238] sm:$0xff]
    %v1486 = vld [vmem:[%s1413 + $0x240] sm:$0xff]
    %v1487 = vld [vmem:[%s1413 + $0x248] sm:$0xff]
    %v1488 = vld [vmem:[%s1413 + $0x250] sm:$0xff]
    %v1489 = vld [vmem:[%s1413 + $0x258] sm:$0xff]
    %v1490 = vld [vmem:[%s1413 + $0x260] sm:$0xff]
    %v1491 = vld [vmem:[%s1413 + $0x268] sm:$0xff]
    %v1492 = vld [vmem:[%s1413 + $0x270] sm:$0xff]
    %v1493 = vld [vmem:[%s1413 + $0x278] sm:$0xff]
    %v1494 = vld [vmem:[%s1413 + $0x280] sm:$0xff]
    %v1495 = vld [vmem:[%s1413 + $0x288] sm:$0xff]
    %v1496 = vld [vmem:[%s1413 + $0x290] sm:$0xff]
    %v1497 = vld [vmem:[%s1413 + $0x298] sm:$0xff]
    %v1498 = vld [vmem:[%s1413 + $0x2a0] sm:$0xff]
    %v1499 = vld [vmem:[%s1413 + $0x2a8] sm:$0xff]
    %v1500 = vld [vmem:[%s1413 + $0x2b0] sm:$0xff]
    %v1501 = vld [vmem:[%s1413 + $0x2b8] sm:$0xff]
    %v1502 = vld [vmem:[%s1413 + $0x2c0] sm:$0xff]
    %v1503 = vld [vmem:[%s1413 + $0x2c8] sm:$0xff]
    %v1504 = vld [vmem:[%s1413 + $0x2d0] sm:$0xff]
    %v1505 = vld [vmem:[%s1413 + $0x2d8] sm:$0xff]
    %v1506 = vld [vmem:[%s1413 + $0x2e0] sm:$0xff]
    %v1507 = vld [vmem:[%s1413 + $0x2e8] sm:$0xff]
    %v1508 = vld [vmem:[%s1413 + $0x2f0] sm:$0xff]
    %v1509 = vld [vmem:[%s1413 + $0x2f8] sm:$0xff]
    %1510 = vmatprep.subr.mxu0 %v1415
    %1511 = vmatpush1.msra.mxu0 %v1414
    %1512 = vmatprep.subr.mxu0 %v1421
    %1513 = vmatpush1.msra.mxu0 %v1420
    %1514 = vmatprep.subr.mxu0 %v1427
    %1515 = vmatpush1.msra.mxu0 %v1426
    %1516 = vmatprep.subr.mxu0 %v1433
    %1517 = vmatpush1.msra.mxu0 %v1432
    %1518 = vmatprep.subr.mxu0 %v1439
    %1519 = vmatpush1.msra.mxu0 %v1438
    %1520 = vmatprep.subr.mxu0 %v1445
    %1521 = vmatpush1.msra.mxu0 %v1444
    %1522 = vmatprep.subr.mxu0 %v1451
    %1523 = vmatpush1.msra.mxu0 %v1450
    %1524 = vmatprep.subr.mxu0 %v1457
    %1525 = vmatpush1.msra.mxu0 %v1456
    %1526 = vmatprep.subr.mxu0 %v1463
    %1527 = vmatpush1.msra.mxu0 %v1462
    %1528 = vmatprep.subr.mxu0 %v1469
    %1529 = vmatpush1.msra.mxu0 %v1468
    %1530 = vmatprep.subr.mxu0 %v1475
    %1531 = vmatpush1.msra.mxu0 %v1474
    %1532 = vmatprep.subr.mxu0 %v1481
    %1533 = vmatpush1.msra.mxu0 %v1480
    %1534 = vmatprep.subr.mxu0 %v1487
    %1535 = vmatpush1.msra.mxu0 %v1486
    %1536 = vmatprep.subr.mxu0 %v1493
    %1537 = vmatpush1.msra.mxu0 %v1492
    %1538 = vmatprep.subr.mxu0 %v1499
    %1539 = vmatpush1.msra.mxu0 %v1498
    %1540 = vmatprep.subr.mxu0 %v1505
    %1541 = vmatpush1.msra.mxu0 %v1504
    %1542 = vmatprep.subr.mxu0 0.0
    %1543 = vmatpush1.msra.mxu0 0.0
    %1544 = vmatprep.subr.mxu0 0.0
    %1545 = vmatpush1.msra.mxu0 0.0
    %1546 = vmatprep.subr.mxu0 0.0
    %1547 = vmatpush1.msra.mxu0 0.0
    %1548 = vmatprep.subr.mxu0 0.0
    %1549 = vmatpush1.msra.mxu0 0.0
    %1550 = vmatprep.subr.mxu0 0.0
    %1551 = vmatpush1.msra.mxu0 0.0
    %1552 = vmatprep.subr.mxu0 0.0
    %1553 = vmatpush1.msra.mxu0 0.0
    %1554 = vmatprep.subr.mxu0 0.0
    %1555 = vmatpush1.msra.mxu0 0.0
    %1556 = vmatprep.subr.mxu0 0.0
    %1557 = vmatpush1.msra.mxu0 0.0
    %1558 = vmatprep.subr.mxu0 0.0
    %1559 = vmatpush1.msra.mxu0 0.0
    %1560 = vmatprep.subr.mxu0 0.0
    %1561 = vmatpush1.msra.mxu0 0.0
    %1562 = vmatprep.subr.mxu0 0.0
    %1563 = vmatpush1.msra.mxu0 0.0
    %1564 = vmatprep.subr.mxu0 0.0
    %1565 = vmatpush1.msra.mxu0 0.0
    %1566 = vmatprep.subr.mxu0 0.0
    %1567 = vmatpush1.msra.mxu0 0.0
    %1568 = vmatprep.subr.mxu0 0.0
    %1569 = vmatpush1.msra.mxu0 0.0
    %1570 = vmatprep.subr.mxu0 0.0
    %1571 = vmatpush1.msra.mxu0 0.0
    %1572 = vmatprep.subr.mxu0 0.0
    %1573 = vmatpush1.msra.mxu0 0.0
    %1574 = vmatprep.mubr.f32.mxu0 0.0
    %1575 = vmatmul.mubr.f32.gmra.mrb[0].mxu0 %v1411
    %v1576 = vpop.f32.mrb[0].mxu0
    %v1577 = vadd.f32 0.0, %v1576
    %v1578 = vpop.f32.mrb[0].mxu0
    %v1579 = vadd.f32 0.0, %v1578
    %1580 = vmatprep.mubr.f32.mxu0 0.0
    %1581 = vmatmul.mubr.f32.gmra.mrb[0].mxu0 %v1412
    %v1582 = vpop.f32.mrb[0].mxu0
    %v1583 = vadd.f32 0.0, %v1582
    %v1584 = vpop.f32.mrb[0].mxu0
    %v1585 = vadd.f32 0.0, %v1584
    %1586 = vdwg.mxu0
    %1587 = vmatprep.subr.mxu0 %v1417
    %1588 = vmatpush1.msra.mxu0 %v1416
    %1589 = vmatprep.subr.mxu0 %v1423
    %1590 = vmatpush1.msra.mxu0 %v1422
    %1591 = vmatprep.subr.mxu0 %v1429
    %1592 = vmatpush1.msra.mxu0 %v1428
    %1593 = vmatprep.subr.mxu0 %v1435
    %1594 = vmatpush1.msra.mxu0 %v1434
    %1595 = vmatprep.subr.mxu0 %v1441
    %1596 = vmatpush1.msra.mxu0 %v1440
    %1597 = vmatprep.subr.mxu0 %v1447
    %1598 = vmatpush1.msra.mxu0 %v1446
    %1599 = vmatprep.subr.mxu0 %v1453
    %1600 = vmatpush1.msra.mxu0 %v1452
    %1601 = vmatprep.subr.mxu0 %v1459
    %1602 = vmatpush1.msra.mxu0 %v1458
    %1603 = vmatprep.subr.mxu0 %v1465
    %1604 = vmatpush1.msra.mxu0 %v1464
    %1605 = vmatprep.subr.mxu0 %v1471
    %1606 = vmatpush1.msra.mxu0 %v1470
    %1607 = vmatprep.subr.mxu0 %v1477
    %1608 = vmatpush1.msra.mxu0 %v1476
    %1609 = vmatprep.subr.mxu0 %v1483
    %1610 = vmatpush1.msra.mxu0 %v1482
    %1611 = vmatprep.subr.mxu0 %v1489
    %1612 = vmatpush1.msra.mxu0 %v1488
    %1613 = vmatprep.subr.mxu0 %v1495
    %1614 = vmatpush1.msra.mxu0 %v1494
    %1615 = vmatprep.subr.mxu0 %v1501
    %1616 = vmatpush1.msra.mxu0 %v1500
    %1617 = vmatprep.subr.mxu0 %v1507
    %1618 = vmatpush1.msra.mxu0 %v1506
    %1619 = vmatprep.subr.mxu0 0.0
    %1620 = vmatpush1.msra.mxu0 0.0
    %1621 = vmatprep.subr.mxu0 0.0
    %1622 = vmatpush1.msra.mxu0 0.0
    %1623 = vmatprep.subr.mxu0 0.0
    %1624 = vmatpush1.msra.mxu0 0.0
    %1625 = vmatprep.subr.mxu0 0.0
    %1626 = vmatpush1.msra.mxu0 0.0
    %1627 = vmatprep.subr.mxu0 0.0
    %1628 = vmatpush1.msra.mxu0 0.0
    %1629 = vmatprep.subr.mxu0 0.0
    %1630 = vmatpush1.msra.mxu0 0.0
    %1631 = vmatprep.subr.mxu0 0.0
    %1632 = vmatpush1.msra.mxu0 0.0
    %1633 = vmatprep.subr.mxu0 0.0
    %1634 = vmatpush1.msra.mxu0 0.0
    %1635 = vmatprep.subr.mxu0 0.0
    %1636 = vmatpush1.msra.mxu0 0.0
    %1637 = vmatprep.subr.mxu0 0.0
    %1638 = vmatpush1.msra.mxu0 0.0
    %1639 = vmatprep.subr.mxu0 0.0
    %1640 = vmatpush1.msra.mxu0 0.0
    %1641 = vmatprep.subr.mxu0 0.0
    %1642 = vmatpush1.msra.mxu0 0.0
    %1643 = vmatprep.subr.mxu0 0.0
    %1644 = vmatpush1.msra.mxu0 0.0
    %1645 = vmatprep.subr.mxu0 0.0
    %1646 = vmatpush1.msra.mxu0 0.0
    %1647 = vmatprep.subr.mxu0 0.0
    %1648 = vmatpush1.msra.mxu0 0.0
    %1649 = vmatprep.subr.mxu0 0.0
    %1650 = vmatpush1.msra.mxu0 0.0
    %1651 = vmatprep.mubr.f32.mxu0 0.0
    %1652 = vmatmul.mubr.f32.gmra.mrb[0].mxu0 %v1411
    %v1653 = vpop.f32.mrb[0].mxu0
    %v1654 = vadd.f32 0.0, %v1653
    %v1655 = vpop.f32.mrb[0].mxu0
    %v1656 = vadd.f32 0.0, %v1655
    %1657 = vmatprep.mubr.f32.mxu0 0.0
    %1658 = vmatmul.mubr.f32.gmra.mrb[0].mxu0 %v1412
    %v1659 = vpop.f32.mrb[0].mxu0
    %v1660 = vadd.f32 0.0, %v1659
    %v1661 = vpop.f32.mrb[0].mxu0
    %v1662 = vadd.f32 0.0, %v1661
    %1663 = vdwg.mxu0
    %1664 = vmatprep.subr.mxu0 %v1419
    %1665 = vmatpush1.msra.mxu0 %v1418
    %1666 = vmatprep.subr.mxu0 %v1425
    %1667 = vmatpush1.msra.mxu0 %v1424
    %1668 = vmatprep.subr.mxu0 %v1431
    %1669 = vmatpush1.msra.mxu0 %v1430
    %1670 = vmatprep.subr.mxu0 %v1437
    %1671 = vmatpush1.msra.mxu0 %v1436
    %1672 = vmatprep.subr.mxu0 %v1443
    %1673 = vmatpush1.msra.mxu0 %v1442
    %1674 = vmatprep.subr.mxu0 %v1449
    %1675 = vmatpush1.msra.mxu0 %v1448
    %1676 = vmatprep.subr.mxu0 %v1455
    %1677 = vmatpush1.msra.mxu0 %v1454
    %1678 = vmatprep.subr.mxu0 %v1461
    %1679 = vmatpush1.msra.mxu0 %v1460
    %1680 = vmatprep.subr.mxu0 %v1467
    %1681 = vmatpush1.msra.mxu0 %v1466
    %1682 = vmatprep.subr.mxu0 %v1473
    %1683 = vmatpush1.msra.mxu0 %v1472
    %1684 = vmatprep.subr.mxu0 %v1479
    %1685 = vmatpush1.msra.mxu0 %v1478
    %1686 = vmatprep.subr.mxu0 %v1485
    %1687 = vmatpush1.msra.mxu0 %v1484
    %1688 = vmatprep.subr.mxu0 %v1491
    %1689 = vmatpush1.msra.mxu0 %v1490
    %1690 = vmatprep.subr.mxu0 %v1497
    %1691 = vmatpush1.msra.mxu0 %v1496
    %1692 = vmatprep.subr.mxu0 %v1503
    %1693 = vmatpush1.msra.mxu0 %v1502
    %1694 = vmatprep.subr.mxu0 %v1509
    %1695 = vmatpush1.msra.mxu0 %v1508
    %1696 = vmatprep.subr.mxu0 0.0
    %1697 = vmatpush1.msra.mxu0 0.0
    %1698 = vmatprep.subr.mxu0 0.0
    %1699 = vmatpush1.msra.mxu0 0.0
    %1700 = vmatprep.subr.mxu0 0.0
    %1701 = vmatpush1.msra.mxu0 0.0
    %1702 = vmatprep.subr.mxu0 0.0
    %1703 = vmatpush1.msra.mxu0 0.0
    %1704 = vmatprep.subr.mxu0 0.0
    %1705 = vmatpush1.msra.mxu0 0.0
    %1706 = vmatprep.subr.mxu0 0.0
    %1707 = vmatpush1.msra.mxu0 0.0
    %1708 = vmatprep.subr.mxu0 0.0
    %1709 = vmatpush1.msra.mxu0 0.0
    %1710 = vmatprep.subr.mxu0 0.0
    %1711 = vmatpush1.msra.mxu0 0.0
    %1712 = vmatprep.subr.mxu0 0.0
    %1713 = vmatpush1.msra.mxu0 0.0
    %1714 = vmatprep.subr.mxu0 0.0
    %1715 = vmatpush1.msra.mxu0 0.0
    %1716 = vmatprep.subr.mxu0 0.0
    %1717 = vmatpush1.msra.mxu0 0.0
    %1718 = vmatprep.subr.mxu0 0.0
    %1719 = vmatpush1.msra.mxu0 0.0
    %1720 = vmatprep.subr.mxu0 0.0
    %1721 = vmatpush1.msra.mxu0 0.0
    %1722 = vmatprep.subr.mxu0 0.0
    %1723 = vmatpush1.msra.mxu0 0.0
    %1724 = vmatprep.subr.mxu0 0.0
    %1725 = vmatpush1.msra.mxu0 0.0
    %1726 = vmatprep.subr.mxu0 0.0
    %1727 = vmatpush1.msra.mxu0 0.0
    %1728 = vmatprep.mubr.f32.mxu0 0.0
    %1729 = vmatmul.mubr.f32.gmra.mrb[0].mxu0 %v1411
    %v1730 = vpop.f32.mrb[0].mxu0
    %v1731 = vadd.f32 0.0, %v1730
    %v1732 = vpop.f32.mrb[0].mxu0
    %v1733 = vadd.f32 0.0, %v1732
    %1734 = vmatprep.mubr.f32.mxu0 0.0
    %1735 = vmatmul.mubr.f32.gmra.mrb[0].mxu0 %v1412
    %v1736 = vpop.f32.mrb[0].mxu0
    %v1737 = vadd.f32 0.0, %v1736
    %v1738 = vpop.f32.mrb[0].mxu0
    %v1739 = vadd.f32 0.0, %v1738
    %1740 = vdwg.mxu0
    %v1741 = vld [vmem:[%s2 + $0x14] sm:$0x1]
    %v1742 = vld [vmem:[%s2 + $0xe] sm:$0x1]
    %v1743 = vlaneseq
    %v1744 = vshrl.u32 %v1743, 7
    %v1745 = vsub.s32 0, %v1744
    %v1746 = vrot.slane %v1742, %v1745
    %v1747 = vadd.f32 %v1577, %v1746
    %v1748 = vadd.f32 %v1583, %v1746
    %v1749 = vld [vmem:[%s2 + $0x10] sm:$0x1]
    %v1750 = vlaneseq
    %v1751 = vshrl.u32 %v1750, 7
    %v1752 = vsub.s32 0, %v1751
    %v1753 = vrot.slane %v1749, %v1752
    %v1754 = vadd.f32 %v1654, %v1753
    %v1755 = vadd.f32 %v1660, %v1753
    %v1756 = vld [vmem:[%s2 + $0x12] sm:$0x1]
    %v1757 = vlaneseq
    %v1758 = vshrl.u32 %v1757, 7
    %v1759 = vsub.s32 0, %v1758
    %v1760 = vrot.slane %v1756, %v1759
    %v1761 = vadd.f32 %v1731, %v1760
    %v1762 = vadd.f32 %v1737, %v1760
    %1763 = vmatprep.subr.mxu0 0.0
    %1764 = vmatpush1.xpose.msra.mxu0 %v1754
    %1765 = vmatprep.subr.mxu0 0.0
    %1766 = vmatpush1.xpose.msra.mxu0 %v1755
    %1767 = vmatprep.subr.mxu0 0.0
    %1768 = vmatpush1.xpose.msra.mxu0 0.0
    %1769 = vmatprep.subr.mxu0 0.0
    %1770 = vmatpush1.xpose.msra.mxu0 0.0
    %1771 = vmatprep.subr.mxu0 0.0
    %1772 = vmatpush1.xpose.msra.mxu0 0.0
    %1773 = vmatprep.subr.mxu0 0.0
    %1774 = vmatpush1.xpose.msra.mxu0 0.0
    %1775 = vmatprep.subr.mxu0 0.0
    %1776 = vmatpush1.xpose.msra.mxu0 0.0
    %1777 = vmatprep.subr.mxu0 0.0
    %1778 = vmatpush1.xpose.msra.mxu0 0.0
    %1779 = vmatprep.subr.mxu0 0.0
    %1780 = vmatpush1.xpose.msra.mxu0 0.0
    %1781 = vmatprep.subr.mxu0 0.0
    %1782 = vmatpush1.xpose.msra.mxu0 0.0
    %1783 = vmatprep.subr.mxu0 0.0
    %1784 = vmatpush1.xpose.msra.mxu0 0.0
    %1785 = vmatprep.subr.mxu0 0.0
    %1786 = vmatpush1.xpose.msra.mxu0 0.0
    %1787 = vmatprep.subr.mxu0 0.0
    %1788 = vmatpush1.xpose.msra.mxu0 0.0
    %1789 = vmatprep.subr.mxu0 0.0
    %1790 = vmatpush1.xpose.msra.mxu0 0.0
    %1791 = vmatprep.subr.mxu0 0.0
    %1792 = vmatpush1.xpose.msra.mxu0 0.0
    %1793 = vmatprep.subr.mxu0 0.0
    %1794 = vmatpush1.xpose.msra.mxu0 0.0
    %1795 = vmatprep.subr.mxu0 0.0
    %1796 = vmatpush1.xpose.msra.mxu0 0.0
    %1797 = vmatprep.subr.mxu0 0.0
    %1798 = vmatpush1.xpose.msra.mxu0 0.0
    %1799 = vmatprep.subr.mxu0 0.0
    %1800 = vmatpush1.xpose.msra.mxu0 0.0
    %1801 = vmatprep.subr.mxu0 0.0
    %1802 = vmatpush1.xpose.msra.mxu0 0.0
    %1803 = vmatprep.subr.mxu0 0.0
    %1804 = vmatpush1.xpose.msra.mxu0 0.0
    %1805 = vmatprep.subr.mxu0 0.0
    %1806 = vmatpush1.xpose.msra.mxu0 0.0
    %1807 = vmatprep.subr.mxu0 0.0
    %1808 = vmatpush1.xpose.msra.mxu0 0.0
    %1809 = vmatprep.subr.mxu0 0.0
    %1810 = vmatpush1.xpose.msra.mxu0 0.0
    %1811 = vmatprep.subr.mxu0 0.0
    %1812 = vmatpush1.xpose.msra.mxu0 0.0
    %1813 = vmatprep.subr.mxu0 0.0
    %1814 = vmatpush1.xpose.msra.mxu0 0.0
    %1815 = vmatprep.subr.mxu0 0.0
    %1816 = vmatpush1.xpose.msra.mxu0 0.0
    %1817 = vmatprep.subr.mxu0 0.0
    %1818 = vmatpush1.xpose.msra.mxu0 0.0
    %1819 = vmatprep.subr.mxu0 0.0
    %1820 = vmatpush1.xpose.msra.mxu0 0.0
    %1821 = vmatprep.subr.mxu0 0.0
    %1822 = vmatpush1.xpose.msra.mxu0 0.0
    %1823 = vmatprep.subr.mxu0 0.0
    %1824 = vmatpush1.xpose.msra.mxu0 0.0
    %1825 = vmatprep.subr.mxu0 0.0
    %1826 = vmatpush1.xpose.msra.mxu0 0.0
    %1827 = vmatprep.mubr.f32.mxu0 0.0
    %1828 = vmatmul.mubr.f32.gmra.mrb[0].mxu0 %v1747
    %v1829 = vpop.f32.mrb[0].mxu0
    %v1830 = vadd.f32 %v91, %v1829
    %v1831 = vpop.f32.mrb[0].mxu0
    %1832 = vmatprep.mubr.f32.mxu0 0.0
    %1833 = vmatmul.mubr.f32.gmra.mrb[0].mxu0 %v1748
    %v1834 = vpop.f32.mrb[0].mxu0
    %v1835 = vadd.f32 %v92, %v1834
    %v1836 = vpop.f32.mrb[0].mxu0
    %1837 = vdwg.mxu0
    %v1838 = vsel %vm562, %v1830, -inf
    %1839 = vmax.xlane.f32.xlu0 %v1838
    %v1840 = vpop.xlane.xlu0 %1839
    %v1841 = vsel %vm562, %v1835, -inf
    %1842 = vmax.xlane.f32.xlu0 %v1841
    %v1843 = vpop.xlane.xlu0 %1842
    %v1844 = vsub.f32 %v1830, %v1840
    %v1845 = vsub.f32 %v1835, %v1843
    %v1846 = vmul.f32 %v1844, 1.442695
    %v1847 = vpow.pop %v1846
    %v1848 = vmul.f32 %v1845, 1.442695
    %v1849 = vpow.pop %v1848
    %v1850 = vsel %vm562, %v1847, 0.0
    %1851 = vadd.xlane.f32.xlu0 %v1850
    %v1852 = vpop.xlane.xlu0 %1851
    %v1853 = vsel %vm562, %v1849, 0.0
    %1854 = vadd.xlane.f32.xlu0 %v1853
    %v1855 = vpop.xlane.xlu0 %1854
    %v1856 = vrcp.pop %v1852
    %v1857 = vmul.f32 %v1847, %v1856
    %v1858 = vrcp.pop %v1855
    %v1859 = vmul.f32 %v1849, %v1858
    %v1861 = vsel %vm562, %v1857, 0
    %v1864 = vsel %vm562, %v1859, 0
    %1866 = vmatprep.subr.mxu0 0.0
    %1867 = vmatpush1.msra.mxu0 %v1761
    %1868 = vmatprep.subr.mxu0 0.0
    %1869 = vmatpush1.msra.mxu0 %v1762
    %1870 = vmatprep.subr.mxu0 0.0
    %1871 = vmatpush1.msra.mxu0 0.0
    %1872 = vmatprep.subr.mxu0 0.0
    %1873 = vmatpush1.msra.mxu0 0.0
    %1874 = vmatprep.subr.mxu0 0.0
    %1875 = vmatpush1.msra.mxu0 0.0
    %1876 = vmatprep.subr.mxu0 0.0
    %1877 = vmatpush1.msra.mxu0 0.0
    %1878 = vmatprep.subr.mxu0 0.0
    %1879 = vmatpush1.msra.mxu0 0.0
    %1880 = vmatprep.subr.mxu0 0.0
    %1881 = vmatpush1.msra.mxu0 0.0
    %1882 = vmatprep.subr.mxu0 0.0
    %1883 = vmatpush1.msra.mxu0 0.0
    %1884 = vmatprep.subr.mxu0 0.0
    %1885 = vmatpush1.msra.mxu0 0.0
    %1886 = vmatprep.subr.mxu0 0.0
    %1887 = vmatpush1.msra.mxu0 0.0
    %1888 = vmatprep.subr.mxu0 0.0
    %1889 = vmatpush1.msra.mxu0 0.0
    %1890 = vmatprep.subr.mxu0 0.0
    %1891 = vmatpush1.msra.mxu0 0.0
    %1892 = vmatprep.subr.mxu0 0.0
    %1893 = vmatpush1.msra.mxu0 0.0
    %1894 = vmatprep.subr.mxu0 0.0
    %1895 = vmatpush1.msra.mxu0 0.0
    %1896 = vmatprep.subr.mxu0 0.0
    %1897 = vmatpush1.msra.mxu0 0.0
    %1898 = vmatprep.subr.mxu0 0.0
    %1899 = vmatpush1.msra.mxu0 0.0
    %1900 = vmatprep.subr.mxu0 0.0
    %1901 = vmatpush1.msra.mxu0 0.0
    %1902 = vmatprep.subr.mxu0 0.0
    %1903 = vmatpush1.msra.mxu0 0.0
    %1904 = vmatprep.subr.mxu0 0.0
    %1905 = vmatpush1.msra.mxu0 0.0
    %1906 = vmatprep.subr.mxu0 0.0
    %1907 = vmatpush1.msra.mxu0 0.0
    %1908 = vmatprep.subr.mxu0 0.0
    %1909 = vmatpush1.msra.mxu0 0.0
    %1910 = vmatprep.subr.mxu0 0.0
    %1911 = vmatpush1.msra.mxu0 0.0
    %1912 = vmatprep.subr.mxu0 0.0
    %1913 = vmatpush1.msra.mxu0 0.0
    %1914 = vmatprep.subr.mxu0 0.0
    %1915 = vmatpush1.msra.mxu0 0.0
    %1916 = vmatprep.subr.mxu0 0.0
    %1917 = vmatpush1.msra.mxu0 0.0
    %1918 = vmatprep.subr.mxu0 0.0
    %1919 = vmatpush1.msra.mxu0 0.0
    %1920 = vmatprep.subr.mxu0 0.0
    %1921 = vmatpush1.msra.mxu0 0.0
    %1922 = vmatprep.subr.mxu0 0.0
    %1923 = vmatpush1.msra.mxu0 0.0
    %1924 = vmatprep.subr.mxu0 0.0
    %1925 = vmatpush1.msra.mxu0 0.0
    %1926 = vmatprep.subr.mxu0 0.0
    %1927 = vmatpush1.msra.mxu0 0.0
    %1928 = vmatprep.subr.mxu0 0.0
    %1929 = vmatpush1.msra.mxu0 0.0
    %1930 = vmatprep.mubr.f32.mxu0 0.0
    %1931 = vmatmul.mubr.f32.gmra.mrb[0].mxu0 %v1861
    %v1932 = vpop.f32.mrb[0].mxu0
    %v1933 = vadd.f32 0.0, %v1932
    %v1934 = vpop.f32.mrb[0].mxu0
    %1935 = vmatprep.mubr.f32.mxu0 0.0
    %1936 = vmatmul.mubr.f32.gmra.mrb[0].mxu0 %v1864
    %v1937 = vpop.f32.mrb[0].mxu0
    %v1938 = vadd.f32 0.0, %v1937
    %v1939 = vpop.f32.mrb[0].mxu0
    %1940 = vdwg.mxu0
    %s1941 = scalar_lea.vmem [#allocation5], 256
    %v1942 = vld [vmem:[%s1941] sm:$0xff]
    %v1943 = vld [vmem:[%s1941 + $0x8] sm:$0xff]
    %v1944 = vld [vmem:[%s1941 + $0x10] sm:$0xff]
    %v1945 = vld [vmem:[%s1941 + $0x18] sm:$0xff]
    %v1946 = vld [vmem:[%s1941 + $0x20] sm:$0xff]
    %v1947 = vld [vmem:[%s1941 + $0x28] sm:$0xff]
    %v1948 = vld [vmem:[%s1941 + $0x30] sm:$0xff]
    %v1949 = vld [vmem:[%s1941 + $0x38] sm:$0xff]
    %v1950 = vld [vmem:[%s1941 + $0x40] sm:$0xff]
    %v1951 = vld [vmem:[%s1941 + $0x48] sm:$0xff]
    %v1952 = vld [vmem:[%s1941 + $0x50] sm:$0xff]
    %v1953 = vld [vmem:[%s1941 + $0x58] sm:$0xff]
    %v1954 = vld [vmem:[%s1941 + $0x60] sm:$0xff]
    %v1955 = vld [vmem:[%s1941 + $0x68] sm:$0xff]
    %v1956 = vld [vmem:[%s1941 + $0x70] sm:$0xff]
    %v1957 = vld [vmem:[%s1941 + $0x78] sm:$0xff]
    %1958 = vmatprep.subr.mxu0 0.0
    %1959 = vmatpush1.msra.mxu0 %v1942
    %1960 = vmatprep.subr.mxu0 0.0
    %1961 = vmatpush1.msra.mxu0 %v1943
    %1962 = vmatprep.subr.mxu0 0.0
    %1963 = vmatpush1.msra.mxu0 %v1944
    %1964 = vmatprep.subr.mxu0 0.0
    %1965 = vmatpush1.msra.mxu0 %v1945
    %1966 = vmatprep.subr.mxu0 0.0
    %1967 = vmatpush1.msra.mxu0 %v1946
    %1968 = vmatprep.subr.mxu0 0.0
    %1969 = vmatpush1.msra.mxu0 %v1947
    %1970 = vmatprep.subr.mxu0 0.0
    %1971 = vmatpush1.msra.mxu0 %v1948
    %1972 = vmatprep.subr.mxu0 0.0
    %1973 = vmatpush1.msra.mxu0 %v1949
    %1974 = vmatprep.subr.mxu0 0.0
    %1975 = vmatpush1.msra.mxu0 %v1950
    %1976 = vmatprep.subr.mxu0 0.0
    %1977 = vmatpush1.msra.mxu0 %v1951
    %1978 = vmatprep.subr.mxu0 0.0
    %1979 = vmatpush1.msra.mxu0 %v1952
    %1980 = vmatprep.subr.mxu0 0.0
    %1981 = vmatpush1.msra.mxu0 %v1953
    %1982 = vmatprep.subr.mxu0 0.0
    %1983 = vmatpush1.msra.mxu0 %v1954
    %1984 = vmatprep.subr.mxu0 0.0
    %1985 = vmatpush1.msra.mxu0 %v1955
    %1986 = vmatprep.subr.mxu0 0.0
    %1987 = vmatpush1.msra.mxu0 %v1956
    %1988 = vmatprep.subr.mxu0 0.0
    %1989 = vmatpush1.msra.mxu0 %v1957
    %1990 = vmatprep.subr.mxu0 0.0
    %1991 = vmatpush1.msra.mxu0 0.0
    %1992 = vmatprep.subr.mxu0 0.0
    %1993 = vmatpush1.msra.mxu0 0.0
    %1994 = vmatprep.subr.mxu0 0.0
    %1995 = vmatpush1.msra.mxu0 0.0
    %1996 = vmatprep.subr.mxu0 0.0
    %1997 = vmatpush1.msra.mxu0 0.0
    %1998 = vmatprep.subr.mxu0 0.0
    %1999 = vmatpush1.msra.mxu0 0.0
    %2000 = vmatprep.subr.mxu0 0.0
    %2001 = vmatpush1.msra.mxu0 0.0
    %2002 = vmatprep.subr.mxu0 0.0
    %2003 = vmatpush1.msra.mxu0 0.0
    %2004 = vmatprep.subr.mxu0 0.0
    %2005 = vmatpush1.msra.mxu0 0.0
    %2006 = vmatprep.subr.mxu0 0.0
    %2007 = vmatpush1.msra.mxu0 0.0
    %2008 = vmatprep.subr.mxu0 0.0
    %2009 = vmatpush1.msra.mxu0 0.0
    %2010 = vmatprep.subr.mxu0 0.0
    %2011 = vmatpush1.msra.mxu0 0.0
    %2012 = vmatprep.subr.mxu0 0.0
    %2013 = vmatpush1.msra.mxu0 0.0
    %2014 = vmatprep.subr.mxu0 0.0
    %2015 = vmatpush1.msra.mxu0 0.0
    %2016 = vmatprep.subr.mxu0 0.0
    %2017 = vmatpush1.msra.mxu0 0.0
    %2018 = vmatprep.subr.mxu0 0.0
    %2019 = vmatpush1.msra.mxu0 0.0
    %2020 = vmatprep.subr.mxu0 0.0
    %2021 = vmatpush1.msra.mxu0 0.0
    %2022 = vmatprep.mubr.f32.mxu0 0.0
    %2023 = vmatmul.mubr.f32.gmra.mrb[0].mxu0 %v1933
    %v2024 = vpop.f32.mrb[0].mxu0
    %v2025 = vadd.f32 0.0, %v2024
    %v2026 = vpop.f32.mrb[0].mxu0
    %2027 = vmatprep.mubr.f32.mxu0 0.0
    %2028 = vmatmul.mubr.f32.gmra.mrb[0].mxu0 %v1938
    %v2029 = vpop.f32.mrb[0].mxu0
    %v2030 = vadd.f32 0.0, %v2029
    %v2031 = vpop.f32.mrb[0].mxu0
    %2032 = vdwg.mxu0
    %v2033 = vlaneseq
    %v2034 = vshrl.u32 %v2033, 7
    %v2035 = vsub.s32 0, %v2034
    %v2036 = vrot.slane %v1741, %v2035
    %v2037 = vadd.f32 %v2036, %v2025
    %v2038 = vadd.f32 %v2036, %v2030
    %v2039 = vld [vmem:[%s2 + $0xf] sm:$0x1]
    %v2040 = vlaneseq
    %v2041 = vshrl.u32 %v2040, 7
    %v2042 = vsub.s32 0, %v2041
    %v2043 = vrot.slane %v2039, %v2042
    %v2044 = vadd.f32 %v1579, %v2043
    %v2045 = vadd.f32 %v1585, %v2043
    %v2046 = vld [vmem:[%s2 + $0x11] sm:$0x1]
    %v2047 = vlaneseq
    %v2048 = vshrl.u32 %v2047, 7
    %v2049 = vsub.s32 0, %v2048
    %v2050 = vrot.slane %v2046, %v2049
    %v2051 = vadd.f32 %v1656, %v2050
    %v2052 = vadd.f32 %v1662, %v2050
    %v2053 = vld [vmem:[%s2 + $0x13] sm:$0x1]
    %v2054 = vlaneseq
    %v2055 = vshrl.u32 %v2054, 7
    %v2056 = vsub.s32 0, %v2055
    %v2057 = vrot.slane %v2053, %v2056
    %v2058 = vadd.f32 %v1733, %v2057
    %v2059 = vadd.f32 %v1739, %v2057
    %2060 = vmatprep.subr.mxu0 0.0
    %2061 = vmatpush1.xpose.msra.mxu0 %v2051
    %2062 = vmatprep.subr.mxu0 0.0
    %2063 = vmatpush1.xpose.msra.mxu0 %v2052
    %2064 = vmatprep.subr.mxu0 0.0
    %2065 = vmatpush1.xpose.msra.mxu0 0.0
    %2066 = vmatprep.subr.mxu0 0.0
    %2067 = vmatpush1.xpose.msra.mxu0 0.0
    %2068 = vmatprep.subr.mxu0 0.0
    %2069 = vmatpush1.xpose.msra.mxu0 0.0
    %2070 = vmatprep.subr.mxu0 0.0
    %2071 = vmatpush1.xpose.msra.mxu0 0.0
    %2072 = vmatprep.subr.mxu0 0.0
    %2073 = vmatpush1.xpose.msra.mxu0 0.0
    %2074 = vmatprep.subr.mxu0 0.0
    %2075 = vmatpush1.xpose.msra.mxu0 0.0
    %2076 = vmatprep.subr.mxu0 0.0
    %2077 = vmatpush1.xpose.msra.mxu0 0.0
    %2078 = vmatprep.subr.mxu0 0.0
    %2079 = vmatpush1.xpose.msra.mxu0 0.0
    %2080 = vmatprep.subr.mxu0 0.0
    %2081 = vmatpush1.xpose.msra.mxu0 0.0
    %2082 = vmatprep.subr.mxu0 0.0
    %2083 = vmatpush1.xpose.msra.mxu0 0.0
    %2084 = vmatprep.subr.mxu0 0.0
    %2085 = vmatpush1.xpose.msra.mxu0 0.0
    %2086 = vmatprep.subr.mxu0 0.0
    %2087 = vmatpush1.xpose.msra.mxu0 0.0
    %2088 = vmatprep.subr.mxu0 0.0
    %2089 = vmatpush1.xpose.msra.mxu0 0.0
    %2090 = vmatprep.subr.mxu0 0.0
    %2091 = vmatpush1.xpose.msra.mxu0 0.0
    %2092 = vmatprep.subr.mxu0 0.0
    %2093 = vmatpush1.xpose.msra.mxu0 0.0
    %2094 = vmatprep.subr.mxu0 0.0
    %2095 = vmatpush1.xpose.msra.mxu0 0.0
    %2096 = vmatprep.subr.mxu0 0.0
    %2097 = vmatpush1.xpose.msra.mxu0 0.0
    %2098 = vmatprep.subr.mxu0 0.0
    %2099 = vmatpush1.xpose.msra.mxu0 0.0
    %2100 = vmatprep.subr.mxu0 0.0
    %2101 = vmatpush1.xpose.msra.mxu0 0.0
    %2102 = vmatprep.subr.mxu0 0.0
    %2103 = vmatpush1.xpose.msra.mxu0 0.0
    %2104 = vmatprep.subr.mxu0 0.0
    %2105 = vmatpush1.xpose.msra.mxu0 0.0
    %2106 = vmatprep.subr.mxu0 0.0
    %2107 = vmatpush1.xpose.msra.mxu0 0.0
    %2108 = vmatprep.subr.mxu0 0.0
    %2109 = vmatpush1.xpose.msra.mxu0 0.0
    %2110 = vmatprep.subr.mxu0 0.0
    %2111 = vmatpush1.xpose.msra.mxu0 0.0
    %2112 = vmatprep.subr.mxu0 0.0
    %2113 = vmatpush1.xpose.msra.mxu0 0.0
    %2114 = vmatprep.subr.mxu0 0.0
    %2115 = vmatpush1.xpose.msra.mxu0 0.0
    %2116 = vmatprep.subr.mxu0 0.0
    %2117 = vmatpush1.xpose.msra.mxu0 0.0
    %2118 = vmatprep.subr.mxu0 0.0
    %2119 = vmatpush1.xpose.msra.mxu0 0.0
    %2120 = vmatprep.subr.mxu0 0.0
    %2121 = vmatpush1.xpose.msra.mxu0 0.0
    %2122 = vmatprep.subr.mxu0 0.0
    %2123 = vmatpush1.xpose.msra.mxu0 0.0
    %2124 = vmatprep.mubr.f32.mxu0 0.0
    %2125 = vmatmul.mubr.f32.gmra.mrb[0].mxu0 %v2044
    %v2126 = vpop.f32.mrb[0].mxu0
    %v2127 = vadd.f32 %v91, %v2126
    %v2128 = vpop.f32.mrb[0].mxu0
    %2129 = vmatprep.mubr.f32.mxu0 0.0
    %2130 = vmatmul.mubr.f32.gmra.mrb[0].mxu0 %v2045
    %v2131 = vpop.f32.mrb[0].mxu0
    %v2132 = vadd.f32 %v92, %v2131
    %v2133 = vpop.f32.mrb[0].mxu0
    %2134 = vdwg.mxu0
    %v2135 = vsel %vm562, %v2127, -inf
    %2136 = vmax.xlane.f32.xlu0 %v2135
    %v2137 = vpop.xlane.xlu0 %2136
    %v2138 = vsel %vm562, %v2132, -inf
    %2139 = vmax.xlane.f32.xlu0 %v2138
    %v2140 = vpop.xlane.xlu0 %2139
    %v2141 = vsub.f32 %v2127, %v2137
    %v2142 = vsub.f32 %v2132, %v2140
    %v2143 = vmul.f32 %v2141, 1.442695
    %v2144 = vpow.pop %v2143
    %v2145 = vmul.f32 %v2142, 1.442695
    %v2146 = vpow.pop %v2145
    %v2147 = vsel %vm562, %v2144, 0.0
    %2148 = vadd.xlane.f32.xlu0 %v2147
    %v2149 = vpop.xlane.xlu0 %2148
    %v2150 = vsel %vm562, %v2146, 0.0
    %2151 = vadd.xlane.f32.xlu0 %v2150
    %v2152 = vpop.xlane.xlu0 %2151
    %v2153 = vrcp.pop %v2149
    %v2154 = vmul.f32 %v2144, %v2153
    %v2155 = vrcp.pop %v2152
    %v2156 = vmul.f32 %v2146, %v2155
    %v2158 = vsel %vm562, %v2154, 0
    %v2161 = vsel %vm562, %v2156, 0
    %2163 = vmatprep.subr.mxu0 0.0
    %2164 = vmatpush1.msra.mxu0 %v2058
    %2165 = vmatprep.subr.mxu0 0.0
    %2166 = vmatpush1.msra.mxu0 %v2059
    %2167 = vmatprep.subr.mxu0 0.0
    %2168 = vmatpush1.msra.mxu0 0.0
    %2169 = vmatprep.subr.mxu0 0.0
    %2170 = vmatpush1.msra.mxu0 0.0
    %2171 = vmatprep.subr.mxu0 0.0
    %2172 = vmatpush1.msra.mxu0 0.0
    %2173 = vmatprep.subr.mxu0 0.0
    %2174 = vmatpush1.msra.mxu0 0.0
    %2175 = vmatprep.subr.mxu0 0.0
    %2176 = vmatpush1.msra.mxu0 0.0
    %2177 = vmatprep.subr.mxu0 0.0
    %2178 = vmatpush1.msra.mxu0 0.0
    %2179 = vmatprep.subr.mxu0 0.0
    %2180 = vmatpush1.msra.mxu0 0.0
    %2181 = vmatprep.subr.mxu0 0.0
    %2182 = vmatpush1.msra.mxu0 0.0
    %2183 = vmatprep.subr.mxu0 0.0
    %2184 = vmatpush1.msra.mxu0 0.0
    %2185 = vmatprep.subr.mxu0 0.0
    %2186 = vmatpush1.msra.mxu0 0.0
    %2187 = vmatprep.subr.mxu0 0.0
    %2188 = vmatpush1.msra.mxu0 0.0
    %2189 = vmatprep.subr.mxu0 0.0
    %2190 = vmatpush1.msra.mxu0 0.0
    %2191 = vmatprep.subr.mxu0 0.0
    %2192 = vmatpush1.msra.mxu0 0.0
    %2193 = vmatprep.subr.mxu0 0.0
    %2194 = vmatpush1.msra.mxu0 0.0
    %2195 = vmatprep.subr.mxu0 0.0
    %2196 = vmatpush1.msra.mxu0 0.0
    %2197 = vmatprep.subr.mxu0 0.0
    %2198 = vmatpush1.msra.mxu0 0.0
    %2199 = vmatprep.subr.mxu0 0.0
    %2200 = vmatpush1.msra.mxu0 0.0
    %2201 = vmatprep.subr.mxu0 0.0
    %2202 = vmatpush1.msra.mxu0 0.0
    %2203 = vmatprep.subr.mxu0 0.0
    %2204 = vmatpush1.msra.mxu0 0.0
    %2205 = vmatprep.subr.mxu0 0.0
    %2206 = vmatpush1.msra.mxu0 0.0
    %2207 = vmatprep.subr.mxu0 0.0
    %2208 = vmatpush1.msra.mxu0 0.0
    %2209 = vmatprep.subr.mxu0 0.0
    %2210 = vmatpush1.msra.mxu0 0.0
    %2211 = vmatprep.subr.mxu0 0.0
    %2212 = vmatpush1.msra.mxu0 0.0
    %2213 = vmatprep.subr.mxu0 0.0
    %2214 = vmatpush1.msra.mxu0 0.0
    %2215 = vmatprep.subr.mxu0 0.0
    %2216 = vmatpush1.msra.mxu0 0.0
    %2217 = vmatprep.subr.mxu0 0.0
    %2218 = vmatpush1.msra.mxu0 0.0
    %2219 = vmatprep.subr.mxu0 0.0
    %2220 = vmatpush1.msra.mxu0 0.0
    %2221 = vmatprep.subr.mxu0 0.0
    %2222 = vmatpush1.msra.mxu0 0.0
    %2223 = vmatprep.subr.mxu0 0.0
    %2224 = vmatpush1.msra.mxu0 0.0
    %2225 = vmatprep.subr.mxu0 0.0
    %2226 = vmatpush1.msra.mxu0 0.0
    %2227 = vmatprep.mubr.f32.mxu0 0.0
    %2228 = vmatmul.mubr.f32.gmra.mrb[0].mxu0 %v2158
    %v2229 = vpop.f32.mrb[0].mxu0
    %v2230 = vadd.f32 0.0, %v2229
    %v2231 = vpop.f32.mrb[0].mxu0
    %2232 = vmatprep.mubr.f32.mxu0 0.0
    %2233 = vmatmul.mubr.f32.gmra.mrb[0].mxu0 %v2161
    %v2234 = vpop.f32.mrb[0].mxu0
    %v2235 = vadd.f32 0.0, %v2234
    %v2236 = vpop.f32.mrb[0].mxu0
    %2237 = vdwg.mxu0
    %s2238 = scalar_lea.vmem [#allocation5], 384
    %v2239 = vld [vmem:[%s2238] sm:$0xff]
    %v2240 = vld [vmem:[%s2238 + $0x8] sm:$0xff]
    %v2241 = vld [vmem:[%s2238 + $0x10] sm:$0xff]
    %v2242 = vld [vmem:[%s2238 + $0x18] sm:$0xff]
    %v2243 = vld [vmem:[%s2238 + $0x20] sm:$0xff]
    %v2244 = vld [vmem:[%s2238 + $0x28] sm:$0xff]
    %v2245 = vld [vmem:[%s2238 + $0x30] sm:$0xff]
    %v2246 = vld [vmem:[%s2238 + $0x38] sm:$0xff]
    %v2247 = vld [vmem:[%s2238 + $0x40] sm:$0xff]
    %v2248 = vld [vmem:[%s2238 + $0x48] sm:$0xff]
    %v2249 = vld [vmem:[%s2238 + $0x50] sm:$0xff]
    %v2250 = vld [vmem:[%s2238 + $0x58] sm:$0xff]
    %v2251 = vld [vmem:[%s2238 + $0x60] sm:$0xff]
    %v2252 = vld [vmem:[%s2238 + $0x68] sm:$0xff]
    %v2253 = vld [vmem:[%s2238 + $0x70] sm:$0xff]
    %v2254 = vld [vmem:[%s2238 + $0x78] sm:$0xff]
    %2255 = vmatprep.subr.mxu0 0.0
    %2256 = vmatpush1.msra.mxu0 %v2239
    %2257 = vmatprep.subr.mxu0 0.0
    %2258 = vmatpush1.msra.mxu0 %v2240
    %2259 = vmatprep.subr.mxu0 0.0
    %2260 = vmatpush1.msra.mxu0 %v2241
    %2261 = vmatprep.subr.mxu0 0.0
    %2262 = vmatpush1.msra.mxu0 %v2242
    %2263 = vmatprep.subr.mxu0 0.0
    %2264 = vmatpush1.msra.mxu0 %v2243
    %2265 = vmatprep.subr.mxu0 0.0
    %2266 = vmatpush1.msra.mxu0 %v2244
    %2267 = vmatprep.subr.mxu0 0.0
    %2268 = vmatpush1.msra.mxu0 %v2245
    %2269 = vmatprep.subr.mxu0 0.0
    %2270 = vmatpush1.msra.mxu0 %v2246
    %2271 = vmatprep.subr.mxu0 0.0
    %2272 = vmatpush1.msra.mxu0 %v2247
    %2273 = vmatprep.subr.mxu0 0.0
    %2274 = vmatpush1.msra.mxu0 %v2248
    %2275 = vmatprep.subr.mxu0 0.0
    %2276 = vmatpush1.msra.mxu0 %v2249
    %2277 = vmatprep.subr.mxu0 0.0
    %2278 = vmatpush1.msra.mxu0 %v2250
    %2279 = vmatprep.subr.mxu0 0.0
    %2280 = vmatpush1.msra.mxu0 %v2251
    %2281 = vmatprep.subr.mxu0 0.0
    %2282 = vmatpush1.msra.mxu0 %v2252
    %2283 = vmatprep.subr.mxu0 0.0
    %2284 = vmatpush1.msra.mxu0 %v2253
    %2285 = vmatprep.subr.mxu0 0.0
    %2286 = vmatpush1.msra.mxu0 %v2254
    %2287 = vmatprep.subr.mxu0 0.0
    %2288 = vmatpush1.msra.mxu0 0.0
    %2289 = vmatprep.subr.mxu0 0.0
    %2290 = vmatpush1.msra.mxu0 0.0
    %2291 = vmatprep.subr.mxu0 0.0
    %2292 = vmatpush1.msra.mxu0 0.0
    %2293 = vmatprep.subr.mxu0 0.0
    %2294 = vmatpush1.msra.mxu0 0.0
    %2295 = vmatprep.subr.mxu0 0.0
    %2296 = vmatpush1.msra.mxu0 0.0
    %2297 = vmatprep.subr.mxu0 0.0
    %2298 = vmatpush1.msra.mxu0 0.0
    %2299 = vmatprep.subr.mxu0 0.0
    %2300 = vmatpush1.msra.mxu0 0.0
    %2301 = vmatprep.subr.mxu0 0.0
    %2302 = vmatpush1.msra.mxu0 0.0
    %2303 = vmatprep.subr.mxu0 0.0
    %2304 = vmatpush1.msra.mxu0 0.0
    %2305 = vmatprep.subr.mxu0 0.0
    %2306 = vmatpush1.msra.mxu0 0.0
    %2307 = vmatprep.subr.mxu0 0.0
    %2308 = vmatpush1.msra.mxu0 0.0
    %2309 = vmatprep.subr.mxu0 0.0
    %2310 = vmatpush1.msra.mxu0 0.0
    %2311 = vmatprep.subr.mxu0 0.0
    %2312 = vmatpush1.msra.mxu0 0.0
    %2313 = vmatprep.subr.mxu0 0.0
    %2314 = vmatpush1.msra.mxu0 0.0
    %2315 = vmatprep.subr.mxu0 0.0
    %2316 = vmatpush1.msra.mxu0 0.0
    %2317 = vmatprep.subr.mxu0 0.0
    %2318 = vmatpush1.msra.mxu0 0.0
    %2319 = vmatprep.mubr.f32.mxu0 0.0
    %2320 = vmatmul.mubr.f32.gmra.mrb[0].mxu0 %v2230
    %v2321 = vpop.f32.mrb[0].mxu0
    %v2322 = vadd.f32 0.0, %v2321
    %v2323 = vpop.f32.mrb[0].mxu0
    %2324 = vmatprep.mubr.f32.mxu0 0.0
    %2325 = vmatmul.mubr.f32.gmra.mrb[0].mxu0 %v2235
    %v2326 = vpop.f32.mrb[0].mxu0
    %v2327 = vadd.f32 0.0, %v2326
    %v2328 = vpop.f32.mrb[0].mxu0
    %2329 = vdwg.mxu0
    %v2330 = vadd.f32 %v2037, %v2322
    %v2331 = vadd.f32 %v2038, %v2327
    %v2332 = vadd.f32 %v1411, %v2330
    %v2333 = vadd.f32 %v1412, %v2331
    %v2334 = vld [vmem:[%s2 + $0x15] sm:$0x1]
    %v2335 = vld [vmem:[%s2 + $0x16] sm:$0x1]
    %2336 = vadd.xlane.f32.xlu0 %v2332
    %v2337 = vpop.xlane.xlu0 %2336
    %2338 = vadd.xlane.f32.xlu0 %v2333
    %v2339 = vpop.xlane.xlu0 %2338
    %v2340 = vmul.f32 %v2337, %v101
    %v2341 = vmul.f32 %v2339, %v101
    %v2342 = vmul.f32 %v2332, %v2332
    %v2343 = vmul.f32 %v2333, %v2333
    %2344 = vadd.xlane.f32.xlu0 %v2342
    %v2345 = vpop.xlane.xlu0 %2344
    %2346 = vadd.xlane.f32.xlu0 %v2343
    %v2347 = vpop.xlane.xlu0 %2346
    %v2348 = vmul.f32 %v2345, %v101
    %v2349 = vmul.f32 %v2347, %v101
    %v2350 = vmul.f32 %v2340, %v2340
    %v2351 = vmul.f32 %v2341, %v2341
    %v2352 = vsub.f32 %v2348, %v2350
    %v2353 = vsub.f32 %v2349, %v2351
    %v2354 = vmax.f32 %v2352, 0.0
    %v2355 = vmax.f32 %v2353, 0.0
    %v2356 = vsub.f32 %v2332, %v2340
    %v2357 = vsub.f32 %v2333, %v2341
    %v2358 = vadd.f32 %v2354, 1e-12
    %v2359 = vadd.f32 %v2355, 1e-12
    %v2360 = vrsqrt.pop %v2358
    %v2361 = vrsqrt.pop %v2359
    %v2362 = vmul.f32 %v2356, %v2360
    %v2363 = vmul.f32 %v2357, %v2361
    %v2364 = vlaneseq
    %v2365 = vshrl.u32 %v2364, 7
    %v2366 = vsub.s32 0, %v2365
    %v2367 = vrot.slane %v2334, %v2366
    %v2368 = vmul.f32 %v2362, %v2367
    %v2369 = vmul.f32 %v2363, %v2367
    %v2370 = vlaneseq
    %v2371 = vshrl.u32 %v2370, 7
    %v2372 = vsub.s32 0, %v2371
    %v2373 = vrot.slane %v2335, %v2372
    %v2374 = vadd.f32 %v2368, %v2373
    %v2375 = vadd.f32 %v2369, %v2373
    %s2376 = scalar_lea.vmem [#allocation7], 256
    %v2377 = vld [vmem:[%s2376] sm:$0xff]
    %v2378 = vld [vmem:[%s2376 + $0x8] sm:$0xff]
    %v2379 = vld [vmem:[%s2376 + $0x10] sm:$0xff]
    %v2380 = vld [vmem:[%s2376 + $0x18] sm:$0xff]
    %v2381 = vld [vmem:[%s2376 + $0x20] sm:$0xff]
    %v2382 = vld [vmem:[%s2376 + $0x28] sm:$0xff]
    %v2383 = vld [vmem:[%s2376 + $0x30] sm:$0xff]
    %v2384 = vld [vmem:[%s2376 + $0x38] sm:$0xff]
    %v2385 = vld [vmem:[%s2376 + $0x40] sm:$0xff]
    %v2386 = vld [vmem:[%s2376 + $0x48] sm:$0xff]
    %v2387 = vld [vmem:[%s2376 + $0x50] sm:$0xff]
    %v2388 = vld [vmem:[%s2376 + $0x58] sm:$0xff]
    %v2389 = vld [vmem:[%s2376 + $0x60] sm:$0xff]
    %v2390 = vld [vmem:[%s2376 + $0x68] sm:$0xff]
    %v2391 = vld [vmem:[%s2376 + $0x70] sm:$0xff]
    %v2392 = vld [vmem:[%s2376 + $0x78] sm:$0xff]
    %v2393 = vld [vmem:[%s2376 + $0x80] sm:$0xff]
    %v2394 = vld [vmem:[%s2376 + $0x88] sm:$0xff]
    %v2395 = vld [vmem:[%s2376 + $0x90] sm:$0xff]
    %v2396 = vld [vmem:[%s2376 + $0x98] sm:$0xff]
    %v2397 = vld [vmem:[%s2376 + $0xa0] sm:$0xff]
    %v2398 = vld [vmem:[%s2376 + $0xa8] sm:$0xff]
    %v2399 = vld [vmem:[%s2376 + $0xb0] sm:$0xff]
    %v2400 = vld [vmem:[%s2376 + $0xb8] sm:$0xff]
    %v2401 = vld [vmem:[%s2376 + $0xc0] sm:$0xff]
    %v2402 = vld [vmem:[%s2376 + $0xc8] sm:$0xff]
    %v2403 = vld [vmem:[%s2376 + $0xd0] sm:$0xff]
    %v2404 = vld [vmem:[%s2376 + $0xd8] sm:$0xff]
    %v2405 = vld [vmem:[%s2376 + $0xe0] sm:$0xff]
    %v2406 = vld [vmem:[%s2376 + $0xe8] sm:$0xff]
    %v2407 = vld [vmem:[%s2376 + $0xf0] sm:$0xff]
    %v2408 = vld [vmem:[%s2376 + $0xf8] sm:$0xff]
    %s2409 = scalar_lea.vmem %s6, 2
    %v2410 = vld [vmem:[%s2409] sm:$0x3]
    %v2412 = vlaneseq
    %v2413 = vshrl.u32 %v2412, 7
    %v2414 = vsub.s32 0, %v2413
    %v2415 = vrot.slane %v2410, %v2414
    %v2416 = vlaneseq
    %v2417 = vshrl.u32 %v2416, 7
    %v2418 = vsub.s32 1, %v2417
    %v2419 = vrot.slane %v2410, %v2418
    %2422 = vmatprep.subr.mxu0 %v2378
    %2423 = vmatpush1.msra.mxu0 %v2377
    %2424 = vmatprep.subr.mxu0 %v2380
    %2425 = vmatpush1.msra.mxu0 %v2379
    %2426 = vmatprep.subr.mxu0 %v2382
    %2427 = vmatpush1.msra.mxu0 %v2381
    %2428 = vmatprep.subr.mxu0 %v2384
    %2429 = vmatpush1.msra.mxu0 %v2383
    %2430 = vmatprep.subr.mxu0 %v2386
    %2431 = vmatpush1.msra.mxu0 %v2385
    %2432 = vmatprep.subr.mxu0 %v2388
    %2433 = vmatpush1.msra.mxu0 %v2387
    %2434 = vmatprep.subr.mxu0 %v2390
    %2435 = vmatpush1.msra.mxu0 %v2389
    %2436 = vmatprep.subr.mxu0 %v2392
    %2437 = vmatpush1.msra.mxu0 %v2391
    %2438 = vmatprep.subr.mxu0 %v2394
    %2439 = vmatpush1.msra.mxu0 %v2393
    %2440 = vmatprep.subr.mxu0 %v2396
    %2441 = vmatpush1.msra.mxu0 %v2395
    %2442 = vmatprep.subr.mxu0 %v2398
    %2443 = vmatpush1.msra.mxu0 %v2397
    %2444 = vmatprep.subr.mxu0 %v2400
    %2445 = vmatpush1.msra.mxu0 %v2399
    %2446 = vmatprep.subr.mxu0 %v2402
    %2447 = vmatpush1.msra.mxu0 %v2401
    %2448 = vmatprep.subr.mxu0 %v2404
    %2449 = vmatpush1.msra.mxu0 %v2403
    %2450 = vmatprep.subr.mxu0 %v2406
    %2451 = vmatpush1.msra.mxu0 %v2405
    %2452 = vmatprep.subr.mxu0 %v2408
    %2453 = vmatpush1.msra.mxu0 %v2407
    %2454 = vmatprep.subr.mxu0 0.0
    %2455 = vmatpush1.msra.mxu0 0.0
    %2456 = vmatprep.subr.mxu0 0.0
    %2457 = vmatpush1.msra.mxu0 0.0
    %2458 = vmatprep.subr.mxu0 0.0
    %2459 = vmatpush1.msra.mxu0 0.0
    %2460 = vmatprep.subr.mxu0 0.0
    %2461 = vmatpush1.msra.mxu0 0.0
    %2462 = vmatprep.subr.mxu0 0.0
    %2463 = vmatpush1.msra.mxu0 0.0
    %2464 = vmatprep.subr.mxu0 0.0
    %2465 = vmatpush1.msra.mxu0 0.0
    %2466 = vmatprep.subr.mxu0 0.0
    %2467 = vmatpush1.msra.mxu0 0.0
    %2468 = vmatprep.subr.mxu0 0.0
    %2469 = vmatpush1.msra.mxu0 0.0
    %2470 = vmatprep.subr.mxu0 0.0
    %2471 = vmatpush1.msra.mxu0 0.0
    %2472 = vmatprep.subr.mxu0 0.0
    %2473 = vmatpush1.msra.mxu0 0.0
    %2474 = vmatprep.subr.mxu0 0.0
    %2475 = vmatpush1.msra.mxu0 0.0
    %2476 = vmatprep.subr.mxu0 0.0
    %2477 = vmatpush1.msra.mxu0 0.0
    %2478 = vmatprep.subr.mxu0 0.0
    %2479 = vmatpush1.msra.mxu0 0.0
    %2480 = vmatprep.subr.mxu0 0.0
    %2481 = vmatpush1.msra.mxu0 0.0
    %2482 = vmatprep.subr.mxu0 0.0
    %2483 = vmatpush1.msra.mxu0 0.0
    %2484 = vmatprep.subr.mxu0 0.0
    %2485 = vmatpush1.msra.mxu0 0.0
    %2486 = vmatprep.mubr.f32.mxu0 0.0
    %2487 = vmatmul.mubr.f32.gmra.mrb[0].mxu0 %v2374
    %v2488 = vpop.f32.mrb[0].mxu0
    %v2489 = vadd.f32 %v2415, %v2488
    %v2490 = vpop.f32.mrb[0].mxu0
    %v2491 = vadd.f32 %v2419, %v2490
    %2492 = vmatprep.mubr.f32.mxu0 0.0
    %2493 = vmatmul.mubr.f32.gmra.mrb[0].mxu0 %v2375
    %v2494 = vpop.f32.mrb[0].mxu0
    %v2495 = vadd.f32 %v2415, %v2494
    %v2496 = vpop.f32.mrb[0].mxu0
    %v2497 = vadd.f32 %v2419, %v2496
    %2498 = vdwg.mxu0
    %v2499 = vmul.f32 %v2489, %v2489
    %v2500 = vmul.f32 %v2491, %v2491
    %v2501 = vmul.f32 %v2495, %v2495
    %v2502 = vmul.f32 %v2497, %v2497
    %v2503 = vmul.f32 %v2489, %v2499
    %v2504 = vmul.f32 %v2491, %v2500
    %v2505 = vmul.f32 %v2495, %v2501
    %v2506 = vmul.f32 %v2497, %v2502
    %v2507 = vmul.f32 %v2503, 0.044715
    %v2508 = vmul.f32 %v2504, 0.044715
    %v2509 = vmul.f32 %v2505, 0.044715
    %v2510 = vmul.f32 %v2506, 0.044715
    %v2511 = vadd.f32 %v2489, %v2507
    %v2512 = vadd.f32 %v2491, %v2508
    %v2513 = vadd.f32 %v2495, %v2509
    %v2514 = vadd.f32 %v2497, %v2510
    %v2515 = vmul.f32 %v2511, 0.7978846
    %v2516 = vmul.f32 %v2512, 0.7978846
    %v2517 = vmul.f32 %v2513, 0.7978846
    %v2518 = vmul.f32 %v2514, 0.7978846
    %v2519 = vtanh.pop %v2515
    %v2520 = vtanh.pop %v2516
    %v2521 = vtanh.pop %v2517
    %v2522 = vtanh.pop %v2518
    %v2523 = vadd.f32 %v2519, 1.0
    %v2524 = vadd.f32 %v2520, 1.0
    %v2525 = vadd.f32 %v2521, 1.0
    %v2526 = vadd.f32 %v2522, 1.0
    %v2527 = vmul.f32 %v2523, 0.5
    %v2528 = vmul.f32 %v2524, 0.5
    %v2529 = vmul.f32 %v2525, 0.5
    %v2530 = vmul.f32 %v2526, 0.5
    %v2531 = vmul.f32 %v2489, %v2527
    %v2532 = vmul.f32 %v2491, %v2528
    %v2533 = vmul.f32 %v2495, %v2529
    %v2534 = vmul.f32 %v2497, %v2530
    %s2535 = scalar_lea.vmem [#allocation8], 256
    %v2536 = vld [vmem:[%s2535] sm:$0xff]
    %v2537 = vld [vmem:[%s2535 + $0x8] sm:$0xff]
    %v2538 = vld [vmem:[%s2535 + $0x10] sm:$0xff]
    %v2539 = vld [vmem:[%s2535 + $0x18] sm:$0xff]
    %v2540 = vld [vmem:[%s2535 + $0x20] sm:$0xff]
    %v2541 = vld [vmem:[%s2535 + $0x28] sm:$0xff]
    %v2542 = vld [vmem:[%s2535 + $0x30] sm:$0xff]
    %v2543 = vld [vmem:[%s2535 + $0x38] sm:$0xff]
    %v2544 = vld [vmem:[%s2535 + $0x40] sm:$0xff]
    %v2545 = vld [vmem:[%s2535 + $0x48] sm:$0xff]
    %v2546 = vld [vmem:[%s2535 + $0x50] sm:$0xff]
    %v2547 = vld [vmem:[%s2535 + $0x58] sm:$0xff]
    %v2548 = vld [vmem:[%s2535 + $0x60] sm:$0xff]
    %v2549 = vld [vmem:[%s2535 + $0x68] sm:$0xff]
    %v2550 = vld [vmem:[%s2535 + $0x70] sm:$0xff]
    %v2551 = vld [vmem:[%s2535 + $0x78] sm:$0xff]
    %v2552 = vld [vmem:[%s2535 + $0x80] sm:$0xff]
    %v2553 = vld [vmem:[%s2535 + $0x88] sm:$0xff]
    %v2554 = vld [vmem:[%s2535 + $0x90] sm:$0xff]
    %v2555 = vld [vmem:[%s2535 + $0x98] sm:$0xff]
    %v2556 = vld [vmem:[%s2535 + $0xa0] sm:$0xff]
    %v2557 = vld [vmem:[%s2535 + $0xa8] sm:$0xff]
    %v2558 = vld [vmem:[%s2535 + $0xb0] sm:$0xff]
    %v2559 = vld [vmem:[%s2535 + $0xb8] sm:$0xff]
    %v2560 = vld [vmem:[%s2535 + $0xc0] sm:$0xff]
    %v2561 = vld [vmem:[%s2535 + $0xc8] sm:$0xff]
    %v2562 = vld [vmem:[%s2535 + $0xd0] sm:$0xff]
    %v2563 = vld [vmem:[%s2535 + $0xd8] sm:$0xff]
    %v2564 = vld [vmem:[%s2535 + $0xe0] sm:$0xff]
    %v2565 = vld [vmem:[%s2535 + $0xe8] sm:$0xff]
    %v2566 = vld [vmem:[%s2535 + $0xf0] sm:$0xff]
    %v2567 = vld [vmem:[%s2535 + $0xf8] sm:$0xff]
    %v2568 = vld [vmem:[%s2 + $0x17] sm:$0x1]
    %v2569 = vlaneseq
    %v2570 = vshrl.u32 %v2569, 7
    %v2571 = vsub.s32 0, %v2570
    %v2572 = vrot.slane %v2568, %v2571
    %2573 = vmatprep.subr.mxu0 0.0
    %2574 = vmatpush1.msra.mxu0 %v2536
    %2575 = vmatprep.subr.mxu0 0.0
    %2576 = vmatpush1.msra.mxu0 %v2537
    %2577 = vmatprep.subr.mxu0 0.0
    %2578 = vmatpush1.msra.mxu0 %v2538
    %2579 = vmatprep.subr.mxu0 0.0
    %2580 = vmatpush1.msra.mxu0 %v2539
    %2581 = vmatprep.subr.mxu0 0.0
    %2582 = vmatpush1.msra.mxu0 %v2540
    %2583 = vmatprep.subr.mxu0 0.0
    %2584 = vmatpush1.msra.mxu0 %v2541
    %2585 = vmatprep.subr.mxu0 0.0
    %2586 = vmatpush1.msra.mxu0 %v2542
    %2587 = vmatprep.subr.mxu0 0.0
    %2588 = vmatpush1.msra.mxu0 %v2543
    %2589 = vmatprep.subr.mxu0 0.0
    %2590 = vmatpush1.msra.mxu0 %v2544
    %2591 = vmatprep.subr.mxu0 0.0
    %2592 = vmatpush1.msra.mxu0 %v2545
    %2593 = vmatprep.subr.mxu0 0.0
    %2594 = vmatpush1.msra.mxu0 %v2546
    %2595 = vmatprep.subr.mxu0 0.0
    %2596 = vmatpush1.msra.mxu0 %v2547
    %2597 = vmatprep.subr.mxu0 0.0
    %2598 = vmatpush1.msra.mxu0 %v2548
    %2599 = vmatprep.subr.mxu0 0.0
    %2600 = vmatpush1.msra.mxu0 %v2549
    %2601 = vmatprep.subr.mxu0 0.0
    %2602 = vmatpush1.msra.mxu0 %v2550
    %2603 = vmatprep.subr.mxu0 0.0
    %2604 = vmatpush1.msra.mxu0 %v2551
    %2605 = vmatprep.subr.mxu0 0.0
    %2606 = vmatpush1.msra.mxu0 %v2552
    %2607 = vmatprep.subr.mxu0 0.0
    %2608 = vmatpush1.msra.mxu0 %v2553
    %2609 = vmatprep.subr.mxu0 0.0
    %2610 = vmatpush1.msra.mxu0 %v2554
    %2611 = vmatprep.subr.mxu0 0.0
    %2612 = vmatpush1.msra.mxu0 %v2555
    %2613 = vmatprep.subr.mxu0 0.0
    %2614 = vmatpush1.msra.mxu0 %v2556
    %2615 = vmatprep.subr.mxu0 0.0
    %2616 = vmatpush1.msra.mxu0 %v2557
    %2617 = vmatprep.subr.mxu0 0.0
    %2618 = vmatpush1.msra.mxu0 %v2558
    %2619 = vmatprep.subr.mxu0 0.0
    %2620 = vmatpush1.msra.mxu0 %v2559
    %2621 = vmatprep.subr.mxu0 0.0
    %2622 = vmatpush1.msra.mxu0 %v2560
    %2623 = vmatprep.subr.mxu0 0.0
    %2624 = vmatpush1.msra.mxu0 %v2561
    %2625 = vmatprep.subr.mxu0 0.0
    %2626 = vmatpush1.msra.mxu0 %v2562
    %2627 = vmatprep.subr.mxu0 0.0
    %2628 = vmatpush1.msra.mxu0 %v2563
    %2629 = vmatprep.subr.mxu0 0.0
    %2630 = vmatpush1.msra.mxu0 %v2564
    %2631 = vmatprep.subr.mxu0 0.0
    %2632 = vmatpush1.msra.mxu0 %v2565
    %2633 = vmatprep.subr.mxu0 0.0
    %2634 = vmatpush1.msra.mxu0 %v2566
    %2635 = vmatprep.subr.mxu0 0.0
    %2636 = vmatpush1.msra.mxu0 %v2567
    %2637 = vmatprep.mubr.f32.mxu0 %v2532
    %2638 = vmatmul.mubr.f32.gmra.mrb[0].mxu0 %v2531
    %v2639 = vpop.f32.mrb[0].mxu0
    %v2640 = vadd.f32 %v2572, %v2639
    %v2641 = vpop.f32.mrb[0].mxu0
    %2642 = vmatprep.mubr.f32.mxu0 %v2534
    %2643 = vmatmul.mubr.f32.gmra.mrb[0].mxu0 %v2533
    %v2644 = vpop.f32.mrb[0].mxu0
    %v2645 = vadd.f32 %v2572, %v2644
    %v2646 = vpop.f32.mrb[0].mxu0
    %2647 = vdwg.mxu0
    %v2648 = vadd.f32 %v2374, %v2640
    %v2649 = vadd.f32 %v2375, %v2645
    %v2650 = vld [vmem:[%s2 + $0x18] sm:$0x1]
    %v2651 = vld [vmem:[%s2 + $0x19] sm:$0x1]
    %2652 = vadd.xlane.f32.xlu0 %v2648
    %v2653 = vpop.xlane.xlu0 %2652
    %2654 = vadd.xlane.f32.xlu0 %v2649
    %v2655 = vpop.xlane.xlu0 %2654
    %v2656 = vmul.f32 %v2653, %v101
    %v2657 = vmul.f32 %v2655, %v101
    %v2658 = vmul.f32 %v2648, %v2648
    %v2659 = vmul.f32 %v2649, %v2649
    %2660 = vadd.xlane.f32.xlu0 %v2658
    %v2661 = vpop.xlane.xlu0 %2660
    %2662 = vadd.xlane.f32.xlu0 %v2659
    %v2663 = vpop.xlane.xlu0 %2662
    %v2664 = vmul.f32 %v2661, %v101
    %v2665 = vmul.f32 %v2663, %v101
    %v2666 = vmul.f32 %v2656, %v2656
    %v2667 = vmul.f32 %v2657, %v2657
    %v2668 = vsub.f32 %v2664, %v2666
    %v2669 = vsub.f32 %v2665, %v2667
    %v2670 = vmax.f32 %v2668, 0.0
    %v2671 = vmax.f32 %v2669, 0.0
    %v2672 = vsub.f32 %v2648, %v2656
    %v2673 = vsub.f32 %v2649, %v2657
    %v2674 = vadd.f32 %v2670, 1e-12
    %v2675 = vadd.f32 %v2671, 1e-12
    %v2676 = vrsqrt.pop %v2674
    %v2677 = vrsqrt.pop %v2675
    %v2678 = vmul.f32 %v2672, %v2676
    %v2679 = vmul.f32 %v2673, %v2677
    %v2680 = vlaneseq
    %v2681 = vshrl.u32 %v2680, 7
    %v2682 = vsub.s32 0, %v2681
    %v2683 = vrot.slane %v2650, %v2682
    %v2684 = vmul.f32 %v2678, %v2683
    %v2685 = vmul.f32 %v2679, %v2683
    %v2686 = vlaneseq
    %v2687 = vshrl.u32 %v2686, 7
    %v2688 = vsub.s32 0, %v2687
    %v2689 = vrot.slane %v2651, %v2688
    %v2690 = vadd.f32 %v2684, %v2689
    %v2691 = vadd.f32 %v2685, %v2689
    %v2693 = vrot.slane %v2691, 7
    %vm2695 = vcmask 1040384
    %v2696 = vsel %vm2695, %v2690, %v2693
    %v2697 = vld [vmem:[%s8] sm:$0xff]
    %v2698 = vld [vmem:[%s8 + $0x8] sm:$0xff]
    %v2699 = vld [vmem:[%s8 + $0x10] sm:$0xff]
    %v2700 = vld [vmem:[%s8 + $0x18] sm:$0xff]
    %v2701 = vld [vmem:[%s8 + $0x20] sm:$0xff]
    %v2702 = vld [vmem:[%s8 + $0x28] sm:$0xff]
    %v2703 = vld [vmem:[%s8 + $0x30] sm:$0xff]
    %v2704 = vld [vmem:[%s8 + $0x38] sm:$0xff]
    %v2705 = vld [vmem:[%s8 + $0x40] sm:$0xff]
    %v2706 = vld [vmem:[%s8 + $0x48] sm:$0xff]
    %v2707 = vld [vmem:[%s8 + $0x50] sm:$0xff]
    %v2708 = vld [vmem:[%s8 + $0x58] sm:$0xff]
    %v2709 = vld [vmem:[%s8 + $0x60] sm:$0xff]
    %v2710 = vld [vmem:[%s8 + $0x68] sm:$0xff]
    %v2711 = vld [vmem:[%s8 + $0x70] sm:$0xff]
    %v2712 = vld [vmem:[%s8 + $0x78] sm:$0xff]
    %v2713 = vld [vmem:[%s2 + $0x1a] sm:$0x1]
    %v2714 = vlaneseq
    %v2715 = vshrl.u32 %v2714, 7
    %v2716 = vsub.s32 0, %v2715
    %v2717 = vrot.slane %v2713, %v2716
    %2718 = vmatprep.subr.mxu0 0.0
    %2719 = vmatpush1.msra.mxu0 %v2697
    %2720 = vmatprep.subr.mxu0 0.0
    %2721 = vmatpush1.msra.mxu0 %v2698
    %2722 = vmatprep.subr.mxu0 0.0
    %2723 = vmatpush1.msra.mxu0 %v2699
    %2724 = vmatprep.subr.mxu0 0.0
    %2725 = vmatpush1.msra.mxu0 %v2700
    %2726 = vmatprep.subr.mxu0 0.0
    %2727 = vmatpush1.msra.mxu0 %v2701
    %2728 = vmatprep.subr.mxu0 0.0
    %2729 = vmatpush1.msra.mxu0 %v2702
    %2730 = vmatprep.subr.mxu0 0.0
    %2731 = vmatpush1.msra.mxu0 %v2703
    %2732 = vmatprep.subr.mxu0 0.0
    %2733 = vmatpush1.msra.mxu0 %v2704
    %2734 = vmatprep.subr.mxu0 0.0
    %2735 = vmatpush1.msra.mxu0 %v2705
    %2736 = vmatprep.subr.mxu0 0.0
    %2737 = vmatpush1.msra.mxu0 %v2706
    %2738 = vmatprep.subr.mxu0 0.0
    %2739 = vmatpush1.msra.mxu0 %v2707
    %2740 = vmatprep.subr.mxu0 0.0
    %2741 = vmatpush1.msra.mxu0 %v2708
    %2742 = vmatprep.subr.mxu0 0.0
    %2743 = vmatpush1.msra.mxu0 %v2709
    %2744 = vmatprep.subr.mxu0 0.0
    %2745 = vmatpush1.msra.mxu0 %v2710
    %2746 = vmatprep.subr.mxu0 0.0
    %2747 = vmatpush1.msra.mxu0 %v2711
    %2748 = vmatprep.subr.mxu0 0.0
    %2749 = vmatpush1.msra.mxu0 %v2712
    %2750 = vmatprep.subr.mxu0 0.0
    %2751 = vmatpush1.msra.mxu0 0.0
    %2752 = vmatprep.subr.mxu0 0.0
    %2753 = vmatpush1.msra.mxu0 0.0
    %2754 = vmatprep.subr.mxu0 0.0
    %2755 = vmatpush1.msra.mxu0 0.0
    %2756 = vmatprep.subr.mxu0 0.0
    %2757 = vmatpush1.msra.mxu0 0.0
    %2758 = vmatprep.subr.mxu0 0.0
    %2759 = vmatpush1.msra.mxu0 0.0
    %2760 = vmatprep.subr.mxu0 0.0
    %2761 = vmatpush1.msra.mxu0 0.0
    %2762 = vmatprep.subr.mxu0 0.0
    %2763 = vmatpush1.msra.mxu0 0.0
    %2764 = vmatprep.subr.mxu0 0.0
    %2765 = vmatpush1.msra.mxu0 0.0
    %2766 = vmatprep.subr.mxu0 0.0
    %2767 = vmatpush1.msra.mxu0 0.0
    %2768 = vmatprep.subr.mxu0 0.0
    %2769 = vmatpush1.msra.mxu0 0.0
    %2770 = vmatprep.subr.mxu0 0.0
    %2771 = vmatpush1.msra.mxu0 0.0
    %2772 = vmatprep.subr.mxu0 0.0
    %2773 = vmatpush1.msra.mxu0 0.0
    %2774 = vmatprep.subr.mxu0 0.0
    %2775 = vmatpush1.msra.mxu0 0.0
    %2776 = vmatprep.subr.mxu0 0.0
    %2777 = vmatpush1.msra.mxu0 0.0
    %2778 = vmatprep.subr.mxu0 0.0
    %2779 = vmatpush1.msra.mxu0 0.0
    %2780 = vmatprep.subr.mxu0 0.0
    %2781 = vmatpush1.msra.mxu0 0.0
    %2782 = vmatprep.mubr.f32.mxu0 0.0
    %2783 = vmatmul.mubr.f32.gmra.mrb[0].mxu0 %v2696
    %v2784 = vpop.f32.mrb[0].mxu0
    %v2785 = vadd.f32 %v2717, %v2784
    %v2786 = vpop.f32.mrb[0].mxu0
    %2787 = vdwg.mxu0
    %v2788 = vtanh.pop %v2785
    %v2789 = vld [vmem:[%s9] sm:$0xff]
    %v2790 = vld [vmem:[%s9 + $0x8] sm:$0xff]
    %v2791 = vld [vmem:[%s9 + $0x10] sm:$0xff]
    %v2792 = vld [vmem:[%s9 + $0x18] sm:$0xff]
    %v2793 = vld [vmem:[%s9 + $0x20] sm:$0xff]
    %v2794 = vld [vmem:[%s9 + $0x28] sm:$0xff]
    %v2795 = vld [vmem:[%s9 + $0x30] sm:$0xff]
    %v2796 = vld [vmem:[%s9 + $0x38] sm:$0xff]
    %v2797 = vld [vmem:[%s9 + $0x40] sm:$0xff]
    %v2798 = vld [vmem:[%s9 + $0x48] sm:$0xff]
    %v2799 = vld [vmem:[%s9 + $0x50] sm:$0xff]
    %v2800 = vld [vmem:[%s9 + $0x58] sm:$0xff]
    %v2801 = vld [vmem:[%s9 + $0x60] sm:$0xff]
    %v2802 = vld [vmem:[%s9 + $0x68] sm:$0xff]
    %v2803 = vld [vmem:[%s9 + $0x70] sm:$0xff]
    %v2804 = vld [vmem:[%s9 + $0x78] sm:$0xff]
    %v2805 = vld [vmem:[%s2 + $0x1b] sm:$0x1]
    %v2806 = vlaneseq
    %v2807 = vshrl.u32 %v2806, 7
    %v2808 = vsub.s32 0, %v2807
    %v2809 = vrot.slane %v2805, %v2808
    %2810 = vmatprep.subr.mxu0 0.0
    %2811 = vmatpush1.msra.mxu0 %v2789
    %2812 = vmatprep.subr.mxu0 0.0
    %2813 = vmatpush1.msra.mxu0 %v2790
    %2814 = vmatprep.subr.mxu0 0.0
    %2815 = vmatpush1.msra.mxu0 %v2791
    %2816 = vmatprep.subr.mxu0 0.0
    %2817 = vmatpush1.msra.mxu0 %v2792
    %2818 = vmatprep.subr.mxu0 0.0
    %2819 = vmatpush1.msra.mxu0 %v2793
    %2820 = vmatprep.subr.mxu0 0.0
    %2821 = vmatpush1.msra.mxu0 %v2794
    %2822 = vmatprep.subr.mxu0 0.0
    %2823 = vmatpush1.msra.mxu0 %v2795
    %2824 = vmatprep.subr.mxu0 0.0
    %2825 = vmatpush1.msra.mxu0 %v2796
    %2826 = vmatprep.subr.mxu0 0.0
    %2827 = vmatpush1.msra.mxu0 %v2797
    %2828 = vmatprep.subr.mxu0 0.0
    %2829 = vmatpush1.msra.mxu0 %v2798
    %2830 = vmatprep.subr.mxu0 0.0
    %2831 = vmatpush1.msra.mxu0 %v2799
    %2832 = vmatprep.subr.mxu0 0.0
    %2833 = vmatpush1.msra.mxu0 %v2800
    %2834 = vmatprep.subr.mxu0 0.0
    %2835 = vmatpush1.msra.mxu0 %v2801
    %2836 = vmatprep.subr.mxu0 0.0
    %2837 = vmatpush1.msra.mxu0 %v2802
    %2838 = vmatprep.subr.mxu0 0.0
    %2839 = vmatpush1.msra.mxu0 %v2803
    %2840 = vmatprep.subr.mxu0 0.0
    %2841 = vmatpush1.msra.mxu0 %v2804
    %2842 = vmatprep.subr.mxu0 0.0
    %2843 = vmatpush1.msra.mxu0 0.0
    %2844 = vmatprep.subr.mxu0 0.0
    %2845 = vmatpush1.msra.mxu0 0.0
    %2846 = vmatprep.subr.mxu0 0.0
    %2847 = vmatpush1.msra.mxu0 0.0
    %2848 = vmatprep.subr.mxu0 0.0
    %2849 = vmatpush1.msra.mxu0 0.0
    %2850 = vmatprep.subr.mxu0 0.0
    %2851 = vmatpush1.msra.mxu0 0.0
    %2852 = vmatprep.subr.mxu0 0.0
    %2853 = vmatpush1.msra.mxu0 0.0
    %2854 = vmatprep.subr.mxu0 0.0
    %2855 = vmatpush1.msra.mxu0 0.0
    %2856 = vmatprep.subr.mxu0 0.0
    %2857 = vmatpush1.msra.mxu0 0.0
    %2858 = vmatprep.subr.mxu0 0.0
    %2859 = vmatpush1.msra.mxu0 0.0
    %2860 = vmatprep.subr.mxu0 0.0
    %2861 = vmatpush1.msra.mxu0 0.0
    %2862 = vmatprep.subr.mxu0 0.0
    %2863 = vmatpush1.msra.mxu0 0.0
    %2864 = vmatprep.subr.mxu0 0.0
    %2865 = vmatpush1.msra.mxu0 0.0
    %2866 = vmatprep.subr.mxu0 0.0
    %2867 = vmatpush1.msra.mxu0 0.0
    %2868 = vmatprep.subr.mxu0 0.0
    %2869 = vmatpush1.msra.mxu0 0.0
    %2870 = vmatprep.subr.mxu0 0.0
    %2871 = vmatpush1.msra.mxu0 0.0
    %2872 = vmatprep.subr.mxu0 0.0
    %2873 = vmatpush1.msra.mxu0 0.0
    %2874 = vmatprep.mubr.f32.mxu0 0.0
    %2875 = vmatmul.mubr.f32.gmra.mrb[0].mxu0 %v2788
    %v2876 = vpop.f32.mrb[0].mxu0
    %v2877 = vadd.f32 %v2809, %v2876
    %v2878 = vpop.f32.mrb[0].mxu0
    %2879 = vdwg.mxu0
    %2880 = vst [vmem:[#allocation10] sm:$0x3] %v2877
    // Predicated region
    $region58: #{bert_forward.1} parent=1 // pred_check
      _
    $region59: #{bert_forward.1} parent=1 // pred_check_branch
      %2882 = sbr.rel (0) target = $region61
    $region60: #{bert_forward.1} parent=1 // pred_region
      %s2884 = ssub.s32 32, 32
      %2885 = vsyncadd [#allocation4], %s2884
      %s2887 = sshll.u32 [#allocation10], 4
      %s2888 = int_to_ptr.vmem [resolvable:$true] %s2887
      %2890 = dma.vmem_to_hbm [thread:$0]  %s2888, 32, %s10, [#allocation4]
    $region61: #{bert_forward.1} parent=1 // pred_fallthru
      _
    // Predicated region
    $region62: #{bert_forward.1} parent=1 // pred_check
      _
    $region63: #{bert_forward.1} parent=1 // pred_check_branch
      %2892 = sbr.rel (0) target = $region65
    $region64: #{bert_forward.1} parent=1 // pred_region
      %2893 = dma.done [#allocation4], 32
    $region65: #{bert_forward.1} parent=1 // pred_fallthru
      _
    %2894 = vsyncpa [#allocation3], 1
    %2895 = vsyncpa [#allocation6], 1
    %2896 = vsyncpa [#allocation9], 1
    %2897 = vsyncpa [#allocation4], 1

</llo_original>
